<compile_context>
chip_gen: v5e
topology: v5e:2x2
jax: 0.10.0
libtpu: 0.0.40
codegen_flags: <defaults>
</compile_context>

<pallas_src>
import math
import jax
import jax.numpy as jnp
from jax.experimental import pallas as pl
from jax.experimental.pallas import tpu as pltpu


# ----------------------------------------------------------------------------
# Kernel
# ----------------------------------------------------------------------------
def make_stacked_transformer_kernel(B, S, E, V, nhead, num_layers):
    Dh = E // nhead
    assert Dh * nhead == E, "embedding_size must be divisible by nhead=16"
    eps = 1e-5
    BS = B * S
    BH = B * nhead

    def layer_norm(x, w, b):
        mu = jnp.mean(x, axis=-1, keepdims=True)
        var = jnp.mean(jnp.square(x - mu), axis=-1, keepdims=True)
        return (x - mu) * jax.lax.rsqrt(var + eps) * w + b

    def kernel(ids_ref, emb_ref, pe_ref, hmask_ref,
               wq_ref, bq_ref, wk_ref, bk_ref, wv_ref, bv_ref,
               wo_ref, bo_ref, w1_ref, b1_ref, w2_ref, b2_ref,
               ln1w_ref, ln1b_ref, ln2w_ref, ln2b_ref,
               clsw_ref, clsb_ref, out_ref):
        # ---- Embedding lookup as one-hot matmul (V=50 is tiny) ----
        # TODO(synk): for large vocab switch to a scalar-prefetched row gather.
        ids = ids_ref[...]                                           # (BS, 1) i32
        vocab_iota = jax.lax.broadcasted_iota(jnp.int32, (BS, V), 1)
        onehot = (ids == vocab_iota).astype(jnp.float32)
        x = jnp.dot(onehot, emb_ref[...],
                    preferred_element_type=jnp.float32)              # (BS, E) f32

        # ---- Positional encoding (broadcast over batch); dropout = identity ----
        # TODO(synk): no sqrt(E) embedding scale applied (matches a plain
        # "x + pe" PositionalEncoding); add it if the reference scales.
        x = (x.reshape(B, S, E) + pe_ref[...]).reshape(BS, E)

        # Constant per-head lane mask, hoisted once: (1, H, 1, E)
        hmask = hmask_ref[...].reshape(1, nhead, 1, E)

        def to_heads(t):
            # (BS,E) -> (B,1,S,E); broadcast-multiply by the head mask
            # -> (B,H,S,E); merge leading dims -> (B*H, S, E) bf16.
            # Lanes outside head h are zeroed, so an E-wide contraction is an
            # exact per-head Dh-wide contraction.
            th = t.reshape(B, 1, S, E) * hmask
            return th.reshape(BH, S, E).astype(jnp.bfloat16)

        # ---- Transformer encoder layers (post-norm, relu FFN) ----
        # TODO(synk): for large L/E, replace this static unroll with a grid
        # axis over layers + per-layer weight BlockSpecs (weight streaming).
        for l in range(num_layers):
            xb = x.astype(jnp.bfloat16)
            # Q/K/V projections (1/sqrt(Dh) already folded into wq/bq).
            q = jnp.dot(xb, wq_ref[l], preferred_element_type=jnp.float32) + bq_ref[l]
            k = jnp.dot(xb, wk_ref[l], preferred_element_type=jnp.float32) + bk_ref[l]
            v = jnp.dot(xb, wv_ref[l], preferred_element_type=jnp.float32) + bv_ref[l]

            qh, kh, vh = to_heads(q), to_heads(k), to_heads(v)       # (B*H, S, E)

            # All heads at once: batch axis = B*nhead.
            s = jnp.einsum('bqe,bke->bqk', qh, kh,
                           preferred_element_type=jnp.float32)       # (B*H, S, S)
            s = s - jnp.max(s, axis=-1, keepdims=True)
            p = jnp.exp(s)
            p = p * pl.reciprocal(jnp.sum(p, axis=-1, keepdims=True),
                                  approx=True)
            o = jnp.einsum('bqk,bke->bqe', p.astype(jnp.bfloat16), vh,
                           preferred_element_type=jnp.float32)       # (B*H, S, E)
            # Head outputs live on disjoint lanes -> summing over the head
            # axis IS the concat.
            ao = jnp.sum(o.reshape(B, nhead, S, E), axis=1).reshape(BS, E)

            attn = jnp.dot(ao.astype(jnp.bfloat16), wo_ref[l],
                           preferred_element_type=jnp.float32) + bo_ref[l]

            # residual + LayerNorm 1
            x = layer_norm(x + attn, ln1w_ref[l], ln1b_ref[l])

            # feed-forward: linear1 -> relu -> linear2
            xb2 = x.astype(jnp.bfloat16)
            h1 = jnp.maximum(
                jnp.dot(xb2, w1_ref[l], preferred_element_type=jnp.float32)
                + b1_ref[l], 0.0)
            ff = jnp.dot(h1.astype(jnp.bfloat16), w2_ref[l],
                         preferred_element_type=jnp.float32) + b2_ref[l]

            # residual + LayerNorm 2
            x = layer_norm(x + ff, ln2w_ref[l], ln2b_ref[l])

        # ---- Lane-dense classifier (weights pre-padded to 128 lanes) ----
        logits = jnp.dot(x.astype(jnp.bfloat16), clsw_ref[...],
                         preferred_element_type=jnp.float32) + clsb_ref[...]
        out_ref[...] = logits                                        # (BS, CP) f32

    return kernel


# ----------------------------------------------------------------------------
# One-time parameter preparation (NOT on the per-call path)
# ----------------------------------------------------------------------------
def prepare_params(params, *, nhead=16):
    """Transpose weights to x@W orientation, cast matmul weights to bf16, fold
    1/sqrt(Dh) into the Q projection, lane-pad the classifier to 128 lanes and
    build the per-head lane mask.  Call once and reuse across forward calls."""
    bf16, f32 = jnp.bfloat16, jnp.float32
    V, E = params["emb"].shape
    L = params["ipw"].shape[0]
    H1 = params["l1w"].shape[1]
    C = params["clsw"].shape[0]
    S = params["pe"].shape[0]
    Dh = E // nhead
    scale = 1.0 / math.sqrt(Dh)
    CP = pl.cdiv(C, 128) * 128            # lane-dense output width

    ipw, ipb = params["ipw"], params["ipb"]          # (L,3E,E), (L,3E): [q;k;v]
    wq = jnp.transpose(ipw[:, 0:E, :], (0, 2, 1)) * scale
    wk = jnp.transpose(ipw[:, E:2 * E, :], (0, 2, 1))
    wv = jnp.transpose(ipw[:, 2 * E:3 * E, :], (0, 2, 1))
    bq = ipb[:, 0:E].reshape(L, 1, E) * scale
    bk = ipb[:, E:2 * E].reshape(L, 1, E)
    bv = ipb[:, 2 * E:3 * E].reshape(L, 1, E)

    clsw = jnp.zeros((E, CP), f32).at[:, :C].set(params["clsw"].T)
    clsb = jnp.zeros((1, CP), f32).at[:, :C].set(params["clsb"].reshape(1, C))

    # head_mask[h, 0, e] = 1 iff lane e belongs to head h (contiguous Dh slices)
    head_mask = ((jnp.arange(E, dtype=jnp.int32) // Dh)[None, None, :]
                 == jnp.arange(nhead, dtype=jnp.int32)[:, None, None]).astype(f32)

    return dict(
        dims=dict(E=E, V=V, L=L, H1=H1, C=C, CP=CP, S=S, nhead=nhead),
        emb=params["emb"].astype(f32),
        pe=params["pe"].astype(f32),
        head_mask=head_mask,                                   # (H, 1, E)
        wq=wq.astype(bf16), bq=bq.astype(f32),
        wk=wk.astype(bf16), bk=bk.astype(f32),
        wv=wv.astype(bf16), bv=bv.astype(f32),
        wo=jnp.transpose(params["opw"], (0, 2, 1)).astype(bf16),
        bo=params["opb"].reshape(L, 1, E).astype(f32),
        w1=jnp.transpose(params["l1w"], (0, 2, 1)).astype(bf16),
        b1=params["l1b"].reshape(L, 1, H1).astype(f32),
        w2=jnp.transpose(params["l2w"], (0, 2, 1)).astype(bf16),
        b2=params["l2b"].reshape(L, 1, E).astype(f32),
        ln1w=params["ln1w"].reshape(L, 1, E).astype(f32),
        ln1b=params["ln1b"].reshape(L, 1, E).astype(f32),
        ln2w=params["ln2w"].reshape(L, 1, E).astype(f32),
        ln2b=params["ln2b"].reshape(L, 1, E).astype(f32),
        clsw=clsw.astype(bf16), clsb=clsb,
    )


# ----------------------------------------------------------------------------
# Forward wrapper
# ----------------------------------------------------------------------------
def stacked_transformer_forward(ids, prepped, *, is_seq2seq=False):
    d = prepped["dims"]
    E, V, L, C, CP, S, nhead = (d["E"], d["V"], d["L"], d["C"], d["CP"],
                                d["S"], d["nhead"])
    B, S_in = ids.shape
    assert S_in == S
    BS = B * S

    kernel = make_stacked_transformer_kernel(B, S, E, V, nhead, L)

    inputs = (
        ids.reshape(BS, 1).astype(jnp.int32),
        prepped["emb"], prepped["pe"], prepped["head_mask"],
        prepped["wq"], prepped["bq"], prepped["wk"], prepped["bk"],
        prepped["wv"], prepped["bv"], prepped["wo"], prepped["bo"],
        prepped["w1"], prepped["b1"], prepped["w2"], prepped["b2"],
        prepped["ln1w"], prepped["ln1b"], prepped["ln2w"], prepped["ln2b"],
        prepped["clsw"], prepped["clsb"],
    )

    # Everything fits comfortably in VMEM at these sizes -> whole-array blocks.
    # TODO(synk): on v7x add a "parallel" grid axis over batch/row tiles so both
    # TensorCores are used; on v5e raise vmem_limit_bytes (16 MiB default scoped
    # limit) or switch to per-layer weight streaming once the stacks grow.
    in_specs = [pl.BlockSpec(memory_space=pltpu.MemorySpace.VMEM) for _ in inputs]
    out = pl.pallas_call(
        kernel,
        out_shape=jax.ShapeDtypeStruct((BS, CP), jnp.float32),
        in_specs=in_specs,
        out_specs=pl.BlockSpec(memory_space=pltpu.MemorySpace.VMEM),
    )(*inputs)

    out = out.reshape(B, S, CP)[:, :, :C]
    if is_seq2seq:
        return out                  # (B, S, num_classes)
    # classifier(x[:, 0, :]) == classifier(x)[:, 0, :]  (classifier is linear)
    return out[:, 0, :]             # (B, num_classes)


# ----------------------------------------------------------------------------
# Deterministic parameter construction (PyTorch weight conventions)
# ----------------------------------------------------------------------------
def make_params(key, *, num_classes, embedding_size, num_embeddings,
                hidden_size, seq_len, num_layers):
    E, V, H1, C, L, S = (embedding_size, num_embeddings, hidden_size,
                         num_classes, num_layers, seq_len)
    ks = jax.random.split(key, 8)

    def w(k, shape, scale=0.02):
        return (scale * jax.random.normal(k, shape)).astype(jnp.float32)

    # sinusoidal positional encoding (standard formulation)
    position = jnp.arange(S, dtype=jnp.float32)[:, None]
    div_term = jnp.exp(jnp.arange(0, E, 2, dtype=jnp.float32)
                       * (-math.log(10000.0) / E))
    pe = jnp.zeros((S, E), jnp.float32)
    pe = pe.at[:, 0::2].set(jnp.sin(position * div_term))
    pe = pe.at[:, 1::2].set(jnp.cos(position * div_term))

    params = dict(
        emb=w(ks[0], (V, E), 1.0),
        pe=pe,
        # per-layer (stacked on leading L axis) TransformerEncoderLayer params
        ipw=w(ks[1], (L, 3 * E, E)),
        ipb=jnp.zeros((L, 3 * E), jnp.float32),
        opw=w(ks[2], (L, E, E)),
        opb=jnp.zeros((L, E), jnp.float32),
        l1w=w(ks[3], (L, H1, E)),
        l1b=jnp.zeros((L, H1), jnp.float32),
        l2w=w(ks[4], (L, E, H1)),
        l2b=jnp.zeros((L, E), jnp.float32),
        ln1w=jnp.ones((L, E), jnp.float32),
        ln1b=jnp.zeros((L, E), jnp.float32),
        ln2w=jnp.ones((L, E), jnp.float32),
        ln2b=jnp.zeros((L, E), jnp.float32),
        # classifier
        clsw=w(ks[5], (C, E)),
        clsb=jnp.zeros((1, C), jnp.float32),
    )
    return params


# ----------------------------------------------------------------------------
if __name__ == "__main__":
    # module config (small): num_classes=10, embedding_size=32, num_embeddings=50,
    # hidden_size=64 (FFN), seq_len=8, dropout=0.0, num_layers=2, is_seq2seq=False
    B, S, E, V, H1, C, L = 2, 8, 32, 50, 64, 10, 2
    key = jax.random.PRNGKey(0)
    k_ids, k_par = jax.random.split(key)

    ids = jax.random.randint(k_ids, (B, S), 0, V, dtype=jnp.int32)
    params = make_params(k_par, num_classes=C, embedding_size=E,
                         num_embeddings=V, hidden_size=H1,
                         seq_len=S, num_layers=L)
    prepped = prepare_params(params, nhead=16)   # one-time weight prep (cached)

    out = stacked_transformer_forward(ids, prepped, is_seq2seq=False)
    out = jax.block_until_ready(out)
    assert out.shape == (B, C) and out.dtype == jnp.float32
    assert bool(jnp.all(jnp.isfinite(out)))
    print("KERNEL_OK")
</pallas_src>

<mosaic_0001>
module attributes {stable_mosaic.version = 11 : i64} {
  func.func @kernel(%arg0: memref<16x1xi32, #tpu.memory_space<vmem>>, %arg1: memref<50x32xf32, #tpu.memory_space<vmem>>, %arg2: memref<8x32xf32, #tpu.memory_space<vmem>>, %arg3: memref<16x1x32xf32, #tpu.memory_space<vmem>>, %arg4: memref<2x32x32xbf16, #tpu.memory_space<vmem>>, %arg5: memref<2x1x32xf32, #tpu.memory_space<vmem>>, %arg6: memref<2x32x32xbf16, #tpu.memory_space<vmem>>, %arg7: memref<2x1x32xf32, #tpu.memory_space<vmem>>, %arg8: memref<2x32x32xbf16, #tpu.memory_space<vmem>>, %arg9: memref<2x1x32xf32, #tpu.memory_space<vmem>>, %arg10: memref<2x32x32xbf16, #tpu.memory_space<vmem>>, %arg11: memref<2x1x32xf32, #tpu.memory_space<vmem>>, %arg12: memref<2x32x64xbf16, #tpu.memory_space<vmem>>, %arg13: memref<2x1x64xf32, #tpu.memory_space<vmem>>, %arg14: memref<2x64x32xbf16, #tpu.memory_space<vmem>>, %arg15: memref<2x1x32xf32, #tpu.memory_space<vmem>>, %arg16: memref<2x1x32xf32, #tpu.memory_space<vmem>>, %arg17: memref<2x1x32xf32, #tpu.memory_space<vmem>>, %arg18: memref<2x1x32xf32, #tpu.memory_space<vmem>>, %arg19: memref<2x1x32xf32, #tpu.memory_space<vmem>>, %arg20: memref<32x128xbf16, #tpu.memory_space<vmem>>, %arg21: memref<1x128xf32, #tpu.memory_space<vmem>>, %arg22: memref<16x128xf32, #tpu.memory_space<vmem>>) attributes {dimension_semantics = [], scalar_prefetch = 0 : i64, scratch_operands = 0 : i64, tpu.core_type = #tpu.core_type<tc>} {
    %c0 = arith.constant 0 : index
    %c0_0 = arith.constant 0 : index
    %0 = vector.load %arg0[%c0, %c0_0] : memref<16x1xi32, #tpu.memory_space<vmem>>, vector<16x1xi32>
    %1 = tpu.iota {dimensions = array<i32: 1>} : vector<16x50xi32>
    %2 = vector.broadcast %0 : vector<16x1xi32> to vector<16x50xi32>
    %3 = arith.cmpi eq, %2, %1 : vector<16x50xi32>
    %4 = arith.extui %3 : vector<16x50xi1> to vector<16x50xi32>
    %5 = arith.sitofp %4 : vector<16x50xi32> to vector<16x50xf32>
    %c0_1 = arith.constant 0 : index
    %c0_2 = arith.constant 0 : index
    %6 = vector.load %arg1[%c0_1, %c0_2] : memref<50x32xf32, #tpu.memory_space<vmem>>, vector<50x32xf32>
    %cst = arith.constant dense<0.000000e+00> : vector<16x32xf32>
    %7 = tpu.matmul %5, %6, %cst {dimension_numbers = #tpu.dot_dimension_numbers<[1], [0], [0], [1], [0, 0, 1, 1], [], []>} : vector<16x50xf32>, vector<50x32xf32>, vector<16x32xf32> -> vector<16x32xf32>
    %8 = vector.shape_cast %7 : vector<16x32xf32> to vector<2x8x32xf32>
    %c0_3 = arith.constant 0 : index
    %c0_4 = arith.constant 0 : index
    %9 = vector.load %arg2[%c0_3, %c0_4] : memref<8x32xf32, #tpu.memory_space<vmem>>, vector<8x32xf32>
    %10 = vector.shape_cast %9 : vector<8x32xf32> to vector<1x8x32xf32>
    %11 = vector.broadcast %10 : vector<1x8x32xf32> to vector<2x8x32xf32>
    %12 = arith.addf %8, %11 : vector<2x8x32xf32>
    %13 = vector.shape_cast %12 : vector<2x8x32xf32> to vector<16x32xf32>
    %c0_5 = arith.constant 0 : index
    %c0_6 = arith.constant 0 : index
    %c0_7 = arith.constant 0 : index
    %14 = vector.load %arg3[%c0_5, %c0_6, %c0_7] : memref<16x1x32xf32, #tpu.memory_space<vmem>>, vector<16x1x32xf32>
    %15 = vector.shape_cast %14 : vector<16x1x32xf32> to vector<1x16x1x32xf32>
    %16 = arith.truncf %13 : vector<16x32xf32> to vector<16x32xbf16>
    %c0_8 = arith.constant 0 : index
    %c0_9 = arith.constant 0 : index
    %c0_10 = arith.constant 0 : index
    %17 = vector.load %arg4[%c0_8, %c0_9, %c0_10] : memref<2x32x32xbf16, #tpu.memory_space<vmem>>, vector<1x32x32xbf16>
    %18 = vector.shape_cast %17 : vector<1x32x32xbf16> to vector<32x32xbf16>
    %cst_11 = arith.constant dense<0.000000e+00> : vector<16x32xf32>
    %19 = tpu.matmul %16, %18, %cst_11 {dimension_numbers = #tpu.dot_dimension_numbers<[1], [0], [0], [1], [0, 0, 1, 1], [], []>} : vector<16x32xbf16>, vector<32x32xbf16>, vector<16x32xf32> -> vector<16x32xf32>
    %c0_12 = arith.constant 0 : index
    %c0_13 = arith.constant 0 : index
    %c0_14 = arith.constant 0 : index
    %20 = vector.load %arg5[%c0_12, %c0_13, %c0_14] : memref<2x1x32xf32, #tpu.memory_space<vmem>>, vector<1x1x32xf32>
    %21 = vector.shape_cast %20 : vector<1x1x32xf32> to vector<1x32xf32>
    %22 = vector.broadcast %21 : vector<1x32xf32> to vector<16x32xf32>
    %23 = arith.addf %19, %22 : vector<16x32xf32>
    %c0_15 = arith.constant 0 : index
    %c0_16 = arith.constant 0 : index
    %c0_17 = arith.constant 0 : index
    %24 = vector.load %arg6[%c0_15, %c0_16, %c0_17] : memref<2x32x32xbf16, #tpu.memory_space<vmem>>, vector<1x32x32xbf16>
    %25 = vector.shape_cast %24 : vector<1x32x32xbf16> to vector<32x32xbf16>
    %cst_18 = arith.constant dense<0.000000e+00> : vector<16x32xf32>
    %26 = tpu.matmul %16, %25, %cst_18 {dimension_numbers = #tpu.dot_dimension_numbers<[1], [0], [0], [1], [0, 0, 1, 1], [], []>} : vector<16x32xbf16>, vector<32x32xbf16>, vector<16x32xf32> -> vector<16x32xf32>
    %c0_19 = arith.constant 0 : index
    %c0_20 = arith.constant 0 : index
    %c0_21 = arith.constant 0 : index
    %27 = vector.load %arg7[%c0_19, %c0_20, %c0_21] : memref<2x1x32xf32, #tpu.memory_space<vmem>>, vector<1x1x32xf32>
    %28 = vector.shape_cast %27 : vector<1x1x32xf32> to vector<1x32xf32>
    %29 = vector.broadcast %28 : vector<1x32xf32> to vector<16x32xf32>
    %30 = arith.addf %26, %29 : vector<16x32xf32>
    %c0_22 = arith.constant 0 : index
    %c0_23 = arith.constant 0 : index
    %c0_24 = arith.constant 0 : index
    %31 = vector.load %arg8[%c0_22, %c0_23, %c0_24] : memref<2x32x32xbf16, #tpu.memory_space<vmem>>, vector<1x32x32xbf16>
    %32 = vector.shape_cast %31 : vector<1x32x32xbf16> to vector<32x32xbf16>
    %cst_25 = arith.constant dense<0.000000e+00> : vector<16x32xf32>
    %33 = tpu.matmul %16, %32, %cst_25 {dimension_numbers = #tpu.dot_dimension_numbers<[1], [0], [0], [1], [0, 0, 1, 1], [], []>} : vector<16x32xbf16>, vector<32x32xbf16>, vector<16x32xf32> -> vector<16x32xf32>
    %c0_26 = arith.constant 0 : index
    %c0_27 = arith.constant 0 : index
    %c0_28 = arith.constant 0 : index
    %34 = vector.load %arg9[%c0_26, %c0_27, %c0_28] : memref<2x1x32xf32, #tpu.memory_space<vmem>>, vector<1x1x32xf32>
    %35 = vector.shape_cast %34 : vector<1x1x32xf32> to vector<1x32xf32>
    %36 = vector.broadcast %35 : vector<1x32xf32> to vector<16x32xf32>
    %37 = arith.addf %33, %36 : vector<16x32xf32>
    %38 = vector.shape_cast %23 : vector<16x32xf32> to vector<2x1x8x32xf32>
    %39 = vector.broadcast %38 : vector<2x1x8x32xf32> to vector<2x16x8x32xf32>
    %40 = vector.broadcast %15 : vector<1x16x1x32xf32> to vector<2x16x8x32xf32>
    %41 = arith.mulf %39, %40 : vector<2x16x8x32xf32>
    %42 = vector.shape_cast %41 : vector<2x16x8x32xf32> to vector<32x8x32xf32>
    %43 = arith.truncf %42 : vector<32x8x32xf32> to vector<32x8x32xbf16>
    %44 = vector.shape_cast %30 : vector<16x32xf32> to vector<2x1x8x32xf32>
    %45 = vector.broadcast %44 : vector<2x1x8x32xf32> to vector<2x16x8x32xf32>
    %46 = vector.broadcast %15 : vector<1x16x1x32xf32> to vector<2x16x8x32xf32>
    %47 = arith.mulf %45, %46 : vector<2x16x8x32xf32>
    %48 = vector.shape_cast %47 : vector<2x16x8x32xf32> to vector<32x8x32xf32>
    %49 = arith.truncf %48 : vector<32x8x32xf32> to vector<32x8x32xbf16>
    %50 = vector.shape_cast %37 : vector<16x32xf32> to vector<2x1x8x32xf32>
    %51 = vector.broadcast %50 : vector<2x1x8x32xf32> to vector<2x16x8x32xf32>
    %52 = vector.broadcast %15 : vector<1x16x1x32xf32> to vector<2x16x8x32xf32>
    %53 = arith.mulf %51, %52 : vector<2x16x8x32xf32>
    %54 = vector.shape_cast %53 : vector<2x16x8x32xf32> to vector<32x8x32xf32>
    %55 = arith.truncf %54 : vector<32x8x32xf32> to vector<32x8x32xbf16>
    "tpu.trace_start"() <{level = 10 : i32, message = "bqe,bke->bqk"}> : () -> ()
    %cst_29 = arith.constant dense<0.000000e+00> : vector<32x8x8xf32>
    %56 = tpu.matmul %43, %49, %cst_29 {dimension_numbers = #tpu.dot_dimension_numbers<[2], [2], [1], [1], [0, 0, 0, 1, 1, 1], [0], [0]>} : vector<32x8x32xbf16>, vector<32x8x32xbf16>, vector<32x8x8xf32> -> vector<32x8x8xf32>
    "tpu.trace_stop"() : () -> ()
    %cst_30 = arith.constant dense<0xFF800000> : vector<32x8xf32>
    %57 = vector.multi_reduction <maximumf>, %56, %cst_30 [2] : vector<32x8x8xf32> to vector<32x8xf32>
    %58 = vector.shape_cast %57 : vector<32x8xf32> to vector<32x8x1xf32>
    %59 = vector.broadcast %58 : vector<32x8x1xf32> to vector<32x8x8xf32>
    %60 = arith.subf %56, %59 : vector<32x8x8xf32>
    %61 = math.exp %60 : vector<32x8x8xf32>
    %cst_31 = arith.constant dense<0.000000e+00> : vector<32x8xf32>
    %62 = vector.multi_reduction <add>, %61, %cst_31 [2] : vector<32x8x8xf32> to vector<32x8xf32>
    %63 = vector.shape_cast %62 : vector<32x8xf32> to vector<32x8x1xf32>
    %64 = tpu.reciprocal %63 {approx = true} : vector<32x8x1xf32> -> vector<32x8x1xf32>
    %65 = vector.broadcast %64 : vector<32x8x1xf32> to vector<32x8x8xf32>
    %66 = arith.mulf %61, %65 : vector<32x8x8xf32>
    %67 = arith.truncf %66 : vector<32x8x8xf32> to vector<32x8x8xbf16>
    "tpu.trace_start"() <{level = 10 : i32, message = "bqk,bke->bqe"}> : () -> ()
    %cst_32 = arith.constant dense<0.000000e+00> : vector<32x8x32xf32>
    %68 = tpu.matmul %67, %55, %cst_32 {dimension_numbers = #tpu.dot_dimension_numbers<[2], [1], [1], [2], [0, 0, 0, 1, 1, 2], [0], [0]>} : vector<32x8x8xbf16>, vector<32x8x32xbf16>, vector<32x8x32xf32> -> vector<32x8x32xf32>
    "tpu.trace_stop"() : () -> ()
    %69 = vector.shape_cast %68 : vector<32x8x32xf32> to vector<2x16x8x32xf32>
    %cst_33 = arith.constant dense<0.000000e+00> : vector<2x8x32xf32>
    %70 = vector.multi_reduction <add>, %69, %cst_33 [1] : vector<2x16x8x32xf32> to vector<2x8x32xf32>
    %71 = vector.shape_cast %70 : vector<2x8x32xf32> to vector<16x32xf32>
    %72 = arith.truncf %71 : vector<16x32xf32> to vector<16x32xbf16>
    %c0_34 = arith.constant 0 : index
    %c0_35 = arith.constant 0 : index
    %c0_36 = arith.constant 0 : index
    %73 = vector.load %arg10[%c0_34, %c0_35, %c0_36] : memref<2x32x32xbf16, #tpu.memory_space<vmem>>, vector<1x32x32xbf16>
    %74 = vector.shape_cast %73 : vector<1x32x32xbf16> to vector<32x32xbf16>
    %cst_37 = arith.constant dense<0.000000e+00> : vector<16x32xf32>
    %75 = tpu.matmul %72, %74, %cst_37 {dimension_numbers = #tpu.dot_dimension_numbers<[1], [0], [0], [1], [0, 0, 1, 1], [], []>} : vector<16x32xbf16>, vector<32x32xbf16>, vector<16x32xf32> -> vector<16x32xf32>
    %c0_38 = arith.constant 0 : index
    %c0_39 = arith.constant 0 : index
    %c0_40 = arith.constant 0 : index
    %76 = vector.load %arg11[%c0_38, %c0_39, %c0_40] : memref<2x1x32xf32, #tpu.memory_space<vmem>>, vector<1x1x32xf32>
    %77 = vector.shape_cast %76 : vector<1x1x32xf32> to vector<1x32xf32>
    %78 = vector.broadcast %77 : vector<1x32xf32> to vector<16x32xf32>
    %79 = arith.addf %75, %78 : vector<16x32xf32>
    %80 = arith.addf %13, %79 : vector<16x32xf32>
    %c0_41 = arith.constant 0 : index
    %c0_42 = arith.constant 0 : index
    %c0_43 = arith.constant 0 : index
    %81 = vector.load %arg16[%c0_41, %c0_42, %c0_43] : memref<2x1x32xf32, #tpu.memory_space<vmem>>, vector<1x1x32xf32>
    %82 = vector.shape_cast %81 : vector<1x1x32xf32> to vector<1x32xf32>
    %c0_44 = arith.constant 0 : index
    %c0_45 = arith.constant 0 : index
    %c0_46 = arith.constant 0 : index
    %83 = vector.load %arg17[%c0_44, %c0_45, %c0_46] : memref<2x1x32xf32, #tpu.memory_space<vmem>>, vector<1x1x32xf32>
    %84 = vector.shape_cast %83 : vector<1x1x32xf32> to vector<1x32xf32>
    %cst_47 = arith.constant dense<0.000000e+00> : vector<16xf32>
    %85 = vector.multi_reduction <add>, %80, %cst_47 [1] : vector<16x32xf32> to vector<16xf32>
    %86 = vector.shape_cast %85 : vector<16xf32> to vector<16x1xf32>
    %cst_48 = arith.constant 3.200000e+01 : f32
    %87 = vector.broadcast %cst_48 : f32 to vector<16x1xf32>
    %88 = arith.divf %86, %87 : vector<16x1xf32>
    %89 = vector.broadcast %88 : vector<16x1xf32> to vector<16x32xf32>
    %90 = arith.subf %80, %89 : vector<16x32xf32>
    %91 = arith.mulf %90, %90 : vector<16x32xf32>
    %cst_49 = arith.constant dense<0.000000e+00> : vector<16xf32>
    %92 = vector.multi_reduction <add>, %91, %cst_49 [1] : vector<16x32xf32> to vector<16xf32>
    %93 = vector.shape_cast %92 : vector<16xf32> to vector<16x1xf32>
    %cst_50 = arith.constant 3.200000e+01 : f32
    %94 = vector.broadcast %cst_50 : f32 to vector<16x1xf32>
    %95 = arith.divf %93, %94 : vector<16x1xf32>
    %96 = vector.broadcast %88 : vector<16x1xf32> to vector<16x32xf32>
    %97 = arith.subf %80, %96 : vector<16x32xf32>
    %cst_51 = arith.constant 9.99999974E-6 : f32
    %98 = vector.broadcast %cst_51 : f32 to vector<16x1xf32>
    %99 = arith.addf %95, %98 : vector<16x1xf32>
    %100 = math.rsqrt %99 : vector<16x1xf32>
    %101 = vector.broadcast %100 : vector<16x1xf32> to vector<16x32xf32>
    %102 = arith.mulf %97, %101 : vector<16x32xf32>
    %103 = vector.broadcast %82 : vector<1x32xf32> to vector<16x32xf32>
    %104 = arith.mulf %102, %103 : vector<16x32xf32>
    %105 = vector.broadcast %84 : vector<1x32xf32> to vector<16x32xf32>
    %106 = arith.addf %104, %105 : vector<16x32xf32>
    %107 = arith.truncf %106 : vector<16x32xf32> to vector<16x32xbf16>
    %c0_52 = arith.constant 0 : index
    %c0_53 = arith.constant 0 : index
    %c0_54 = arith.constant 0 : index
    %108 = vector.load %arg12[%c0_52, %c0_53, %c0_54] : memref<2x32x64xbf16, #tpu.memory_space<vmem>>, vector<1x32x64xbf16>
    %109 = vector.shape_cast %108 : vector<1x32x64xbf16> to vector<32x64xbf16>
    %cst_55 = arith.constant dense<0.000000e+00> : vector<16x64xf32>
    %110 = tpu.matmul %107, %109, %cst_55 {dimension_numbers = #tpu.dot_dimension_numbers<[1], [0], [0], [1], [0, 0, 1, 1], [], []>} : vector<16x32xbf16>, vector<32x64xbf16>, vector<16x64xf32> -> vector<16x64xf32>
    %c0_56 = arith.constant 0 : index
    %c0_57 = arith.constant 0 : index
    %c0_58 = arith.constant 0 : index
    %111 = vector.load %arg13[%c0_56, %c0_57, %c0_58] : memref<2x1x64xf32, #tpu.memory_space<vmem>>, vector<1x1x64xf32>
    %112 = vector.shape_cast %111 : vector<1x1x64xf32> to vector<1x64xf32>
    %113 = vector.broadcast %112 : vector<1x64xf32> to vector<16x64xf32>
    %114 = arith.addf %110, %113 : vector<16x64xf32>
    %cst_59 = arith.constant 0.000000e+00 : f32
    %115 = vector.broadcast %cst_59 : f32 to vector<16x64xf32>
    %116 = arith.maximumf %114, %115 : vector<16x64xf32>
    %117 = arith.truncf %116 : vector<16x64xf32> to vector<16x64xbf16>
    %c0_60 = arith.constant 0 : index
    %c0_61 = arith.constant 0 : index
    %c0_62 = arith.constant 0 : index
    %118 = vector.load %arg14[%c0_60, %c0_61, %c0_62] : memref<2x64x32xbf16, #tpu.memory_space<vmem>>, vector<1x64x32xbf16>
    %119 = vector.shape_cast %118 : vector<1x64x32xbf16> to vector<64x32xbf16>
    %cst_63 = arith.constant dense<0.000000e+00> : vector<16x32xf32>
    %120 = tpu.matmul %117, %119, %cst_63 {dimension_numbers = #tpu.dot_dimension_numbers<[1], [0], [0], [1], [0, 0, 1, 1], [], []>} : vector<16x64xbf16>, vector<64x32xbf16>, vector<16x32xf32> -> vector<16x32xf32>
    %c0_64 = arith.constant 0 : index
    %c0_65 = arith.constant 0 : index
    %c0_66 = arith.constant 0 : index
    %121 = vector.load %arg15[%c0_64, %c0_65, %c0_66] : memref<2x1x32xf32, #tpu.memory_space<vmem>>, vector<1x1x32xf32>
    %122 = vector.shape_cast %121 : vector<1x1x32xf32> to vector<1x32xf32>
    %123 = vector.broadcast %122 : vector<1x32xf32> to vector<16x32xf32>
    %124 = arith.addf %120, %123 : vector<16x32xf32>
    %125 = arith.addf %106, %124 : vector<16x32xf32>
    %c0_67 = arith.constant 0 : index
    %c0_68 = arith.constant 0 : index
    %c0_69 = arith.constant 0 : index
    %126 = vector.load %arg18[%c0_67, %c0_68, %c0_69] : memref<2x1x32xf32, #tpu.memory_space<vmem>>, vector<1x1x32xf32>
    %127 = vector.shape_cast %126 : vector<1x1x32xf32> to vector<1x32xf32>
    %c0_70 = arith.constant 0 : index
    %c0_71 = arith.constant 0 : index
    %c0_72 = arith.constant 0 : index
    %128 = vector.load %arg19[%c0_70, %c0_71, %c0_72] : memref<2x1x32xf32, #tpu.memory_space<vmem>>, vector<1x1x32xf32>
    %129 = vector.shape_cast %128 : vector<1x1x32xf32> to vector<1x32xf32>
    %cst_73 = arith.constant dense<0.000000e+00> : vector<16xf32>
    %130 = vector.multi_reduction <add>, %125, %cst_73 [1] : vector<16x32xf32> to vector<16xf32>
    %131 = vector.shape_cast %130 : vector<16xf32> to vector<16x1xf32>
    %cst_74 = arith.constant 3.200000e+01 : f32
    %132 = vector.broadcast %cst_74 : f32 to vector<16x1xf32>
    %133 = arith.divf %131, %132 : vector<16x1xf32>
    %134 = vector.broadcast %133 : vector<16x1xf32> to vector<16x32xf32>
    %135 = arith.subf %125, %134 : vector<16x32xf32>
    %136 = arith.mulf %135, %135 : vector<16x32xf32>
    %cst_75 = arith.constant dense<0.000000e+00> : vector<16xf32>
    %137 = vector.multi_reduction <add>, %136, %cst_75 [1] : vector<16x32xf32> to vector<16xf32>
    %138 = vector.shape_cast %137 : vector<16xf32> to vector<16x1xf32>
    %cst_76 = arith.constant 3.200000e+01 : f32
    %139 = vector.broadcast %cst_76 : f32 to vector<16x1xf32>
    %140 = arith.divf %138, %139 : vector<16x1xf32>
    %141 = vector.broadcast %133 : vector<16x1xf32> to vector<16x32xf32>
    %142 = arith.subf %125, %141 : vector<16x32xf32>
    %cst_77 = arith.constant 9.99999974E-6 : f32
    %143 = vector.broadcast %cst_77 : f32 to vector<16x1xf32>
    %144 = arith.addf %140, %143 : vector<16x1xf32>
    %145 = math.rsqrt %144 : vector<16x1xf32>
    %146 = vector.broadcast %145 : vector<16x1xf32> to vector<16x32xf32>
    %147 = arith.mulf %142, %146 : vector<16x32xf32>
    %148 = vector.broadcast %127 : vector<1x32xf32> to vector<16x32xf32>
    %149 = arith.mulf %147, %148 : vector<16x32xf32>
    %150 = vector.broadcast %129 : vector<1x32xf32> to vector<16x32xf32>
    %151 = arith.addf %149, %150 : vector<16x32xf32>
    %152 = arith.truncf %151 : vector<16x32xf32> to vector<16x32xbf16>
    %c1 = arith.constant 1 : index
    %c0_78 = arith.constant 0 : index
    %c0_79 = arith.constant 0 : index
    %153 = vector.load %arg4[%c1, %c0_78, %c0_79] : memref<2x32x32xbf16, #tpu.memory_space<vmem>>, vector<1x32x32xbf16>
    %154 = vector.shape_cast %153 : vector<1x32x32xbf16> to vector<32x32xbf16>
    %cst_80 = arith.constant dense<0.000000e+00> : vector<16x32xf32>
    %155 = tpu.matmul %152, %154, %cst_80 {dimension_numbers = #tpu.dot_dimension_numbers<[1], [0], [0], [1], [0, 0, 1, 1], [], []>} : vector<16x32xbf16>, vector<32x32xbf16>, vector<16x32xf32> -> vector<16x32xf32>
    %c1_81 = arith.constant 1 : index
    %c0_82 = arith.constant 0 : index
    %c0_83 = arith.constant 0 : index
    %156 = vector.load %arg5[%c1_81, %c0_82, %c0_83] : memref<2x1x32xf32, #tpu.memory_space<vmem>>, vector<1x1x32xf32>
    %157 = vector.shape_cast %156 : vector<1x1x32xf32> to vector<1x32xf32>
    %158 = vector.broadcast %157 : vector<1x32xf32> to vector<16x32xf32>
    %159 = arith.addf %155, %158 : vector<16x32xf32>
    %c1_84 = arith.constant 1 : index
    %c0_85 = arith.constant 0 : index
    %c0_86 = arith.constant 0 : index
    %160 = vector.load %arg6[%c1_84, %c0_85, %c0_86] : memref<2x32x32xbf16, #tpu.memory_space<vmem>>, vector<1x32x32xbf16>
    %161 = vector.shape_cast %160 : vector<1x32x32xbf16> to vector<32x32xbf16>
    %cst_87 = arith.constant dense<0.000000e+00> : vector<16x32xf32>
    %162 = tpu.matmul %152, %161, %cst_87 {dimension_numbers = #tpu.dot_dimension_numbers<[1], [0], [0], [1], [0, 0, 1, 1], [], []>} : vector<16x32xbf16>, vector<32x32xbf16>, vector<16x32xf32> -> vector<16x32xf32>
    %c1_88 = arith.constant 1 : index
    %c0_89 = arith.constant 0 : index
    %c0_90 = arith.constant 0 : index
    %163 = vector.load %arg7[%c1_88, %c0_89, %c0_90] : memref<2x1x32xf32, #tpu.memory_space<vmem>>, vector<1x1x32xf32>
    %164 = vector.shape_cast %163 : vector<1x1x32xf32> to vector<1x32xf32>
    %165 = vector.broadcast %164 : vector<1x32xf32> to vector<16x32xf32>
    %166 = arith.addf %162, %165 : vector<16x32xf32>
    %c1_91 = arith.constant 1 : index
    %c0_92 = arith.constant 0 : index
    %c0_93 = arith.constant 0 : index
    %167 = vector.load %arg8[%c1_91, %c0_92, %c0_93] : memref<2x32x32xbf16, #tpu.memory_space<vmem>>, vector<1x32x32xbf16>
    %168 = vector.shape_cast %167 : vector<1x32x32xbf16> to vector<32x32xbf16>
    %cst_94 = arith.constant dense<0.000000e+00> : vector<16x32xf32>
    %169 = tpu.matmul %152, %168, %cst_94 {dimension_numbers = #tpu.dot_dimension_numbers<[1], [0], [0], [1], [0, 0, 1, 1], [], []>} : vector<16x32xbf16>, vector<32x32xbf16>, vector<16x32xf32> -> vector<16x32xf32>
    %c1_95 = arith.constant 1 : index
    %c0_96 = arith.constant 0 : index
    %c0_97 = arith.constant 0 : index
    %170 = vector.load %arg9[%c1_95, %c0_96, %c0_97] : memref<2x1x32xf32, #tpu.memory_space<vmem>>, vector<1x1x32xf32>
    %171 = vector.shape_cast %170 : vector<1x1x32xf32> to vector<1x32xf32>
    %172 = vector.broadcast %171 : vector<1x32xf32> to vector<16x32xf32>
    %173 = arith.addf %169, %172 : vector<16x32xf32>
    %174 = vector.shape_cast %159 : vector<16x32xf32> to vector<2x1x8x32xf32>
    %175 = vector.broadcast %174 : vector<2x1x8x32xf32> to vector<2x16x8x32xf32>
    %176 = vector.broadcast %15 : vector<1x16x1x32xf32> to vector<2x16x8x32xf32>
    %177 = arith.mulf %175, %176 : vector<2x16x8x32xf32>
    %178 = vector.shape_cast %177 : vector<2x16x8x32xf32> to vector<32x8x32xf32>
    %179 = arith.truncf %178 : vector<32x8x32xf32> to vector<32x8x32xbf16>
    %180 = vector.shape_cast %166 : vector<16x32xf32> to vector<2x1x8x32xf32>
    %181 = vector.broadcast %180 : vector<2x1x8x32xf32> to vector<2x16x8x32xf32>
    %182 = vector.broadcast %15 : vector<1x16x1x32xf32> to vector<2x16x8x32xf32>
    %183 = arith.mulf %181, %182 : vector<2x16x8x32xf32>
    %184 = vector.shape_cast %183 : vector<2x16x8x32xf32> to vector<32x8x32xf32>
    %185 = arith.truncf %184 : vector<32x8x32xf32> to vector<32x8x32xbf16>
    %186 = vector.shape_cast %173 : vector<16x32xf32> to vector<2x1x8x32xf32>
    %187 = vector.broadcast %186 : vector<2x1x8x32xf32> to vector<2x16x8x32xf32>
    %188 = vector.broadcast %15 : vector<1x16x1x32xf32> to vector<2x16x8x32xf32>
    %189 = arith.mulf %187, %188 : vector<2x16x8x32xf32>
    %190 = vector.shape_cast %189 : vector<2x16x8x32xf32> to vector<32x8x32xf32>
    %191 = arith.truncf %190 : vector<32x8x32xf32> to vector<32x8x32xbf16>
    "tpu.trace_start"() <{level = 10 : i32, message = "bqe,bke->bqk"}> : () -> ()
    %cst_98 = arith.constant dense<0.000000e+00> : vector<32x8x8xf32>
    %192 = tpu.matmul %179, %185, %cst_98 {dimension_numbers = #tpu.dot_dimension_numbers<[2], [2], [1], [1], [0, 0, 0, 1, 1, 1], [0], [0]>} : vector<32x8x32xbf16>, vector<32x8x32xbf16>, vector<32x8x8xf32> -> vector<32x8x8xf32>
    "tpu.trace_stop"() : () -> ()
    %cst_99 = arith.constant dense<0xFF800000> : vector<32x8xf32>
    %193 = vector.multi_reduction <maximumf>, %192, %cst_99 [2] : vector<32x8x8xf32> to vector<32x8xf32>
    %194 = vector.shape_cast %193 : vector<32x8xf32> to vector<32x8x1xf32>
    %195 = vector.broadcast %194 : vector<32x8x1xf32> to vector<32x8x8xf32>
    %196 = arith.subf %192, %195 : vector<32x8x8xf32>
    %197 = math.exp %196 : vector<32x8x8xf32>
    %cst_100 = arith.constant dense<0.000000e+00> : vector<32x8xf32>
    %198 = vector.multi_reduction <add>, %197, %cst_100 [2] : vector<32x8x8xf32> to vector<32x8xf32>
    %199 = vector.shape_cast %198 : vector<32x8xf32> to vector<32x8x1xf32>
    %200 = tpu.reciprocal %199 {approx = true} : vector<32x8x1xf32> -> vector<32x8x1xf32>
    %201 = vector.broadcast %200 : vector<32x8x1xf32> to vector<32x8x8xf32>
    %202 = arith.mulf %197, %201 : vector<32x8x8xf32>
    %203 = arith.truncf %202 : vector<32x8x8xf32> to vector<32x8x8xbf16>
    "tpu.trace_start"() <{level = 10 : i32, message = "bqk,bke->bqe"}> : () -> ()
    %cst_101 = arith.constant dense<0.000000e+00> : vector<32x8x32xf32>
    %204 = tpu.matmul %203, %191, %cst_101 {dimension_numbers = #tpu.dot_dimension_numbers<[2], [1], [1], [2], [0, 0, 0, 1, 1, 2], [0], [0]>} : vector<32x8x8xbf16>, vector<32x8x32xbf16>, vector<32x8x32xf32> -> vector<32x8x32xf32>
    "tpu.trace_stop"() : () -> ()
    %205 = vector.shape_cast %204 : vector<32x8x32xf32> to vector<2x16x8x32xf32>
    %cst_102 = arith.constant dense<0.000000e+00> : vector<2x8x32xf32>
    %206 = vector.multi_reduction <add>, %205, %cst_102 [1] : vector<2x16x8x32xf32> to vector<2x8x32xf32>
    %207 = vector.shape_cast %206 : vector<2x8x32xf32> to vector<16x32xf32>
    %208 = arith.truncf %207 : vector<16x32xf32> to vector<16x32xbf16>
    %c1_103 = arith.constant 1 : index
    %c0_104 = arith.constant 0 : index
    %c0_105 = arith.constant 0 : index
    %209 = vector.load %arg10[%c1_103, %c0_104, %c0_105] : memref<2x32x32xbf16, #tpu.memory_space<vmem>>, vector<1x32x32xbf16>
    %210 = vector.shape_cast %209 : vector<1x32x32xbf16> to vector<32x32xbf16>
    %cst_106 = arith.constant dense<0.000000e+00> : vector<16x32xf32>
    %211 = tpu.matmul %208, %210, %cst_106 {dimension_numbers = #tpu.dot_dimension_numbers<[1], [0], [0], [1], [0, 0, 1, 1], [], []>} : vector<16x32xbf16>, vector<32x32xbf16>, vector<16x32xf32> -> vector<16x32xf32>
    %c1_107 = arith.constant 1 : index
    %c0_108 = arith.constant 0 : index
    %c0_109 = arith.constant 0 : index
    %212 = vector.load %arg11[%c1_107, %c0_108, %c0_109] : memref<2x1x32xf32, #tpu.memory_space<vmem>>, vector<1x1x32xf32>
    %213 = vector.shape_cast %212 : vector<1x1x32xf32> to vector<1x32xf32>
    %214 = vector.broadcast %213 : vector<1x32xf32> to vector<16x32xf32>
    %215 = arith.addf %211, %214 : vector<16x32xf32>
    %216 = arith.addf %151, %215 : vector<16x32xf32>
    %c1_110 = arith.constant 1 : index
    %c0_111 = arith.constant 0 : index
    %c0_112 = arith.constant 0 : index
    %217 = vector.load %arg16[%c1_110, %c0_111, %c0_112] : memref<2x1x32xf32, #tpu.memory_space<vmem>>, vector<1x1x32xf32>
    %218 = vector.shape_cast %217 : vector<1x1x32xf32> to vector<1x32xf32>
    %c1_113 = arith.constant 1 : index
    %c0_114 = arith.constant 0 : index
    %c0_115 = arith.constant 0 : index
    %219 = vector.load %arg17[%c1_113, %c0_114, %c0_115] : memref<2x1x32xf32, #tpu.memory_space<vmem>>, vector<1x1x32xf32>
    %220 = vector.shape_cast %219 : vector<1x1x32xf32> to vector<1x32xf32>
    %cst_116 = arith.constant dense<0.000000e+00> : vector<16xf32>
    %221 = vector.multi_reduction <add>, %216, %cst_116 [1] : vector<16x32xf32> to vector<16xf32>
    %222 = vector.shape_cast %221 : vector<16xf32> to vector<16x1xf32>
    %cst_117 = arith.constant 3.200000e+01 : f32
    %223 = vector.broadcast %cst_117 : f32 to vector<16x1xf32>
    %224 = arith.divf %222, %223 : vector<16x1xf32>
    %225 = vector.broadcast %224 : vector<16x1xf32> to vector<16x32xf32>
    %226 = arith.subf %216, %225 : vector<16x32xf32>
    %227 = arith.mulf %226, %226 : vector<16x32xf32>
    %cst_118 = arith.constant dense<0.000000e+00> : vector<16xf32>
    %228 = vector.multi_reduction <add>, %227, %cst_118 [1] : vector<16x32xf32> to vector<16xf32>
    %229 = vector.shape_cast %228 : vector<16xf32> to vector<16x1xf32>
    %cst_119 = arith.constant 3.200000e+01 : f32
    %230 = vector.broadcast %cst_119 : f32 to vector<16x1xf32>
    %231 = arith.divf %229, %230 : vector<16x1xf32>
    %232 = vector.broadcast %224 : vector<16x1xf32> to vector<16x32xf32>
    %233 = arith.subf %216, %232 : vector<16x32xf32>
    %cst_120 = arith.constant 9.99999974E-6 : f32
    %234 = vector.broadcast %cst_120 : f32 to vector<16x1xf32>
    %235 = arith.addf %231, %234 : vector<16x1xf32>
    %236 = math.rsqrt %235 : vector<16x1xf32>
    %237 = vector.broadcast %236 : vector<16x1xf32> to vector<16x32xf32>
    %238 = arith.mulf %233, %237 : vector<16x32xf32>
    %239 = vector.broadcast %218 : vector<1x32xf32> to vector<16x32xf32>
    %240 = arith.mulf %238, %239 : vector<16x32xf32>
    %241 = vector.broadcast %220 : vector<1x32xf32> to vector<16x32xf32>
    %242 = arith.addf %240, %241 : vector<16x32xf32>
    %243 = arith.truncf %242 : vector<16x32xf32> to vector<16x32xbf16>
    %c1_121 = arith.constant 1 : index
    %c0_122 = arith.constant 0 : index
    %c0_123 = arith.constant 0 : index
    %244 = vector.load %arg12[%c1_121, %c0_122, %c0_123] : memref<2x32x64xbf16, #tpu.memory_space<vmem>>, vector<1x32x64xbf16>
    %245 = vector.shape_cast %244 : vector<1x32x64xbf16> to vector<32x64xbf16>
    %cst_124 = arith.constant dense<0.000000e+00> : vector<16x64xf32>
    %246 = tpu.matmul %243, %245, %cst_124 {dimension_numbers = #tpu.dot_dimension_numbers<[1], [0], [0], [1], [0, 0, 1, 1], [], []>} : vector<16x32xbf16>, vector<32x64xbf16>, vector<16x64xf32> -> vector<16x64xf32>
    %c1_125 = arith.constant 1 : index
    %c0_126 = arith.constant 0 : index
    %c0_127 = arith.constant 0 : index
    %247 = vector.load %arg13[%c1_125, %c0_126, %c0_127] : memref<2x1x64xf32, #tpu.memory_space<vmem>>, vector<1x1x64xf32>
    %248 = vector.shape_cast %247 : vector<1x1x64xf32> to vector<1x64xf32>
    %249 = vector.broadcast %248 : vector<1x64xf32> to vector<16x64xf32>
    %250 = arith.addf %246, %249 : vector<16x64xf32>
    %cst_128 = arith.constant 0.000000e+00 : f32
    %251 = vector.broadcast %cst_128 : f32 to vector<16x64xf32>
    %252 = arith.maximumf %250, %251 : vector<16x64xf32>
    %253 = arith.truncf %252 : vector<16x64xf32> to vector<16x64xbf16>
    %c1_129 = arith.constant 1 : index
    %c0_130 = arith.constant 0 : index
    %c0_131 = arith.constant 0 : index
    %254 = vector.load %arg14[%c1_129, %c0_130, %c0_131] : memref<2x64x32xbf16, #tpu.memory_space<vmem>>, vector<1x64x32xbf16>
    %255 = vector.shape_cast %254 : vector<1x64x32xbf16> to vector<64x32xbf16>
    %cst_132 = arith.constant dense<0.000000e+00> : vector<16x32xf32>
    %256 = tpu.matmul %253, %255, %cst_132 {dimension_numbers = #tpu.dot_dimension_numbers<[1], [0], [0], [1], [0, 0, 1, 1], [], []>} : vector<16x64xbf16>, vector<64x32xbf16>, vector<16x32xf32> -> vector<16x32xf32>
    %c1_133 = arith.constant 1 : index
    %c0_134 = arith.constant 0 : index
    %c0_135 = arith.constant 0 : index
    %257 = vector.load %arg15[%c1_133, %c0_134, %c0_135] : memref<2x1x32xf32, #tpu.memory_space<vmem>>, vector<1x1x32xf32>
    %258 = vector.shape_cast %257 : vector<1x1x32xf32> to vector<1x32xf32>
    %259 = vector.broadcast %258 : vector<1x32xf32> to vector<16x32xf32>
    %260 = arith.addf %256, %259 : vector<16x32xf32>
    %261 = arith.addf %242, %260 : vector<16x32xf32>
    %c1_136 = arith.constant 1 : index
    %c0_137 = arith.constant 0 : index
    %c0_138 = arith.constant 0 : index
    %262 = vector.load %arg18[%c1_136, %c0_137, %c0_138] : memref<2x1x32xf32, #tpu.memory_space<vmem>>, vector<1x1x32xf32>
    %263 = vector.shape_cast %262 : vector<1x1x32xf32> to vector<1x32xf32>
    %c1_139 = arith.constant 1 : index
    %c0_140 = arith.constant 0 : index
    %c0_141 = arith.constant 0 : index
    %264 = vector.load %arg19[%c1_139, %c0_140, %c0_141] : memref<2x1x32xf32, #tpu.memory_space<vmem>>, vector<1x1x32xf32>
    %265 = vector.shape_cast %264 : vector<1x1x32xf32> to vector<1x32xf32>
    %cst_142 = arith.constant dense<0.000000e+00> : vector<16xf32>
    %266 = vector.multi_reduction <add>, %261, %cst_142 [1] : vector<16x32xf32> to vector<16xf32>
    %267 = vector.shape_cast %266 : vector<16xf32> to vector<16x1xf32>
    %cst_143 = arith.constant 3.200000e+01 : f32
    %268 = vector.broadcast %cst_143 : f32 to vector<16x1xf32>
    %269 = arith.divf %267, %268 : vector<16x1xf32>
    %270 = vector.broadcast %269 : vector<16x1xf32> to vector<16x32xf32>
    %271 = arith.subf %261, %270 : vector<16x32xf32>
    %272 = arith.mulf %271, %271 : vector<16x32xf32>
    %cst_144 = arith.constant dense<0.000000e+00> : vector<16xf32>
    %273 = vector.multi_reduction <add>, %272, %cst_144 [1] : vector<16x32xf32> to vector<16xf32>
    %274 = vector.shape_cast %273 : vector<16xf32> to vector<16x1xf32>
    %cst_145 = arith.constant 3.200000e+01 : f32
    %275 = vector.broadcast %cst_145 : f32 to vector<16x1xf32>
    %276 = arith.divf %274, %275 : vector<16x1xf32>
    %277 = vector.broadcast %269 : vector<16x1xf32> to vector<16x32xf32>
    %278 = arith.subf %261, %277 : vector<16x32xf32>
    %cst_146 = arith.constant 9.99999974E-6 : f32
    %279 = vector.broadcast %cst_146 : f32 to vector<16x1xf32>
    %280 = arith.addf %276, %279 : vector<16x1xf32>
    %281 = math.rsqrt %280 : vector<16x1xf32>
    %282 = vector.broadcast %281 : vector<16x1xf32> to vector<16x32xf32>
    %283 = arith.mulf %278, %282 : vector<16x32xf32>
    %284 = vector.broadcast %263 : vector<1x32xf32> to vector<16x32xf32>
    %285 = arith.mulf %283, %284 : vector<16x32xf32>
    %286 = vector.broadcast %265 : vector<1x32xf32> to vector<16x32xf32>
    %287 = arith.addf %285, %286 : vector<16x32xf32>
    %288 = arith.truncf %287 : vector<16x32xf32> to vector<16x32xbf16>
    %c0_147 = arith.constant 0 : index
    %c0_148 = arith.constant 0 : index
    %289 = vector.load %arg20[%c0_147, %c0_148] : memref<32x128xbf16, #tpu.memory_space<vmem>>, vector<32x128xbf16>
    %cst_149 = arith.constant dense<0.000000e+00> : vector<16x128xf32>
    %290 = tpu.matmul %288, %289, %cst_149 {dimension_numbers = #tpu.dot_dimension_numbers<[1], [0], [0], [1], [0, 0, 1, 1], [], []>} : vector<16x32xbf16>, vector<32x128xbf16>, vector<16x128xf32> -> vector<16x128xf32>
    %c0_150 = arith.constant 0 : index
    %c0_151 = arith.constant 0 : index
    %291 = vector.load %arg21[%c0_150, %c0_151] : memref<1x128xf32, #tpu.memory_space<vmem>>, vector<1x128xf32>
    %292 = vector.broadcast %291 : vector<1x128xf32> to vector<16x128xf32>
    %293 = arith.addf %290, %292 : vector<16x128xf32>
    %c0_152 = arith.constant 0 : index
    %c0_153 = arith.constant 0 : index
    %294 = vector.load %arg22[%c0_152, %c0_153] : memref<16x128xf32, #tpu.memory_space<vmem>>, vector<16x128xf32>
    tpu.vector_store %arg22[%c0_152, %c0_153], %293 {strides = array<i32>} : memref<16x128xf32, #tpu.memory_space<vmem>>, vector<16x128xf32>,
    return
  }
}

</mosaic_0001>

<llo_original>
// kernel: tpu_custom_call.1
$region0: #{tpu_custom_call.1}
  #allocation0 [shape = 'u32[]', space=smem, size = 0x4, offset = 0x4, fixed_abs, tag = 'smem constant byte address 0x4 - core index']
  #allocation1 [shape = 'u32[72,128]{1,0:T(1,128)}', space=vmem, size = 0x9000, scoped, tag = 'internal scratch']
  %s0 = inlined_call_operand.vmem [shape: s32[16,1], index: 0, kind: input, shape index: {}]
  %s1 = inlined_call_operand.vmem [shape: f32[50,32], index: 1, kind: input, shape index: {}]
  %s2 = inlined_call_operand.hbm [shape: f32[8,32], index: 2, kind: input, shape index: {}]
  %s3 = inlined_call_operand.hbm [shape: f32[16,1,32], index: 3, kind: input, shape index: {}]
  %s4 = inlined_call_operand.vmem [shape: bf16[2,32,32], index: 4, kind: input, shape index: {}]
  %s5 = inlined_call_operand.hbm [shape: f32[2,1,32], index: 5, kind: input, shape index: {}]
  %s6 = inlined_call_operand.vmem [shape: bf16[2,32,32], index: 6, kind: input, shape index: {}]
  %s7 = inlined_call_operand.hbm [shape: f32[2,1,32], index: 7, kind: input, shape index: {}]
  %s8 = inlined_call_operand.vmem [shape: bf16[2,32,32], index: 8, kind: input, shape index: {}]
  %s9 = inlined_call_operand.hbm [shape: f32[2,1,32], index: 9, kind: input, shape index: {}]
  %s10 = inlined_call_operand.vmem [shape: bf16[2,32,32], index: 10, kind: input, shape index: {}]
  %s11 = inlined_call_operand.hbm [shape: f32[2,1,32], index: 11, kind: input, shape index: {}]
  %s12 = inlined_call_operand.vmem [shape: bf16[2,32,64], index: 12, kind: input, shape index: {}]
  %s13 = inlined_call_operand.vmem [shape: f32[2,1,64], index: 13, kind: input, shape index: {}]
  %s14 = inlined_call_operand.vmem [shape: bf16[2,64,32], index: 14, kind: input, shape index: {}]
  %s15 = inlined_call_operand.vmem [shape: f32[2,1,32], index: 15, kind: input, shape index: {}]
  %s16 = inlined_call_operand.vmem [shape: f32[2,1,32], index: 16, kind: input, shape index: {}]
  %s17 = inlined_call_operand.hbm [shape: f32[2,1,32], index: 17, kind: input, shape index: {}]
  %s18 = inlined_call_operand.vmem [shape: f32[2,1,32], index: 18, kind: input, shape index: {}]
  %s19 = inlined_call_operand.vmem [shape: f32[2,1,32], index: 19, kind: input, shape index: {}]
  %s20 = inlined_call_operand.vmem [shape: bf16[32,128], index: 20, kind: input, shape index: {}]
  %s21 = inlined_call_operand.vmem [shape: f32[1,128], index: 21, kind: input, shape index: {}]
  %s22 = inlined_call_operand.hbm [shape: f32[16,128], index: 22, kind: output, shape index: {}]
  %s23 = sld [smem:[#allocation0]]
  $region126: #{tpu_custom_call.1} parent=0
    _
  %s25 = ssub.s32 1, %s23
  %s26 = scalar_select 0, %s25, %s23
  $region1: #{tpu_custom_call.1} parent=0
    #allocation2 [shape = 'u8[4096]{0}', space=vmem, size = 0x1000, scoped, tag = 'input window, operand 2, single buffered']
    #allocation3 [shape = 's32[1]{0}', space=sflag, size = 0x4, scoped, tag = 'scoped memory for tpu_custom_call.1']
    #allocation4 [shape = 's32[1]{0}', space=sflag, size = 0x4, scoped, tag = 'scoped memory for tpu_custom_call.1']
    #allocation5 [shape = 'u8[8192]{0}', space=vmem, size = 0x2000, scoped, tag = 'input window, operand 3, single buffered']
    #allocation6 [shape = 's32[1]{0}', space=sflag, size = 0x4, scoped, tag = 'scoped memory for tpu_custom_call.1']
    #allocation7 [shape = 'u8[1024]{0}', space=vmem, size = 0x400, scoped, tag = 'input window, operand 5, single buffered']
    #allocation8 [shape = 'u8[1024]{0}', space=vmem, size = 0x400, scoped, tag = 'input window, operand 7, single buffered']
    #allocation9 [shape = 's32[1]{0}', space=sflag, size = 0x4, scoped, tag = 'scoped memory for tpu_custom_call.1']
    #allocation10 [shape = 'u8[1024]{0}', space=vmem, size = 0x400, scoped, tag = 'input window, operand 9, single buffered']
    #allocation11 [shape = 'u8[1024]{0}', space=vmem, size = 0x400, scoped, tag = 'input window, operand 11, single buffered']
    #allocation12 [shape = 's32[1]{0}', space=sflag, size = 0x4, scoped, tag = 'scoped memory for tpu_custom_call.1']
    #allocation13 [shape = 'u8[1024]{0}', space=vmem, size = 0x400, scoped, tag = 'input window, operand 17, single buffered']
    #allocation14 [shape = 'u8[8192]{0}', space=vmem, size = 0x2000, scoped, tag = 'output window, operand 0, single buffered']
    %27 = vsyncpa [#allocation3], 0
    %28 = vsyncpa [#allocation6], 0
    %29 = vsyncpa [#allocation9], 0
    %30 = vsyncpa [#allocation12], 0
    %31 = vsyncpa [#allocation4], 0
    // Predicated region
    $region2: #{tpu_custom_call.1} parent=1 // pred_check
      _
    $region3: #{tpu_custom_call.1} parent=1 // pred_check_branch
      %33 = sbr.rel (0) target = $region5
    $region4: #{tpu_custom_call.1} parent=1 // pred_region
      _
    $region5: #{tpu_custom_call.1} parent=1 // pred_fallthru
      _
    // Predicated region
    $region6: #{tpu_custom_call.1} parent=1 // pred_check
      _
    $region7: #{tpu_custom_call.1} parent=1 // pred_check_branch
      %35 = sbr.rel (0) target = $region9
    $region8: #{tpu_custom_call.1} parent=1 // pred_region
      _
    $region9: #{tpu_custom_call.1} parent=1 // pred_fallthru
      _
    // Predicated region
    $region10: #{tpu_custom_call.1} parent=1 // pred_check
      _
    $region11: #{tpu_custom_call.1} parent=1 // pred_check_branch
      %37 = sbr.rel (0) target = $region13
    $region12: #{tpu_custom_call.1} parent=1 // pred_region
      %39 = vsyncadd [#allocation3], 0
      %s41 = sshll.u32 %s2, 4
      %s42 = int_to_ptr.hbm [resolvable:$true] %s41
      %s43 = sshll.u32 [#allocation2], 4
      %s44 = int_to_ptr.vmem [resolvable:$true] %s43
      %46 = dma.hbm_to_vmem [thread:$0]  %s42, 128, %s44, [#allocation3]
    $region13: #{tpu_custom_call.1} parent=1 // pred_fallthru
      _
    // Predicated region
    $region14: #{tpu_custom_call.1} parent=1 // pred_check
      _
    $region15: #{tpu_custom_call.1} parent=1 // pred_check_branch
      %48 = sbr.rel (0) target = $region17
    $region16: #{tpu_custom_call.1} parent=1 // pred_region
      %50 = vsyncadd [#allocation6], 0
      %s51 = sshll.u32 %s3, 4
      %s52 = int_to_ptr.hbm [resolvable:$true] %s51
      %s53 = sshll.u32 [#allocation5], 4
      %s54 = int_to_ptr.vmem [resolvable:$true] %s53
      %59 = dma.hbm_to_vmem [thread:$0]  %s52, 256, %s54, [#allocation6], 16, 16, 1
    $region17: #{tpu_custom_call.1} parent=1 // pred_fallthru
      _
    // Predicated region
    $region18: #{tpu_custom_call.1} parent=1 // pred_check
      _
    $region19: #{tpu_custom_call.1} parent=1 // pred_check_branch
      %61 = sbr.rel (0) target = $region21
    $region20: #{tpu_custom_call.1} parent=1 // pred_region
      _
    $region21: #{tpu_custom_call.1} parent=1 // pred_fallthru
      _
    // Predicated region
    $region22: #{tpu_custom_call.1} parent=1 // pred_check
      _
    $region23: #{tpu_custom_call.1} parent=1 // pred_check_branch
      %63 = sbr.rel (0) target = $region25
    $region24: #{tpu_custom_call.1} parent=1 // pred_region
      %65 = vsyncadd [#allocation6], 0
      %s66 = sshll.u32 %s5, 4
      %s67 = int_to_ptr.hbm [resolvable:$true] %s66
      %s68 = sshll.u32 [#allocation7], 4
      %s69 = int_to_ptr.vmem [resolvable:$true] %s68
      %74 = dma.hbm_to_vmem [thread:$0]  %s67, 32, %s69, [#allocation6], 16, 16, 1
    $region25: #{tpu_custom_call.1} parent=1 // pred_fallthru
      _
    // Predicated region
    $region26: #{tpu_custom_call.1} parent=1 // pred_check
      _
    $region27: #{tpu_custom_call.1} parent=1 // pred_check_branch
      %76 = sbr.rel (0) target = $region29
    $region28: #{tpu_custom_call.1} parent=1 // pred_region
      _
    $region29: #{tpu_custom_call.1} parent=1 // pred_fallthru
      _
    // Predicated region
    $region30: #{tpu_custom_call.1} parent=1 // pred_check
      _
    $region31: #{tpu_custom_call.1} parent=1 // pred_check_branch
      %78 = sbr.rel (0) target = $region33
    $region32: #{tpu_custom_call.1} parent=1 // pred_region
      %80 = vsyncadd [#allocation9], 0
      %s81 = sshll.u32 %s7, 4
      %s82 = int_to_ptr.hbm [resolvable:$true] %s81
      %s83 = sshll.u32 [#allocation8], 4
      %s84 = int_to_ptr.vmem [resolvable:$true] %s83
      %89 = dma.hbm_to_vmem [thread:$0]  %s82, 32, %s84, [#allocation9], 16, 16, 1
    $region33: #{tpu_custom_call.1} parent=1 // pred_fallthru
      _
    // Predicated region
    $region34: #{tpu_custom_call.1} parent=1 // pred_check
      _
    $region35: #{tpu_custom_call.1} parent=1 // pred_check_branch
      %91 = sbr.rel (0) target = $region37
    $region36: #{tpu_custom_call.1} parent=1 // pred_region
      _
    $region37: #{tpu_custom_call.1} parent=1 // pred_fallthru
      _
    // Predicated region
    $region38: #{tpu_custom_call.1} parent=1 // pred_check
      _
    $region39: #{tpu_custom_call.1} parent=1 // pred_check_branch
      %93 = sbr.rel (0) target = $region41
    $region40: #{tpu_custom_call.1} parent=1 // pred_region
      %95 = vsyncadd [#allocation9], 0
      %s96 = sshll.u32 %s9, 4
      %s97 = int_to_ptr.hbm [resolvable:$true] %s96
      %s98 = sshll.u32 [#allocation10], 4
      %s99 = int_to_ptr.vmem [resolvable:$true] %s98
      %104 = dma.hbm_to_vmem [thread:$0]  %s97, 32, %s99, [#allocation9], 16, 16, 1
    $region41: #{tpu_custom_call.1} parent=1 // pred_fallthru
      _
    // Predicated region
    $region42: #{tpu_custom_call.1} parent=1 // pred_check
      _
    $region43: #{tpu_custom_call.1} parent=1 // pred_check_branch
      %106 = sbr.rel (0) target = $region45
    $region44: #{tpu_custom_call.1} parent=1 // pred_region
      _
    $region45: #{tpu_custom_call.1} parent=1 // pred_fallthru
      _
    // Predicated region
    $region46: #{tpu_custom_call.1} parent=1 // pred_check
      _
    $region47: #{tpu_custom_call.1} parent=1 // pred_check_branch
      %108 = sbr.rel (0) target = $region49
    $region48: #{tpu_custom_call.1} parent=1 // pred_region
      %110 = vsyncadd [#allocation12], 0
      %s111 = sshll.u32 %s11, 4
      %s112 = int_to_ptr.hbm [resolvable:$true] %s111
      %s113 = sshll.u32 [#allocation11], 4
      %s114 = int_to_ptr.vmem [resolvable:$true] %s113
      %119 = dma.hbm_to_vmem [thread:$0]  %s112, 32, %s114, [#allocation12], 16, 16, 1
    $region49: #{tpu_custom_call.1} parent=1 // pred_fallthru
      _
    // Predicated region
    $region50: #{tpu_custom_call.1} parent=1 // pred_check
      _
    $region51: #{tpu_custom_call.1} parent=1 // pred_check_branch
      %121 = sbr.rel (0) target = $region53
    $region52: #{tpu_custom_call.1} parent=1 // pred_region
      _
    $region53: #{tpu_custom_call.1} parent=1 // pred_fallthru
      _
    // Predicated region
    $region54: #{tpu_custom_call.1} parent=1 // pred_check
      _
    $region55: #{tpu_custom_call.1} parent=1 // pred_check_branch
      %123 = sbr.rel (0) target = $region57
    $region56: #{tpu_custom_call.1} parent=1 // pred_region
      _
    $region57: #{tpu_custom_call.1} parent=1 // pred_fallthru
      _
    // Predicated region
    $region58: #{tpu_custom_call.1} parent=1 // pred_check
      _
    $region59: #{tpu_custom_call.1} parent=1 // pred_check_branch
      %125 = sbr.rel (0) target = $region61
    $region60: #{tpu_custom_call.1} parent=1 // pred_region
      _
    $region61: #{tpu_custom_call.1} parent=1 // pred_fallthru
      _
    // Predicated region
    $region62: #{tpu_custom_call.1} parent=1 // pred_check
      _
    $region63: #{tpu_custom_call.1} parent=1 // pred_check_branch
      %127 = sbr.rel (0) target = $region65
    $region64: #{tpu_custom_call.1} parent=1 // pred_region
      _
    $region65: #{tpu_custom_call.1} parent=1 // pred_fallthru
      _
    // Predicated region
    $region66: #{tpu_custom_call.1} parent=1 // pred_check
      _
    $region67: #{tpu_custom_call.1} parent=1 // pred_check_branch
      %129 = sbr.rel (0) target = $region69
    $region68: #{tpu_custom_call.1} parent=1 // pred_region
      _
    $region69: #{tpu_custom_call.1} parent=1 // pred_fallthru
      _
    // Predicated region
    $region70: #{tpu_custom_call.1} parent=1 // pred_check
      _
    $region71: #{tpu_custom_call.1} parent=1 // pred_check_branch
      %131 = sbr.rel (0) target = $region73
    $region72: #{tpu_custom_call.1} parent=1 // pred_region
      %133 = vsyncadd [#allocation12], 0
      %s134 = sshll.u32 %s17, 4
      %s135 = int_to_ptr.hbm [resolvable:$true] %s134
      %s136 = sshll.u32 [#allocation13], 4
      %s137 = int_to_ptr.vmem [resolvable:$true] %s136
      %142 = dma.hbm_to_vmem [thread:$0]  %s135, 32, %s137, [#allocation12], 16, 16, 1
    $region73: #{tpu_custom_call.1} parent=1 // pred_fallthru
      _
    // Predicated region
    $region74: #{tpu_custom_call.1} parent=1 // pred_check
      _
    $region75: #{tpu_custom_call.1} parent=1 // pred_check_branch
      %144 = sbr.rel (0) target = $region77
    $region76: #{tpu_custom_call.1} parent=1 // pred_region
      _
    $region77: #{tpu_custom_call.1} parent=1 // pred_fallthru
      _
    // Predicated region
    $region78: #{tpu_custom_call.1} parent=1 // pred_check
      _
    $region79: #{tpu_custom_call.1} parent=1 // pred_check_branch
      %146 = sbr.rel (0) target = $region81
    $region80: #{tpu_custom_call.1} parent=1 // pred_region
      _
    $region81: #{tpu_custom_call.1} parent=1 // pred_fallthru
      _
    // Predicated region
    $region82: #{tpu_custom_call.1} parent=1 // pred_check
      _
    $region83: #{tpu_custom_call.1} parent=1 // pred_check_branch
      %148 = sbr.rel (0) target = $region85
    $region84: #{tpu_custom_call.1} parent=1 // pred_region
      _
    $region85: #{tpu_custom_call.1} parent=1 // pred_fallthru
      _
    // Predicated region
    $region86: #{tpu_custom_call.1} parent=1 // pred_check
      _
    $region87: #{tpu_custom_call.1} parent=1 // pred_check_branch
      %150 = sbr.rel (0) target = $region89
    $region88: #{tpu_custom_call.1} parent=1 // pred_region
      _
    $region89: #{tpu_custom_call.1} parent=1 // pred_fallthru
      _
    // Predicated region
    $region90: #{tpu_custom_call.1} parent=1 // pred_check
      _
    $region91: #{tpu_custom_call.1} parent=1 // pred_check_branch
      %152 = sbr.rel (0) target = $region93
    $region92: #{tpu_custom_call.1} parent=1 // pred_region
      %154 = dma.done [#allocation3], 128
    $region93: #{tpu_custom_call.1} parent=1 // pred_fallthru
      _
    // Predicated region
    $region94: #{tpu_custom_call.1} parent=1 // pred_check
      _
    $region95: #{tpu_custom_call.1} parent=1 // pred_check_branch
      %156 = sbr.rel (0) target = $region97
    $region96: #{tpu_custom_call.1} parent=1 // pred_region
      %158 = dma.done [#allocation6], 256
    $region97: #{tpu_custom_call.1} parent=1 // pred_fallthru
      _
    // Predicated region
    $region98: #{tpu_custom_call.1} parent=1 // pred_check
      _
    $region99: #{tpu_custom_call.1} parent=1 // pred_check_branch
      %160 = sbr.rel (0) target = $region101
    $region100: #{tpu_custom_call.1} parent=1 // pred_region
      %162 = dma.done [#allocation6], 32
    $region101: #{tpu_custom_call.1} parent=1 // pred_fallthru
      _
    // Predicated region
    $region102: #{tpu_custom_call.1} parent=1 // pred_check
      _
    $region103: #{tpu_custom_call.1} parent=1 // pred_check_branch
      %164 = sbr.rel (0) target = $region105
    $region104: #{tpu_custom_call.1} parent=1 // pred_region
      %166 = dma.done [#allocation9], 32
    $region105: #{tpu_custom_call.1} parent=1 // pred_fallthru
      _
    // Predicated region
    $region106: #{tpu_custom_call.1} parent=1 // pred_check
      _
    $region107: #{tpu_custom_call.1} parent=1 // pred_check_branch
      %168 = sbr.rel (0) target = $region109
    $region108: #{tpu_custom_call.1} parent=1 // pred_region
      %170 = dma.done [#allocation9], 32
    $region109: #{tpu_custom_call.1} parent=1 // pred_fallthru
      _
    // Predicated region
    $region110: #{tpu_custom_call.1} parent=1 // pred_check
      _
    $region111: #{tpu_custom_call.1} parent=1 // pred_check_branch
      %172 = sbr.rel (0) target = $region113
    $region112: #{tpu_custom_call.1} parent=1 // pred_region
      %174 = dma.done [#allocation12], 32
    $region113: #{tpu_custom_call.1} parent=1 // pred_fallthru
      _
    // Predicated region
    $region114: #{tpu_custom_call.1} parent=1 // pred_check
      _
    $region115: #{tpu_custom_call.1} parent=1 // pred_check_branch
      %176 = sbr.rel (0) target = $region117
    $region116: #{tpu_custom_call.1} parent=1 // pred_region
      %178 = dma.done [#allocation12], 32
    $region117: #{tpu_custom_call.1} parent=1 // pred_fallthru
      _
    %v180 = vld [vmem:[%s0] sm:$0xff]
    %v181 = vld [vmem:[%s0 + $0x8] sm:$0xff]
    %v182 = vlaneseq
    %v183 = vand.u32 %v182, 127
    %184 = vset.pattern.permute.xlu0 0
    %185 = vperm.xlu0 %184, %v180
    %v186 = vpop.permute.xlu0 %185
    %187 = vset.pattern.permute.xlu0 0
    %188 = vperm.xlu0 %187, %v181
    %v189 = vpop.permute.xlu0 %188
    %vm190 = vcmp.eq.s32.totalorder %v186, %v183
    %vm191 = vcmp.eq.s32.totalorder %v189, %v183
    %v192 = vsel %vm190, 1, 0
    %v193 = vsel %vm191, 1, 0
    %v194 = vcvt.s32.f32 %v192
    %v195 = vcvt.s32.f32 %v193
    %v196 = vld [vmem:[%s1] sm:$0xff]
    %v197 = vld [vmem:[%s1 + $0x8] sm:$0xff]
    %v198 = vld [vmem:[%s1 + $0x10] sm:$0xff]
    %v199 = vld [vmem:[%s1 + $0x18] sm:$0xff]
    %v200 = vld [vmem:[%s1 + $0x20] sm:$0xff]
    %v201 = vld [vmem:[%s1 + $0x28] sm:$0xff]
    %v202 = vld [vmem:[%s1 + $0x30] sm:$0x3]
    %vm203 = vcmask 408576
    %v205 = vsel %vm203, %v194, 0
    %v208 = vsel %vm203, %v195, 0
    %vm210 = vcmask 1041408
    %v212 = vsel %vm210, %v202, 0
    %214 = vmatpush.msra.mxu0 0.0
    %215 = vmatpush.msra.mxu0 0.0
    %216 = vmatpush.msra.mxu0 0.0
    %217 = vmatpush.msra.mxu0 0.0
    %218 = vmatpush.msra.mxu0 0.0
    %219 = vmatpush.msra.mxu0 0.0
    %220 = vmatpush.msra.mxu0 0.0
    %221 = vmatpush.msra.mxu0 0.0
    %222 = vmatpush.msra.mxu0 0.0
    %223 = vmatpush.msra.mxu0 %v212
    %224 = vmatpush.msra.mxu0 %v201
    %225 = vmatpush.msra.mxu0 %v200
    %226 = vmatpush.msra.mxu0 %v199
    %227 = vmatpush.msra.mxu0 %v198
    %228 = vmatpush.msra.mxu0 %v197
    %229 = vmatpush.msra.mxu0 %v196
    %230 = vmatmul.f32.gmra.mxu0 %v205
    %v231 = vpop.f32.mrf.mxu0
    %v232 = vadd.f32 0.0, %v231
    %233 = vmatmul.f32.gmra.mxu0 %v208
    %v234 = vpop.f32.mrf.mxu0
    %v235 = vadd.f32 0.0, %v234
    %236 = vdwg.mxu0
    %v237 = vld [vmem:[#allocation2] sm:$0xff]
    %v238 = vadd.f32 %v232, %v237
    %v239 = vadd.f32 %v235, %v237
    %v240 = vld [vmem:[#allocation5] sm:$0x1]
    %v241 = vld [vmem:[#allocation5 + $0x1] sm:$0x1]
    %v242 = vld [vmem:[#allocation5 + $0x2] sm:$0x1]
    %v243 = vld [vmem:[#allocation5 + $0x3] sm:$0x1]
    %v244 = vld [vmem:[#allocation5 + $0x4] sm:$0x1]
    %v245 = vld [vmem:[#allocation5 + $0x5] sm:$0x1]
    %v246 = vld [vmem:[#allocation5 + $0x6] sm:$0x1]
    %v247 = vld [vmem:[#allocation5 + $0x7] sm:$0x1]
    %v248 = vld [vmem:[#allocation5 + $0x8] sm:$0x1]
    %v249 = vld [vmem:[#allocation5 + $0x9] sm:$0x1]
    %v250 = vld [vmem:[#allocation5 + $0xa] sm:$0x1]
    %v251 = vld [vmem:[#allocation5 + $0xb] sm:$0x1]
    %v252 = vld [vmem:[#allocation5 + $0xc] sm:$0x1]
    %v253 = vld [vmem:[#allocation5 + $0xd] sm:$0x1]
    %v254 = vld [vmem:[#allocation5 + $0xe] sm:$0x1]
    %v255 = vld [vmem:[#allocation5 + $0xf] sm:$0x1]
    %v256 = vpack.c.bf16 %v239, %v238
    %v257 = vld [vmem:[%s4] sm:$0xf]
    %v258 = vld [vmem:[%s4 + $0x4] sm:$0xf]
    %v259 = vld [vmem:[%s4 + $0x8] sm:$0xf]
    %v260 = vld [vmem:[%s4 + $0xc] sm:$0xf]
    %v261 = vld [vmem:[#allocation7] sm:$0x1]
    %v263 = vperm.slane %v261, 0
    %v269 = vunpack.c.l.b16 %v257
    %v270 = vunpack.c.l.b16 %v258
    %v271 = vunpack.c.l.b16 %v259
    %v272 = vunpack.c.l.b16 %v260
    %v273 = vpack.c.b16 %v270, %v269
    %v274 = vpack.c.b16 %v272, %v271
    %vm277 = vcmask 261120
    %v279 = vsel %vm277, %v256, 0
    %281 = vmatpush.bf16.msra.mxu0 0
    %282 = vmatpush.bf16.msra.mxu0 0
    %283 = vmatpush.bf16.msra.mxu0 0
    %284 = vmatpush.bf16.msra.mxu0 0
    %285 = vmatpush.bf16.msra.mxu0 0
    %286 = vmatpush.bf16.msra.mxu0 0
    %287 = vmatpush.bf16.msra.mxu0 %v274
    %288 = vmatpush.bf16.msra.mxu0 %v273
    %289 = vmatmul.bf16.gmra.mxu0 %v279
    %v290 = vpop.f32.mrf.mxu0
    %v291 = vadd.f32 %v263, %v290
    %v292 = vpop.f32.mrf.mxu0
    %v293 = vadd.f32 %v263, %v292
    %294 = vdwg.mxu0
    %v295 = vld [vmem:[%s6] sm:$0xf]
    %v296 = vld [vmem:[%s6 + $0x4] sm:$0xf]
    %v297 = vld [vmem:[%s6 + $0x8] sm:$0xf]
    %v298 = vld [vmem:[%s6 + $0xc] sm:$0xf]
    %v299 = vld [vmem:[#allocation8] sm:$0x1]
    %v301 = vperm.slane %v299, 0
    %v307 = vunpack.c.l.b16 %v295
    %v308 = vunpack.c.l.b16 %v296
    %v309 = vunpack.c.l.b16 %v297
    %v310 = vunpack.c.l.b16 %v298
    %v311 = vpack.c.b16 %v308, %v307
    %v312 = vpack.c.b16 %v310, %v309
    %315 = vmatpush.bf16.msra.mxu0 0
    %316 = vmatpush.bf16.msra.mxu0 0
    %317 = vmatpush.bf16.msra.mxu0 0
    %318 = vmatpush.bf16.msra.mxu0 0
    %319 = vmatpush.bf16.msra.mxu0 0
    %320 = vmatpush.bf16.msra.mxu0 0
    %321 = vmatpush.bf16.msra.mxu0 %v312
    %322 = vmatpush.bf16.msra.mxu0 %v311
    %323 = vmatmul.bf16.gmra.mxu0 %v279
    %v324 = vpop.f32.mrf.mxu0
    %v325 = vadd.f32 %v301, %v324
    %v326 = vpop.f32.mrf.mxu0
    %v327 = vadd.f32 %v301, %v326
    %328 = vdwg.mxu0
    %v329 = vld [vmem:[%s8] sm:$0xf]
    %v330 = vld [vmem:[%s8 + $0x4] sm:$0xf]
    %v331 = vld [vmem:[%s8 + $0x8] sm:$0xf]
    %v332 = vld [vmem:[%s8 + $0xc] sm:$0xf]
    %v333 = vld [vmem:[#allocation10] sm:$0x1]
    %v335 = vperm.slane %v333, 0
    %v341 = vunpack.c.l.b16 %v329
    %v342 = vunpack.c.l.b16 %v330
    %v343 = vunpack.c.l.b16 %v331
    %v344 = vunpack.c.l.b16 %v332
    %v345 = vpack.c.b16 %v342, %v341
    %v346 = vpack.c.b16 %v344, %v343
    %349 = vmatpush.bf16.msra.mxu0 0
    %350 = vmatpush.bf16.msra.mxu0 0
    %351 = vmatpush.bf16.msra.mxu0 0
    %352 = vmatpush.bf16.msra.mxu0 0
    %353 = vmatpush.bf16.msra.mxu0 0
    %354 = vmatpush.bf16.msra.mxu0 0
    %355 = vmatpush.bf16.msra.mxu0 %v346
    %356 = vmatpush.bf16.msra.mxu0 %v345
    %357 = vmatmul.bf16.gmra.mxu0 %v279
    %v358 = vpop.f32.mrf.mxu0
    %v359 = vadd.f32 %v335, %v358
    %v360 = vpop.f32.mrf.mxu0
    %v361 = vadd.f32 %v335, %v360
    %362 = vdwg.mxu0
    %v379 = vperm.slane %v240, 0
    %v380 = vperm.slane %v241, 0
    %v381 = vperm.slane %v242, 0
    %v382 = vperm.slane %v243, 0
    %v383 = vperm.slane %v244, 0
    %v384 = vperm.slane %v245, 0
    %v385 = vperm.slane %v246, 0
    %v386 = vperm.slane %v247, 0
    %v387 = vperm.slane %v248, 0
    %v388 = vperm.slane %v249, 0
    %v389 = vperm.slane %v250, 0
    %v390 = vperm.slane %v251, 0
    %v391 = vperm.slane %v252, 0
    %v392 = vperm.slane %v253, 0
    %v393 = vperm.slane %v254, 0
    %v394 = vperm.slane %v255, 0
    %v411 = vmul.f32 %v291, %v379
    %v412 = vmul.f32 %v291, %v380
    %v413 = vmul.f32 %v291, %v381
    %v414 = vmul.f32 %v291, %v382
    %v415 = vmul.f32 %v291, %v383
    %v416 = vmul.f32 %v291, %v384
    %v417 = vmul.f32 %v291, %v385
    %v418 = vmul.f32 %v291, %v386
    %v419 = vmul.f32 %v291, %v387
    %v420 = vmul.f32 %v291, %v388
    %v421 = vmul.f32 %v291, %v389
    %v422 = vmul.f32 %v291, %v390
    %v423 = vmul.f32 %v291, %v391
    %v424 = vmul.f32 %v291, %v392
    %v425 = vmul.f32 %v291, %v393
    %v426 = vmul.f32 %v291, %v394
    %v427 = vmul.f32 %v293, %v379
    %v428 = vmul.f32 %v293, %v380
    %v429 = vmul.f32 %v293, %v381
    %v430 = vmul.f32 %v293, %v382
    %v431 = vmul.f32 %v293, %v383
    %v432 = vmul.f32 %v293, %v384
    %v433 = vmul.f32 %v293, %v385
    %v434 = vmul.f32 %v293, %v386
    %v435 = vmul.f32 %v293, %v387
    %v436 = vmul.f32 %v293, %v388
    %v437 = vmul.f32 %v293, %v389
    %v438 = vmul.f32 %v293, %v390
    %v439 = vmul.f32 %v293, %v391
    %v440 = vmul.f32 %v293, %v392
    %v441 = vmul.f32 %v293, %v393
    %v442 = vmul.f32 %v293, %v394
    %v443 = vpack.c.bf16 %v411, %v411
    %v444 = vpack.c.bf16 %v412, %v412
    %v445 = vpack.c.bf16 %v413, %v413
    %v446 = vpack.c.bf16 %v414, %v414
    %v447 = vpack.c.bf16 %v415, %v415
    %v448 = vpack.c.bf16 %v416, %v416
    %v449 = vpack.c.bf16 %v417, %v417
    %v450 = vpack.c.bf16 %v418, %v418
    %v451 = vpack.c.bf16 %v419, %v419
    %v452 = vpack.c.bf16 %v420, %v420
    %v453 = vpack.c.bf16 %v421, %v421
    %v454 = vpack.c.bf16 %v422, %v422
    %v455 = vpack.c.bf16 %v423, %v423
    %v456 = vpack.c.bf16 %v424, %v424
    %v457 = vpack.c.bf16 %v425, %v425
    %v458 = vpack.c.bf16 %v426, %v426
    %v459 = vpack.c.bf16 %v427, %v427
    %v460 = vpack.c.bf16 %v428, %v428
    %v461 = vpack.c.bf16 %v429, %v429
    %v462 = vpack.c.bf16 %v430, %v430
    %v463 = vpack.c.bf16 %v431, %v431
    %v464 = vpack.c.bf16 %v432, %v432
    %v465 = vpack.c.bf16 %v433, %v433
    %v466 = vpack.c.bf16 %v434, %v434
    %v467 = vpack.c.bf16 %v435, %v435
    %v468 = vpack.c.bf16 %v436, %v436
    %v469 = vpack.c.bf16 %v437, %v437
    %v470 = vpack.c.bf16 %v438, %v438
    %v471 = vpack.c.bf16 %v439, %v439
    %v472 = vpack.c.bf16 %v440, %v440
    %v473 = vpack.c.bf16 %v441, %v441
    %v474 = vpack.c.bf16 %v442, %v442
    %v475 = vmul.f32 %v325, %v379
    %v476 = vmul.f32 %v325, %v380
    %v477 = vmul.f32 %v325, %v381
    %v478 = vmul.f32 %v325, %v382
    %v479 = vmul.f32 %v325, %v383
    %v480 = vmul.f32 %v325, %v384
    %v481 = vmul.f32 %v325, %v385
    %v482 = vmul.f32 %v325, %v386
    %v483 = vmul.f32 %v325, %v387
    %v484 = vmul.f32 %v325, %v388
    %v485 = vmul.f32 %v325, %v389
    %v486 = vmul.f32 %v325, %v390
    %v487 = vmul.f32 %v325, %v391
    %v488 = vmul.f32 %v325, %v392
    %v489 = vmul.f32 %v325, %v393
    %v490 = vmul.f32 %v325, %v394
    %v491 = vmul.f32 %v327, %v379
    %v492 = vmul.f32 %v327, %v380
    %v493 = vmul.f32 %v327, %v381
    %v494 = vmul.f32 %v327, %v382
    %v495 = vmul.f32 %v327, %v383
    %v496 = vmul.f32 %v327, %v384
    %v497 = vmul.f32 %v327, %v385
    %v498 = vmul.f32 %v327, %v386
    %v499 = vmul.f32 %v327, %v387
    %v500 = vmul.f32 %v327, %v388
    %v501 = vmul.f32 %v327, %v389
    %v502 = vmul.f32 %v327, %v390
    %v503 = vmul.f32 %v327, %v391
    %v504 = vmul.f32 %v327, %v392
    %v505 = vmul.f32 %v327, %v393
    %v506 = vmul.f32 %v327, %v394
    %v507 = vpack.c.bf16 %v475, %v475
    %v508 = vpack.c.bf16 %v476, %v476
    %v509 = vpack.c.bf16 %v477, %v477
    %v510 = vpack.c.bf16 %v478, %v478
    %v511 = vpack.c.bf16 %v479, %v479
    %v512 = vpack.c.bf16 %v480, %v480
    %v513 = vpack.c.bf16 %v481, %v481
    %v514 = vpack.c.bf16 %v482, %v482
    %v515 = vpack.c.bf16 %v483, %v483
    %v516 = vpack.c.bf16 %v484, %v484
    %v517 = vpack.c.bf16 %v485, %v485
    %v518 = vpack.c.bf16 %v486, %v486
    %v519 = vpack.c.bf16 %v487, %v487
    %v520 = vpack.c.bf16 %v488, %v488
    %v521 = vpack.c.bf16 %v489, %v489
    %v522 = vpack.c.bf16 %v490, %v490
    %v523 = vpack.c.bf16 %v491, %v491
    %v524 = vpack.c.bf16 %v492, %v492
    %v525 = vpack.c.bf16 %v493, %v493
    %v526 = vpack.c.bf16 %v494, %v494
    %v527 = vpack.c.bf16 %v495, %v495
    %v528 = vpack.c.bf16 %v496, %v496
    %v529 = vpack.c.bf16 %v497, %v497
    %v530 = vpack.c.bf16 %v498, %v498
    %v531 = vpack.c.bf16 %v499, %v499
    %v532 = vpack.c.bf16 %v500, %v500
    %v533 = vpack.c.bf16 %v501, %v501
    %v534 = vpack.c.bf16 %v502, %v502
    %v535 = vpack.c.bf16 %v503, %v503
    %v536 = vpack.c.bf16 %v504, %v504
    %v537 = vpack.c.bf16 %v505, %v505
    %v538 = vpack.c.bf16 %v506, %v506
    %v539 = vmul.f32 %v359, %v379
    %v540 = vmul.f32 %v359, %v380
    %v541 = vmul.f32 %v359, %v381
    %v542 = vmul.f32 %v359, %v382
    %v543 = vmul.f32 %v359, %v383
    %v544 = vmul.f32 %v359, %v384
    %v545 = vmul.f32 %v359, %v385
    %v546 = vmul.f32 %v359, %v386
    %v547 = vmul.f32 %v359, %v387
    %v548 = vmul.f32 %v359, %v388
    %v549 = vmul.f32 %v359, %v389
    %v550 = vmul.f32 %v359, %v390
    %v551 = vmul.f32 %v359, %v391
    %v552 = vmul.f32 %v359, %v392
    %v553 = vmul.f32 %v359, %v393
    %v554 = vmul.f32 %v359, %v394
    %v555 = vmul.f32 %v361, %v379
    %v556 = vmul.f32 %v361, %v380
    %v557 = vmul.f32 %v361, %v381
    %v558 = vmul.f32 %v361, %v382
    %v559 = vmul.f32 %v361, %v383
    %v560 = vmul.f32 %v361, %v384
    %v561 = vmul.f32 %v361, %v385
    %v562 = vmul.f32 %v361, %v386
    %v563 = vmul.f32 %v361, %v387
    %v564 = vmul.f32 %v361, %v388
    %v565 = vmul.f32 %v361, %v389
    %v566 = vmul.f32 %v361, %v390
    %v567 = vmul.f32 %v361, %v391
    %v568 = vmul.f32 %v361, %v392
    %v569 = vmul.f32 %v361, %v393
    %v570 = vmul.f32 %v361, %v394
    %v571 = vpack.c.bf16 %v539, %v539
    %v572 = vpack.c.bf16 %v540, %v540
    %v573 = vpack.c.bf16 %v541, %v541
    %v574 = vpack.c.bf16 %v542, %v542
    %v575 = vpack.c.bf16 %v543, %v543
    %v576 = vpack.c.bf16 %v544, %v544
    %v577 = vpack.c.bf16 %v545, %v545
    %v578 = vpack.c.bf16 %v546, %v546
    %v579 = vpack.c.bf16 %v547, %v547
    %v580 = vpack.c.bf16 %v548, %v548
    %v581 = vpack.c.bf16 %v549, %v549
    %v582 = vpack.c.bf16 %v550, %v550
    %v583 = vpack.c.bf16 %v551, %v551
    %v584 = vpack.c.bf16 %v552, %v552
    %v585 = vpack.c.bf16 %v553, %v553
    %v586 = vpack.c.bf16 %v554, %v554
    %v587 = vpack.c.bf16 %v555, %v555
    %v588 = vpack.c.bf16 %v556, %v556
    %v589 = vpack.c.bf16 %v557, %v557
    %v590 = vpack.c.bf16 %v558, %v558
    %v591 = vpack.c.bf16 %v559, %v559
    %v592 = vpack.c.bf16 %v560, %v560
    %v593 = vpack.c.bf16 %v561, %v561
    %v594 = vpack.c.bf16 %v562, %v562
    %v595 = vpack.c.bf16 %v563, %v563
    %v596 = vpack.c.bf16 %v564, %v564
    %v597 = vpack.c.bf16 %v565, %v565
    %v598 = vpack.c.bf16 %v566, %v566
    %v599 = vpack.c.bf16 %v567, %v567
    %v600 = vpack.c.bf16 %v568, %v568
    %v601 = vpack.c.bf16 %v569, %v569
    %v602 = vpack.c.bf16 %v570, %v570
    %v604 = vsel %vm277, %v443, 0
    %v607 = vsel %vm277, %v507, 0
    %609 = vmatpush.bf16.xpose.msra.mxu0 0
    %610 = vmatpush.bf16.xpose.msra.mxu0 0
    %611 = vmatpush.bf16.xpose.msra.mxu0 0
    %612 = vmatpush.bf16.xpose.msra.mxu0 0
    %613 = vmatpush.bf16.xpose.msra.mxu0 0
    %614 = vmatpush.bf16.xpose.msra.mxu0 0
    %615 = vmatpush.bf16.xpose.msra.mxu0 0
    %616 = vmatpush.bf16.xpose.msra.mxu0 %v607
    %617 = vmatmul.bf16.gmra.mxu0 %v604
    %v618 = vpop.f32.mrf.mxu0
    %v619 = vadd.f32 0.0, %v618
    %v620 = vpop.f32.mrf.mxu0
    %621 = vdwg.mxu0
    %v623 = vsel %vm277, %v444, 0
    %v626 = vsel %vm277, %v508, 0
    %628 = vmatpush.bf16.xpose.msra.mxu0 0
    %629 = vmatpush.bf16.xpose.msra.mxu0 0
    %630 = vmatpush.bf16.xpose.msra.mxu0 0
    %631 = vmatpush.bf16.xpose.msra.mxu0 0
    %632 = vmatpush.bf16.xpose.msra.mxu0 0
    %633 = vmatpush.bf16.xpose.msra.mxu0 0
    %634 = vmatpush.bf16.xpose.msra.mxu0 0
    %635 = vmatpush.bf16.xpose.msra.mxu0 %v626
    %636 = vmatmul.bf16.gmra.mxu0 %v623
    %v637 = vpop.f32.mrf.mxu0
    %v638 = vadd.f32 0.0, %v637
    %v639 = vpop.f32.mrf.mxu0
    %640 = vdwg.mxu0
    %v642 = vsel %vm277, %v445, 0
    %v645 = vsel %vm277, %v509, 0
    %647 = vmatpush.bf16.xpose.msra.mxu0 0
    %648 = vmatpush.bf16.xpose.msra.mxu0 0
    %649 = vmatpush.bf16.xpose.msra.mxu0 0
    %650 = vmatpush.bf16.xpose.msra.mxu0 0
    %651 = vmatpush.bf16.xpose.msra.mxu0 0
    %652 = vmatpush.bf16.xpose.msra.mxu0 0
    %653 = vmatpush.bf16.xpose.msra.mxu0 0
    %654 = vmatpush.bf16.xpose.msra.mxu0 %v645
    %655 = vmatmul.bf16.gmra.mxu0 %v642
    %v656 = vpop.f32.mrf.mxu0
    %v657 = vadd.f32 0.0, %v656
    %v658 = vpop.f32.mrf.mxu0
    %659 = vdwg.mxu0
    %v661 = vsel %vm277, %v446, 0
    %v664 = vsel %vm277, %v510, 0
    %666 = vmatpush.bf16.xpose.msra.mxu0 0
    %667 = vmatpush.bf16.xpose.msra.mxu0 0
    %668 = vmatpush.bf16.xpose.msra.mxu0 0
    %669 = vmatpush.bf16.xpose.msra.mxu0 0
    %670 = vmatpush.bf16.xpose.msra.mxu0 0
    %671 = vmatpush.bf16.xpose.msra.mxu0 0
    %672 = vmatpush.bf16.xpose.msra.mxu0 0
    %673 = vmatpush.bf16.xpose.msra.mxu0 %v664
    %674 = vmatmul.bf16.gmra.mxu0 %v661
    %v675 = vpop.f32.mrf.mxu0
    %v676 = vadd.f32 0.0, %v675
    %v677 = vpop.f32.mrf.mxu0
    %678 = vdwg.mxu0
    %v680 = vsel %vm277, %v447, 0
    %v683 = vsel %vm277, %v511, 0
    %685 = vmatpush.bf16.xpose.msra.mxu0 0
    %686 = vmatpush.bf16.xpose.msra.mxu0 0
    %687 = vmatpush.bf16.xpose.msra.mxu0 0
    %688 = vmatpush.bf16.xpose.msra.mxu0 0
    %689 = vmatpush.bf16.xpose.msra.mxu0 0
    %690 = vmatpush.bf16.xpose.msra.mxu0 0
    %691 = vmatpush.bf16.xpose.msra.mxu0 0
    %692 = vmatpush.bf16.xpose.msra.mxu0 %v683
    %693 = vmatmul.bf16.gmra.mxu0 %v680
    %v694 = vpop.f32.mrf.mxu0
    %v695 = vadd.f32 0.0, %v694
    %v696 = vpop.f32.mrf.mxu0
    %697 = vdwg.mxu0
    %v699 = vsel %vm277, %v448, 0
    %v702 = vsel %vm277, %v512, 0
    %704 = vmatpush.bf16.xpose.msra.mxu0 0
    %705 = vmatpush.bf16.xpose.msra.mxu0 0
    %706 = vmatpush.bf16.xpose.msra.mxu0 0
    %707 = vmatpush.bf16.xpose.msra.mxu0 0
    %708 = vmatpush.bf16.xpose.msra.mxu0 0
    %709 = vmatpush.bf16.xpose.msra.mxu0 0
    %710 = vmatpush.bf16.xpose.msra.mxu0 0
    %711 = vmatpush.bf16.xpose.msra.mxu0 %v702
    %712 = vmatmul.bf16.gmra.mxu0 %v699
    %v713 = vpop.f32.mrf.mxu0
    %v714 = vadd.f32 0.0, %v713
    %v715 = vpop.f32.mrf.mxu0
    %716 = vdwg.mxu0
    %v718 = vsel %vm277, %v449, 0
    %v721 = vsel %vm277, %v513, 0
    %723 = vmatpush.bf16.xpose.msra.mxu0 0
    %724 = vmatpush.bf16.xpose.msra.mxu0 0
    %725 = vmatpush.bf16.xpose.msra.mxu0 0
    %726 = vmatpush.bf16.xpose.msra.mxu0 0
    %727 = vmatpush.bf16.xpose.msra.mxu0 0
    %728 = vmatpush.bf16.xpose.msra.mxu0 0
    %729 = vmatpush.bf16.xpose.msra.mxu0 0
    %730 = vmatpush.bf16.xpose.msra.mxu0 %v721
    %731 = vmatmul.bf16.gmra.mxu0 %v718
    %v732 = vpop.f32.mrf.mxu0
    %v733 = vadd.f32 0.0, %v732
    %v734 = vpop.f32.mrf.mxu0
    %735 = vdwg.mxu0
    %v737 = vsel %vm277, %v450, 0
    %v740 = vsel %vm277, %v514, 0
    %742 = vmatpush.bf16.xpose.msra.mxu0 0
    %743 = vmatpush.bf16.xpose.msra.mxu0 0
    %744 = vmatpush.bf16.xpose.msra.mxu0 0
    %745 = vmatpush.bf16.xpose.msra.mxu0 0
    %746 = vmatpush.bf16.xpose.msra.mxu0 0
    %747 = vmatpush.bf16.xpose.msra.mxu0 0
    %748 = vmatpush.bf16.xpose.msra.mxu0 0
    %749 = vmatpush.bf16.xpose.msra.mxu0 %v740
    %750 = vmatmul.bf16.gmra.mxu0 %v737
    %v751 = vpop.f32.mrf.mxu0
    %v752 = vadd.f32 0.0, %v751
    %v753 = vpop.f32.mrf.mxu0
    %754 = vdwg.mxu0
    %v756 = vsel %vm277, %v451, 0
    %v759 = vsel %vm277, %v515, 0
    %761 = vmatpush.bf16.xpose.msra.mxu0 0
    %762 = vmatpush.bf16.xpose.msra.mxu0 0
    %763 = vmatpush.bf16.xpose.msra.mxu0 0
    %764 = vmatpush.bf16.xpose.msra.mxu0 0
    %765 = vmatpush.bf16.xpose.msra.mxu0 0
    %766 = vmatpush.bf16.xpose.msra.mxu0 0
    %767 = vmatpush.bf16.xpose.msra.mxu0 0
    %768 = vmatpush.bf16.xpose.msra.mxu0 %v759
    %769 = vmatmul.bf16.gmra.mxu0 %v756
    %v770 = vpop.f32.mrf.mxu0
    %v771 = vadd.f32 0.0, %v770
    %v772 = vpop.f32.mrf.mxu0
    %773 = vdwg.mxu0
    %v775 = vsel %vm277, %v452, 0
    %v778 = vsel %vm277, %v516, 0
    %780 = vmatpush.bf16.xpose.msra.mxu0 0
    %781 = vmatpush.bf16.xpose.msra.mxu0 0
    %782 = vmatpush.bf16.xpose.msra.mxu0 0
    %783 = vmatpush.bf16.xpose.msra.mxu0 0
    %784 = vmatpush.bf16.xpose.msra.mxu0 0
    %785 = vmatpush.bf16.xpose.msra.mxu0 0
    %786 = vmatpush.bf16.xpose.msra.mxu0 0
    %787 = vmatpush.bf16.xpose.msra.mxu0 %v778
    %788 = vmatmul.bf16.gmra.mxu0 %v775
    %v789 = vpop.f32.mrf.mxu0
    %v790 = vadd.f32 0.0, %v789
    %v791 = vpop.f32.mrf.mxu0
    %792 = vdwg.mxu0
    %v794 = vsel %vm277, %v453, 0
    %v797 = vsel %vm277, %v517, 0
    %799 = vmatpush.bf16.xpose.msra.mxu0 0
    %800 = vmatpush.bf16.xpose.msra.mxu0 0
    %801 = vmatpush.bf16.xpose.msra.mxu0 0
    %802 = vmatpush.bf16.xpose.msra.mxu0 0
    %803 = vmatpush.bf16.xpose.msra.mxu0 0
    %804 = vmatpush.bf16.xpose.msra.mxu0 0
    %805 = vmatpush.bf16.xpose.msra.mxu0 0
    %806 = vmatpush.bf16.xpose.msra.mxu0 %v797
    %807 = vmatmul.bf16.gmra.mxu0 %v794
    %v808 = vpop.f32.mrf.mxu0
    %v809 = vadd.f32 0.0, %v808
    %v810 = vpop.f32.mrf.mxu0
    %811 = vdwg.mxu0
    %v813 = vsel %vm277, %v454, 0
    %v816 = vsel %vm277, %v518, 0
    %818 = vmatpush.bf16.xpose.msra.mxu0 0
    %819 = vmatpush.bf16.xpose.msra.mxu0 0
    %820 = vmatpush.bf16.xpose.msra.mxu0 0
    %821 = vmatpush.bf16.xpose.msra.mxu0 0
    %822 = vmatpush.bf16.xpose.msra.mxu0 0
    %823 = vmatpush.bf16.xpose.msra.mxu0 0
    %824 = vmatpush.bf16.xpose.msra.mxu0 0
    %825 = vmatpush.bf16.xpose.msra.mxu0 %v816
    %826 = vmatmul.bf16.gmra.mxu0 %v813
    %v827 = vpop.f32.mrf.mxu0
    %v828 = vadd.f32 0.0, %v827
    %v829 = vpop.f32.mrf.mxu0
    %830 = vdwg.mxu0
    %v832 = vsel %vm277, %v455, 0
    %v835 = vsel %vm277, %v519, 0
    %837 = vmatpush.bf16.xpose.msra.mxu0 0
    %838 = vmatpush.bf16.xpose.msra.mxu0 0
    %839 = vmatpush.bf16.xpose.msra.mxu0 0
    %840 = vmatpush.bf16.xpose.msra.mxu0 0
    %841 = vmatpush.bf16.xpose.msra.mxu0 0
    %842 = vmatpush.bf16.xpose.msra.mxu0 0
    %843 = vmatpush.bf16.xpose.msra.mxu0 0
    %844 = vmatpush.bf16.xpose.msra.mxu0 %v835
    %845 = vmatmul.bf16.gmra.mxu0 %v832
    %v846 = vpop.f32.mrf.mxu0
    %v847 = vadd.f32 0.0, %v846
    %v848 = vpop.f32.mrf.mxu0
    %849 = vdwg.mxu0
    %v851 = vsel %vm277, %v456, 0
    %v854 = vsel %vm277, %v520, 0
    %856 = vmatpush.bf16.xpose.msra.mxu0 0
    %857 = vmatpush.bf16.xpose.msra.mxu0 0
    %858 = vmatpush.bf16.xpose.msra.mxu0 0
    %859 = vmatpush.bf16.xpose.msra.mxu0 0
    %860 = vmatpush.bf16.xpose.msra.mxu0 0
    %861 = vmatpush.bf16.xpose.msra.mxu0 0
    %862 = vmatpush.bf16.xpose.msra.mxu0 0
    %863 = vmatpush.bf16.xpose.msra.mxu0 %v854
    %864 = vmatmul.bf16.gmra.mxu0 %v851
    %v865 = vpop.f32.mrf.mxu0
    %v866 = vadd.f32 0.0, %v865
    %v867 = vpop.f32.mrf.mxu0
    %868 = vdwg.mxu0
    %v870 = vsel %vm277, %v457, 0
    %v873 = vsel %vm277, %v521, 0
    %875 = vmatpush.bf16.xpose.msra.mxu0 0
    %876 = vmatpush.bf16.xpose.msra.mxu0 0
    %877 = vmatpush.bf16.xpose.msra.mxu0 0
    %878 = vmatpush.bf16.xpose.msra.mxu0 0
    %879 = vmatpush.bf16.xpose.msra.mxu0 0
    %880 = vmatpush.bf16.xpose.msra.mxu0 0
    %881 = vmatpush.bf16.xpose.msra.mxu0 0
    %882 = vmatpush.bf16.xpose.msra.mxu0 %v873
    %883 = vmatmul.bf16.gmra.mxu0 %v870
    %v884 = vpop.f32.mrf.mxu0
    %v885 = vadd.f32 0.0, %v884
    %v886 = vpop.f32.mrf.mxu0
    %887 = vdwg.mxu0
    %v889 = vsel %vm277, %v458, 0
    %v892 = vsel %vm277, %v522, 0
    %894 = vmatpush.bf16.xpose.msra.mxu0 0
    %895 = vmatpush.bf16.xpose.msra.mxu0 0
    %896 = vmatpush.bf16.xpose.msra.mxu0 0
    %897 = vmatpush.bf16.xpose.msra.mxu0 0
    %898 = vmatpush.bf16.xpose.msra.mxu0 0
    %899 = vmatpush.bf16.xpose.msra.mxu0 0
    %900 = vmatpush.bf16.xpose.msra.mxu0 0
    %901 = vmatpush.bf16.xpose.msra.mxu0 %v892
    %902 = vmatmul.bf16.gmra.mxu0 %v889
    %v903 = vpop.f32.mrf.mxu0
    %v904 = vadd.f32 0.0, %v903
    %v905 = vpop.f32.mrf.mxu0
    %906 = vdwg.mxu0
    %v908 = vsel %vm277, %v459, 0
    %v911 = vsel %vm277, %v523, 0
    %913 = vmatpush.bf16.xpose.msra.mxu0 0
    %914 = vmatpush.bf16.xpose.msra.mxu0 0
    %915 = vmatpush.bf16.xpose.msra.mxu0 0
    %916 = vmatpush.bf16.xpose.msra.mxu0 0
    %917 = vmatpush.bf16.xpose.msra.mxu0 0
    %918 = vmatpush.bf16.xpose.msra.mxu0 0
    %919 = vmatpush.bf16.xpose.msra.mxu0 0
    %920 = vmatpush.bf16.xpose.msra.mxu0 %v911
    %921 = vmatmul.bf16.gmra.mxu0 %v908
    %v922 = vpop.f32.mrf.mxu0
    %v923 = vadd.f32 0.0, %v922
    %v924 = vpop.f32.mrf.mxu0
    %925 = vdwg.mxu0
    %v927 = vsel %vm277, %v460, 0
    %v930 = vsel %vm277, %v524, 0
    %932 = vmatpush.bf16.xpose.msra.mxu0 0
    %933 = vmatpush.bf16.xpose.msra.mxu0 0
    %934 = vmatpush.bf16.xpose.msra.mxu0 0
    %935 = vmatpush.bf16.xpose.msra.mxu0 0
    %936 = vmatpush.bf16.xpose.msra.mxu0 0
    %937 = vmatpush.bf16.xpose.msra.mxu0 0
    %938 = vmatpush.bf16.xpose.msra.mxu0 0
    %939 = vmatpush.bf16.xpose.msra.mxu0 %v930
    %940 = vmatmul.bf16.gmra.mxu0 %v927
    %v941 = vpop.f32.mrf.mxu0
    %v942 = vadd.f32 0.0, %v941
    %v943 = vpop.f32.mrf.mxu0
    %944 = vdwg.mxu0
    %v946 = vsel %vm277, %v461, 0
    %v949 = vsel %vm277, %v525, 0
    %951 = vmatpush.bf16.xpose.msra.mxu0 0
    %952 = vmatpush.bf16.xpose.msra.mxu0 0
    %953 = vmatpush.bf16.xpose.msra.mxu0 0
    %954 = vmatpush.bf16.xpose.msra.mxu0 0
    %955 = vmatpush.bf16.xpose.msra.mxu0 0
    %956 = vmatpush.bf16.xpose.msra.mxu0 0
    %957 = vmatpush.bf16.xpose.msra.mxu0 0
    %958 = vmatpush.bf16.xpose.msra.mxu0 %v949
    %959 = vmatmul.bf16.gmra.mxu0 %v946
    %v960 = vpop.f32.mrf.mxu0
    %v961 = vadd.f32 0.0, %v960
    %v962 = vpop.f32.mrf.mxu0
    %963 = vdwg.mxu0
    %v965 = vsel %vm277, %v462, 0
    %v968 = vsel %vm277, %v526, 0
    %970 = vmatpush.bf16.xpose.msra.mxu0 0
    %971 = vmatpush.bf16.xpose.msra.mxu0 0
    %972 = vmatpush.bf16.xpose.msra.mxu0 0
    %973 = vmatpush.bf16.xpose.msra.mxu0 0
    %974 = vmatpush.bf16.xpose.msra.mxu0 0
    %975 = vmatpush.bf16.xpose.msra.mxu0 0
    %976 = vmatpush.bf16.xpose.msra.mxu0 0
    %977 = vmatpush.bf16.xpose.msra.mxu0 %v968
    %978 = vmatmul.bf16.gmra.mxu0 %v965
    %v979 = vpop.f32.mrf.mxu0
    %v980 = vadd.f32 0.0, %v979
    %v981 = vpop.f32.mrf.mxu0
    %982 = vdwg.mxu0
    %v984 = vsel %vm277, %v463, 0
    %v987 = vsel %vm277, %v527, 0
    %989 = vmatpush.bf16.xpose.msra.mxu0 0
    %990 = vmatpush.bf16.xpose.msra.mxu0 0
    %991 = vmatpush.bf16.xpose.msra.mxu0 0
    %992 = vmatpush.bf16.xpose.msra.mxu0 0
    %993 = vmatpush.bf16.xpose.msra.mxu0 0
    %994 = vmatpush.bf16.xpose.msra.mxu0 0
    %995 = vmatpush.bf16.xpose.msra.mxu0 0
    %996 = vmatpush.bf16.xpose.msra.mxu0 %v987
    %997 = vmatmul.bf16.gmra.mxu0 %v984
    %v998 = vpop.f32.mrf.mxu0
    %v999 = vadd.f32 0.0, %v998
    %v1000 = vpop.f32.mrf.mxu0
    %1001 = vdwg.mxu0
    %v1003 = vsel %vm277, %v464, 0
    %v1006 = vsel %vm277, %v528, 0
    %1008 = vmatpush.bf16.xpose.msra.mxu0 0
    %1009 = vmatpush.bf16.xpose.msra.mxu0 0
    %1010 = vmatpush.bf16.xpose.msra.mxu0 0
    %1011 = vmatpush.bf16.xpose.msra.mxu0 0
    %1012 = vmatpush.bf16.xpose.msra.mxu0 0
    %1013 = vmatpush.bf16.xpose.msra.mxu0 0
    %1014 = vmatpush.bf16.xpose.msra.mxu0 0
    %1015 = vmatpush.bf16.xpose.msra.mxu0 %v1006
    %1016 = vmatmul.bf16.gmra.mxu0 %v1003
    %v1017 = vpop.f32.mrf.mxu0
    %v1018 = vadd.f32 0.0, %v1017
    %v1019 = vpop.f32.mrf.mxu0
    %1020 = vdwg.mxu0
    %v1022 = vsel %vm277, %v465, 0
    %v1025 = vsel %vm277, %v529, 0
    %1027 = vmatpush.bf16.xpose.msra.mxu0 0
    %1028 = vmatpush.bf16.xpose.msra.mxu0 0
    %1029 = vmatpush.bf16.xpose.msra.mxu0 0
    %1030 = vmatpush.bf16.xpose.msra.mxu0 0
    %1031 = vmatpush.bf16.xpose.msra.mxu0 0
    %1032 = vmatpush.bf16.xpose.msra.mxu0 0
    %1033 = vmatpush.bf16.xpose.msra.mxu0 0
    %1034 = vmatpush.bf16.xpose.msra.mxu0 %v1025
    %1035 = vmatmul.bf16.gmra.mxu0 %v1022
    %v1036 = vpop.f32.mrf.mxu0
    %v1037 = vadd.f32 0.0, %v1036
    %v1038 = vpop.f32.mrf.mxu0
    %1039 = vdwg.mxu0
    %v1041 = vsel %vm277, %v466, 0
    %v1044 = vsel %vm277, %v530, 0
    %1046 = vmatpush.bf16.xpose.msra.mxu0 0
    %1047 = vmatpush.bf16.xpose.msra.mxu0 0
    %1048 = vmatpush.bf16.xpose.msra.mxu0 0
    %1049 = vmatpush.bf16.xpose.msra.mxu0 0
    %1050 = vmatpush.bf16.xpose.msra.mxu0 0
    %1051 = vmatpush.bf16.xpose.msra.mxu0 0
    %1052 = vmatpush.bf16.xpose.msra.mxu0 0
    %1053 = vmatpush.bf16.xpose.msra.mxu0 %v1044
    %1054 = vmatmul.bf16.gmra.mxu0 %v1041
    %v1055 = vpop.f32.mrf.mxu0
    %v1056 = vadd.f32 0.0, %v1055
    %v1057 = vpop.f32.mrf.mxu0
    %1058 = vdwg.mxu0
    %v1060 = vsel %vm277, %v467, 0
    %v1063 = vsel %vm277, %v531, 0
    %1065 = vmatpush.bf16.xpose.msra.mxu0 0
    %1066 = vmatpush.bf16.xpose.msra.mxu0 0
    %1067 = vmatpush.bf16.xpose.msra.mxu0 0
    %1068 = vmatpush.bf16.xpose.msra.mxu0 0
    %1069 = vmatpush.bf16.xpose.msra.mxu0 0
    %1070 = vmatpush.bf16.xpose.msra.mxu0 0
    %1071 = vmatpush.bf16.xpose.msra.mxu0 0
    %1072 = vmatpush.bf16.xpose.msra.mxu0 %v1063
    %1073 = vmatmul.bf16.gmra.mxu0 %v1060
    %v1074 = vpop.f32.mrf.mxu0
    %v1075 = vadd.f32 0.0, %v1074
    %v1076 = vpop.f32.mrf.mxu0
    %1077 = vdwg.mxu0
    %v1079 = vsel %vm277, %v468, 0
    %v1082 = vsel %vm277, %v532, 0
    %1084 = vmatpush.bf16.xpose.msra.mxu0 0
    %1085 = vmatpush.bf16.xpose.msra.mxu0 0
    %1086 = vmatpush.bf16.xpose.msra.mxu0 0
    %1087 = vmatpush.bf16.xpose.msra.mxu0 0
    %1088 = vmatpush.bf16.xpose.msra.mxu0 0
    %1089 = vmatpush.bf16.xpose.msra.mxu0 0
    %1090 = vmatpush.bf16.xpose.msra.mxu0 0
    %1091 = vmatpush.bf16.xpose.msra.mxu0 %v1082
    %1092 = vmatmul.bf16.gmra.mxu0 %v1079
    %v1093 = vpop.f32.mrf.mxu0
    %v1094 = vadd.f32 0.0, %v1093
    %v1095 = vpop.f32.mrf.mxu0
    %1096 = vdwg.mxu0
    %v1098 = vsel %vm277, %v469, 0
    %v1101 = vsel %vm277, %v533, 0
    %1103 = vmatpush.bf16.xpose.msra.mxu0 0
    %1104 = vmatpush.bf16.xpose.msra.mxu0 0
    %1105 = vmatpush.bf16.xpose.msra.mxu0 0
    %1106 = vmatpush.bf16.xpose.msra.mxu0 0
    %1107 = vmatpush.bf16.xpose.msra.mxu0 0
    %1108 = vmatpush.bf16.xpose.msra.mxu0 0
    %1109 = vmatpush.bf16.xpose.msra.mxu0 0
    %1110 = vmatpush.bf16.xpose.msra.mxu0 %v1101
    %1111 = vmatmul.bf16.gmra.mxu0 %v1098
    %v1112 = vpop.f32.mrf.mxu0
    %v1113 = vadd.f32 0.0, %v1112
    %v1114 = vpop.f32.mrf.mxu0
    %1115 = vdwg.mxu0
    %v1117 = vsel %vm277, %v470, 0
    %v1120 = vsel %vm277, %v534, 0
    %1122 = vmatpush.bf16.xpose.msra.mxu0 0
    %1123 = vmatpush.bf16.xpose.msra.mxu0 0
    %1124 = vmatpush.bf16.xpose.msra.mxu0 0
    %1125 = vmatpush.bf16.xpose.msra.mxu0 0
    %1126 = vmatpush.bf16.xpose.msra.mxu0 0
    %1127 = vmatpush.bf16.xpose.msra.mxu0 0
    %1128 = vmatpush.bf16.xpose.msra.mxu0 0
    %1129 = vmatpush.bf16.xpose.msra.mxu0 %v1120
    %1130 = vmatmul.bf16.gmra.mxu0 %v1117
    %v1131 = vpop.f32.mrf.mxu0
    %v1132 = vadd.f32 0.0, %v1131
    %v1133 = vpop.f32.mrf.mxu0
    %1134 = vdwg.mxu0
    %v1136 = vsel %vm277, %v471, 0
    %v1139 = vsel %vm277, %v535, 0
    %1141 = vmatpush.bf16.xpose.msra.mxu0 0
    %1142 = vmatpush.bf16.xpose.msra.mxu0 0
    %1143 = vmatpush.bf16.xpose.msra.mxu0 0
    %1144 = vmatpush.bf16.xpose.msra.mxu0 0
    %1145 = vmatpush.bf16.xpose.msra.mxu0 0
    %1146 = vmatpush.bf16.xpose.msra.mxu0 0
    %1147 = vmatpush.bf16.xpose.msra.mxu0 0
    %1148 = vmatpush.bf16.xpose.msra.mxu0 %v1139
    %1149 = vmatmul.bf16.gmra.mxu0 %v1136
    %v1150 = vpop.f32.mrf.mxu0
    %v1151 = vadd.f32 0.0, %v1150
    %v1152 = vpop.f32.mrf.mxu0
    %1153 = vdwg.mxu0
    %v1155 = vsel %vm277, %v472, 0
    %v1158 = vsel %vm277, %v536, 0
    %1160 = vmatpush.bf16.xpose.msra.mxu0 0
    %1161 = vmatpush.bf16.xpose.msra.mxu0 0
    %1162 = vmatpush.bf16.xpose.msra.mxu0 0
    %1163 = vmatpush.bf16.xpose.msra.mxu0 0
    %1164 = vmatpush.bf16.xpose.msra.mxu0 0
    %1165 = vmatpush.bf16.xpose.msra.mxu0 0
    %1166 = vmatpush.bf16.xpose.msra.mxu0 0
    %1167 = vmatpush.bf16.xpose.msra.mxu0 %v1158
    %1168 = vmatmul.bf16.gmra.mxu0 %v1155
    %v1169 = vpop.f32.mrf.mxu0
    %v1170 = vadd.f32 0.0, %v1169
    %v1171 = vpop.f32.mrf.mxu0
    %1172 = vdwg.mxu0
    %v1174 = vsel %vm277, %v473, 0
    %v1177 = vsel %vm277, %v537, 0
    %1179 = vmatpush.bf16.xpose.msra.mxu0 0
    %1180 = vmatpush.bf16.xpose.msra.mxu0 0
    %1181 = vmatpush.bf16.xpose.msra.mxu0 0
    %1182 = vmatpush.bf16.xpose.msra.mxu0 0
    %1183 = vmatpush.bf16.xpose.msra.mxu0 0
    %1184 = vmatpush.bf16.xpose.msra.mxu0 0
    %1185 = vmatpush.bf16.xpose.msra.mxu0 0
    %1186 = vmatpush.bf16.xpose.msra.mxu0 %v1177
    %1187 = vmatmul.bf16.gmra.mxu0 %v1174
    %v1188 = vpop.f32.mrf.mxu0
    %v1189 = vadd.f32 0.0, %v1188
    %v1190 = vpop.f32.mrf.mxu0
    %1191 = vdwg.mxu0
    %v1193 = vsel %vm277, %v474, 0
    %v1196 = vsel %vm277, %v538, 0
    %1198 = vmatpush.bf16.xpose.msra.mxu0 0
    %1199 = vmatpush.bf16.xpose.msra.mxu0 0
    %1200 = vmatpush.bf16.xpose.msra.mxu0 0
    %1201 = vmatpush.bf16.xpose.msra.mxu0 0
    %1202 = vmatpush.bf16.xpose.msra.mxu0 0
    %1203 = vmatpush.bf16.xpose.msra.mxu0 0
    %1204 = vmatpush.bf16.xpose.msra.mxu0 0
    %1205 = vmatpush.bf16.xpose.msra.mxu0 %v1196
    %1206 = vmatmul.bf16.gmra.mxu0 %v1193
    %v1207 = vpop.f32.mrf.mxu0
    %v1208 = vadd.f32 0.0, %v1207
    %v1209 = vpop.f32.mrf.mxu0
    %1210 = vdwg.mxu0
    %vm1211 = vcmask 64512
    %v1212 = vsel %vm1211, %v619, -inf
    %1213 = vmax.xlane.f32.xlu0 %v1212
    %v1214 = vpop.xlane.xlu0 %1213
    %v1215 = vsel %vm1211, %v638, -inf
    %1216 = vmax.xlane.f32.xlu0 %v1215
    %v1217 = vpop.xlane.xlu0 %1216
    %v1218 = vsel %vm1211, %v657, -inf
    %1219 = vmax.xlane.f32.xlu0 %v1218
    %v1220 = vpop.xlane.xlu0 %1219
    %v1221 = vsel %vm1211, %v676, -inf
    %1222 = vmax.xlane.f32.xlu0 %v1221
    %v1223 = vpop.xlane.xlu0 %1222
    %v1224 = vsel %vm1211, %v695, -inf
    %1225 = vmax.xlane.f32.xlu0 %v1224
    %v1226 = vpop.xlane.xlu0 %1225
    %v1227 = vsel %vm1211, %v714, -inf
    %1228 = vmax.xlane.f32.xlu0 %v1227
    %v1229 = vpop.xlane.xlu0 %1228
    %v1230 = vsel %vm1211, %v733, -inf
    %1231 = vmax.xlane.f32.xlu0 %v1230
    %v1232 = vpop.xlane.xlu0 %1231
    %v1233 = vsel %vm1211, %v752, -inf
    %1234 = vmax.xlane.f32.xlu0 %v1233
    %v1235 = vpop.xlane.xlu0 %1234
    %v1236 = vsel %vm1211, %v771, -inf
    %1237 = vmax.xlane.f32.xlu0 %v1236
    %v1238 = vpop.xlane.xlu0 %1237
    %v1239 = vsel %vm1211, %v790, -inf
    %1240 = vmax.xlane.f32.xlu0 %v1239
    %v1241 = vpop.xlane.xlu0 %1240
    %v1242 = vsel %vm1211, %v809, -inf
    %1243 = vmax.xlane.f32.xlu0 %v1242
    %v1244 = vpop.xlane.xlu0 %1243
    %v1245 = vsel %vm1211, %v828, -inf
    %1246 = vmax.xlane.f32.xlu0 %v1245
    %v1247 = vpop.xlane.xlu0 %1246
    %v1248 = vsel %vm1211, %v847, -inf
    %1249 = vmax.xlane.f32.xlu0 %v1248
    %v1250 = vpop.xlane.xlu0 %1249
    %v1251 = vsel %vm1211, %v866, -inf
    %1252 = vmax.xlane.f32.xlu0 %v1251
    %v1253 = vpop.xlane.xlu0 %1252
    %v1254 = vsel %vm1211, %v885, -inf
    %1255 = vmax.xlane.f32.xlu0 %v1254
    %v1256 = vpop.xlane.xlu0 %1255
    %v1257 = vsel %vm1211, %v904, -inf
    %1258 = vmax.xlane.f32.xlu0 %v1257
    %v1259 = vpop.xlane.xlu0 %1258
    %v1260 = vsel %vm1211, %v923, -inf
    %1261 = vmax.xlane.f32.xlu0 %v1260
    %v1262 = vpop.xlane.xlu0 %1261
    %v1263 = vsel %vm1211, %v942, -inf
    %1264 = vmax.xlane.f32.xlu0 %v1263
    %v1265 = vpop.xlane.xlu0 %1264
    %v1266 = vsel %vm1211, %v961, -inf
    %1267 = vmax.xlane.f32.xlu0 %v1266
    %v1268 = vpop.xlane.xlu0 %1267
    %v1269 = vsel %vm1211, %v980, -inf
    %1270 = vmax.xlane.f32.xlu0 %v1269
    %v1271 = vpop.xlane.xlu0 %1270
    %v1272 = vsel %vm1211, %v999, -inf
    %1273 = vmax.xlane.f32.xlu0 %v1272
    %v1274 = vpop.xlane.xlu0 %1273
    %v1275 = vsel %vm1211, %v1018, -inf
    %1276 = vmax.xlane.f32.xlu0 %v1275
    %v1277 = vpop.xlane.xlu0 %1276
    %v1278 = vsel %vm1211, %v1037, -inf
    %1279 = vmax.xlane.f32.xlu0 %v1278
    %v1280 = vpop.xlane.xlu0 %1279
    %v1281 = vsel %vm1211, %v1056, -inf
    %1282 = vmax.xlane.f32.xlu0 %v1281
    %v1283 = vpop.xlane.xlu0 %1282
    %v1284 = vsel %vm1211, %v1075, -inf
    %1285 = vmax.xlane.f32.xlu0 %v1284
    %v1286 = vpop.xlane.xlu0 %1285
    %v1287 = vsel %vm1211, %v1094, -inf
    %1288 = vmax.xlane.f32.xlu0 %v1287
    %v1289 = vpop.xlane.xlu0 %1288
    %v1290 = vsel %vm1211, %v1113, -inf
    %1291 = vmax.xlane.f32.xlu0 %v1290
    %v1292 = vpop.xlane.xlu0 %1291
    %v1293 = vsel %vm1211, %v1132, -inf
    %1294 = vmax.xlane.f32.xlu0 %v1293
    %v1295 = vpop.xlane.xlu0 %1294
    %v1296 = vsel %vm1211, %v1151, -inf
    %1297 = vmax.xlane.f32.xlu0 %v1296
    %v1298 = vpop.xlane.xlu0 %1297
    %v1299 = vsel %vm1211, %v1170, -inf
    %1300 = vmax.xlane.f32.xlu0 %v1299
    %v1301 = vpop.xlane.xlu0 %1300
    %v1302 = vsel %vm1211, %v1189, -inf
    %1303 = vmax.xlane.f32.xlu0 %v1302
    %v1304 = vpop.xlane.xlu0 %1303
    %v1305 = vsel %vm1211, %v1208, -inf
    %1306 = vmax.xlane.f32.xlu0 %v1305
    %v1307 = vpop.xlane.xlu0 %1306
    %v1308 = vsub.f32 %v619, %v1214
    %v1309 = vsub.f32 %v638, %v1217
    %v1310 = vsub.f32 %v657, %v1220
    %v1311 = vsub.f32 %v676, %v1223
    %v1312 = vsub.f32 %v695, %v1226
    %v1313 = vsub.f32 %v714, %v1229
    %v1314 = vsub.f32 %v733, %v1232
    %v1315 = vsub.f32 %v752, %v1235
    %v1316 = vsub.f32 %v771, %v1238
    %v1317 = vsub.f32 %v790, %v1241
    %v1318 = vsub.f32 %v809, %v1244
    %v1319 = vsub.f32 %v828, %v1247
    %v1320 = vsub.f32 %v847, %v1250
    %v1321 = vsub.f32 %v866, %v1253
    %v1322 = vsub.f32 %v885, %v1256
    %v1323 = vsub.f32 %v904, %v1259
    %v1324 = vsub.f32 %v923, %v1262
    %v1325 = vsub.f32 %v942, %v1265
    %v1326 = vsub.f32 %v961, %v1268
    %v1327 = vsub.f32 %v980, %v1271
    %v1328 = vsub.f32 %v999, %v1274
    %v1329 = vsub.f32 %v1018, %v1277
    %v1330 = vsub.f32 %v1037, %v1280
    %v1331 = vsub.f32 %v1056, %v1283
    %v1332 = vsub.f32 %v1075, %v1286
    %v1333 = vsub.f32 %v1094, %v1289
    %v1334 = vsub.f32 %v1113, %v1292
    %v1335 = vsub.f32 %v1132, %v1295
    %v1336 = vsub.f32 %v1151, %v1298
    %v1337 = vsub.f32 %v1170, %v1301
    %v1338 = vsub.f32 %v1189, %v1304
    %v1339 = vsub.f32 %v1208, %v1307
    %v1340 = vmul.f32 %v1308, 1.442695
    %v1341 = vpow.pop %v1340
    %v1342 = vmul.f32 %v1309, 1.442695
    %v1343 = vpow.pop %v1342
    %v1344 = vmul.f32 %v1310, 1.442695
    %v1345 = vpow.pop %v1344
    %v1346 = vmul.f32 %v1311, 1.442695
    %v1347 = vpow.pop %v1346
    %v1348 = vmul.f32 %v1312, 1.442695
    %v1349 = vpow.pop %v1348
    %v1350 = vmul.f32 %v1313, 1.442695
    %v1351 = vpow.pop %v1350
    %v1352 = vmul.f32 %v1314, 1.442695
    %v1353 = vpow.pop %v1352
    %v1354 = vmul.f32 %v1315, 1.442695
    %v1355 = vpow.pop %v1354
    %v1356 = vmul.f32 %v1316, 1.442695
    %v1357 = vpow.pop %v1356
    %v1358 = vmul.f32 %v1317, 1.442695
    %v1359 = vpow.pop %v1358
    %v1360 = vmul.f32 %v1318, 1.442695
    %v1361 = vpow.pop %v1360
    %v1362 = vmul.f32 %v1319, 1.442695
    %v1363 = vpow.pop %v1362
    %v1364 = vmul.f32 %v1320, 1.442695
    %v1365 = vpow.pop %v1364
    %v1366 = vmul.f32 %v1321, 1.442695
    %v1367 = vpow.pop %v1366
    %v1368 = vmul.f32 %v1322, 1.442695
    %v1369 = vpow.pop %v1368
    %v1370 = vmul.f32 %v1323, 1.442695
    %v1371 = vpow.pop %v1370
    %v1372 = vmul.f32 %v1324, 1.442695
    %v1373 = vpow.pop %v1372
    %v1374 = vmul.f32 %v1325, 1.442695
    %v1375 = vpow.pop %v1374
    %v1376 = vmul.f32 %v1326, 1.442695
    %v1377 = vpow.pop %v1376
    %v1378 = vmul.f32 %v1327, 1.442695
    %v1379 = vpow.pop %v1378
    %v1380 = vmul.f32 %v1328, 1.442695
    %v1381 = vpow.pop %v1380
    %v1382 = vmul.f32 %v1329, 1.442695
    %v1383 = vpow.pop %v1382
    %v1384 = vmul.f32 %v1330, 1.442695
    %v1385 = vpow.pop %v1384
    %v1386 = vmul.f32 %v1331, 1.442695
    %v1387 = vpow.pop %v1386
    %v1388 = vmul.f32 %v1332, 1.442695
    %v1389 = vpow.pop %v1388
    %v1390 = vmul.f32 %v1333, 1.442695
    %v1391 = vpow.pop %v1390
    %v1392 = vmul.f32 %v1334, 1.442695
    %v1393 = vpow.pop %v1392
    %v1394 = vmul.f32 %v1335, 1.442695
    %v1395 = vpow.pop %v1394
    %v1396 = vmul.f32 %v1336, 1.442695
    %v1397 = vpow.pop %v1396
    %v1398 = vmul.f32 %v1337, 1.442695
    %v1399 = vpow.pop %v1398
    %v1400 = vmul.f32 %v1338, 1.442695
    %v1401 = vpow.pop %v1400
    %v1402 = vmul.f32 %v1339, 1.442695
    %v1403 = vpow.pop %v1402
    %v1404 = vsel %vm1211, %v1341, 0.0
    %1405 = vadd.xlane.f32.xlu0 %v1404
    %v1406 = vpop.xlane.xlu0 %1405
    %v1407 = vsel %vm1211, %v1343, 0.0
    %1408 = vadd.xlane.f32.xlu0 %v1407
    %v1409 = vpop.xlane.xlu0 %1408
    %v1410 = vsel %vm1211, %v1345, 0.0
    %1411 = vadd.xlane.f32.xlu0 %v1410
    %v1412 = vpop.xlane.xlu0 %1411
    %v1413 = vsel %vm1211, %v1347, 0.0
    %1414 = vadd.xlane.f32.xlu0 %v1413
    %v1415 = vpop.xlane.xlu0 %1414
    %v1416 = vsel %vm1211, %v1349, 0.0
    %1417 = vadd.xlane.f32.xlu0 %v1416
    %v1418 = vpop.xlane.xlu0 %1417
    %v1419 = vsel %vm1211, %v1351, 0.0
    %1420 = vadd.xlane.f32.xlu0 %v1419
    %v1421 = vpop.xlane.xlu0 %1420
    %v1422 = vsel %vm1211, %v1353, 0.0
    %1423 = vadd.xlane.f32.xlu0 %v1422
    %v1424 = vpop.xlane.xlu0 %1423
    %v1425 = vsel %vm1211, %v1355, 0.0
    %1426 = vadd.xlane.f32.xlu0 %v1425
    %v1427 = vpop.xlane.xlu0 %1426
    %v1428 = vsel %vm1211, %v1357, 0.0
    %1429 = vadd.xlane.f32.xlu0 %v1428
    %v1430 = vpop.xlane.xlu0 %1429
    %v1431 = vsel %vm1211, %v1359, 0.0
    %1432 = vadd.xlane.f32.xlu0 %v1431
    %v1433 = vpop.xlane.xlu0 %1432
    %v1434 = vsel %vm1211, %v1361, 0.0
    %1435 = vadd.xlane.f32.xlu0 %v1434
    %v1436 = vpop.xlane.xlu0 %1435
    %v1437 = vsel %vm1211, %v1363, 0.0
    %1438 = vadd.xlane.f32.xlu0 %v1437
    %v1439 = vpop.xlane.xlu0 %1438
    %v1440 = vsel %vm1211, %v1365, 0.0
    %1441 = vadd.xlane.f32.xlu0 %v1440
    %v1442 = vpop.xlane.xlu0 %1441
    %v1443 = vsel %vm1211, %v1367, 0.0
    %1444 = vadd.xlane.f32.xlu0 %v1443
    %v1445 = vpop.xlane.xlu0 %1444
    %v1446 = vsel %vm1211, %v1369, 0.0
    %1447 = vadd.xlane.f32.xlu0 %v1446
    %v1448 = vpop.xlane.xlu0 %1447
    %v1449 = vsel %vm1211, %v1371, 0.0
    %1450 = vadd.xlane.f32.xlu0 %v1449
    %v1451 = vpop.xlane.xlu0 %1450
    %v1452 = vsel %vm1211, %v1373, 0.0
    %1453 = vadd.xlane.f32.xlu0 %v1452
    %v1454 = vpop.xlane.xlu0 %1453
    %v1455 = vsel %vm1211, %v1375, 0.0
    %1456 = vadd.xlane.f32.xlu0 %v1455
    %v1457 = vpop.xlane.xlu0 %1456
    %v1458 = vsel %vm1211, %v1377, 0.0
    %1459 = vadd.xlane.f32.xlu0 %v1458
    %v1460 = vpop.xlane.xlu0 %1459
    %v1461 = vsel %vm1211, %v1379, 0.0
    %1462 = vadd.xlane.f32.xlu0 %v1461
    %v1463 = vpop.xlane.xlu0 %1462
    %v1464 = vsel %vm1211, %v1381, 0.0
    %1465 = vadd.xlane.f32.xlu0 %v1464
    %v1466 = vpop.xlane.xlu0 %1465
    %v1467 = vsel %vm1211, %v1383, 0.0
    %1468 = vadd.xlane.f32.xlu0 %v1467
    %v1469 = vpop.xlane.xlu0 %1468
    %v1470 = vsel %vm1211, %v1385, 0.0
    %1471 = vadd.xlane.f32.xlu0 %v1470
    %v1472 = vpop.xlane.xlu0 %1471
    %v1473 = vsel %vm1211, %v1387, 0.0
    %1474 = vadd.xlane.f32.xlu0 %v1473
    %v1475 = vpop.xlane.xlu0 %1474
    %v1476 = vsel %vm1211, %v1389, 0.0
    %1477 = vadd.xlane.f32.xlu0 %v1476
    %v1478 = vpop.xlane.xlu0 %1477
    %v1479 = vsel %vm1211, %v1391, 0.0
    %1480 = vadd.xlane.f32.xlu0 %v1479
    %v1481 = vpop.xlane.xlu0 %1480
    %v1482 = vsel %vm1211, %v1393, 0.0
    %1483 = vadd.xlane.f32.xlu0 %v1482
    %v1484 = vpop.xlane.xlu0 %1483
    %v1485 = vsel %vm1211, %v1395, 0.0
    %1486 = vadd.xlane.f32.xlu0 %v1485
    %v1487 = vpop.xlane.xlu0 %1486
    %v1488 = vsel %vm1211, %v1397, 0.0
    %1489 = vadd.xlane.f32.xlu0 %v1488
    %v1490 = vpop.xlane.xlu0 %1489
    %v1491 = vsel %vm1211, %v1399, 0.0
    %1492 = vadd.xlane.f32.xlu0 %v1491
    %v1493 = vpop.xlane.xlu0 %1492
    %v1494 = vsel %vm1211, %v1401, 0.0
    %1495 = vadd.xlane.f32.xlu0 %v1494
    %v1496 = vpop.xlane.xlu0 %1495
    %v1497 = vsel %vm1211, %v1403, 0.0
    %1498 = vadd.xlane.f32.xlu0 %v1497
    %v1499 = vpop.xlane.xlu0 %1498
    %v1500 = vrcp.pop %v1406
    %v1501 = vrcp.pop %v1409
    %v1502 = vrcp.pop %v1412
    %v1503 = vrcp.pop %v1415
    %v1504 = vrcp.pop %v1418
    %v1505 = vrcp.pop %v1421
    %v1506 = vrcp.pop %v1424
    %v1507 = vrcp.pop %v1427
    %v1508 = vrcp.pop %v1430
    %v1509 = vrcp.pop %v1433
    %v1510 = vrcp.pop %v1436
    %v1511 = vrcp.pop %v1439
    %v1512 = vrcp.pop %v1442
    %v1513 = vrcp.pop %v1445
    %v1514 = vrcp.pop %v1448
    %v1515 = vrcp.pop %v1451
    %v1516 = vrcp.pop %v1454
    %v1517 = vrcp.pop %v1457
    %v1518 = vrcp.pop %v1460
    %v1519 = vrcp.pop %v1463
    %v1520 = vrcp.pop %v1466
    %v1521 = vrcp.pop %v1469
    %v1522 = vrcp.pop %v1472
    %v1523 = vrcp.pop %v1475
    %v1524 = vrcp.pop %v1478
    %v1525 = vrcp.pop %v1481
    %v1526 = vrcp.pop %v1484
    %v1527 = vrcp.pop %v1487
    %v1528 = vrcp.pop %v1490
    %v1529 = vrcp.pop %v1493
    %v1530 = vrcp.pop %v1496
    %v1531 = vrcp.pop %v1499
    %v1532 = vmul.f32 %v1341, %v1500
    %v1533 = vmul.f32 %v1343, %v1501
    %v1534 = vmul.f32 %v1345, %v1502
    %v1535 = vmul.f32 %v1347, %v1503
    %v1536 = vmul.f32 %v1349, %v1504
    %v1537 = vmul.f32 %v1351, %v1505
    %v1538 = vmul.f32 %v1353, %v1506
    %v1539 = vmul.f32 %v1355, %v1507
    %v1540 = vmul.f32 %v1357, %v1508
    %v1541 = vmul.f32 %v1359, %v1509
    %v1542 = vmul.f32 %v1361, %v1510
    %v1543 = vmul.f32 %v1363, %v1511
    %v1544 = vmul.f32 %v1365, %v1512
    %v1545 = vmul.f32 %v1367, %v1513
    %v1546 = vmul.f32 %v1369, %v1514
    %v1547 = vmul.f32 %v1371, %v1515
    %v1548 = vmul.f32 %v1373, %v1516
    %v1549 = vmul.f32 %v1375, %v1517
    %v1550 = vmul.f32 %v1377, %v1518
    %v1551 = vmul.f32 %v1379, %v1519
    %v1552 = vmul.f32 %v1381, %v1520
    %v1553 = vmul.f32 %v1383, %v1521
    %v1554 = vmul.f32 %v1385, %v1522
    %v1555 = vmul.f32 %v1387, %v1523
    %v1556 = vmul.f32 %v1389, %v1524
    %v1557 = vmul.f32 %v1391, %v1525
    %v1558 = vmul.f32 %v1393, %v1526
    %v1559 = vmul.f32 %v1395, %v1527
    %v1560 = vmul.f32 %v1397, %v1528
    %v1561 = vmul.f32 %v1399, %v1529
    %v1562 = vmul.f32 %v1401, %v1530
    %v1563 = vmul.f32 %v1403, %v1531
    %v1564 = vpack.c.bf16 %v1532, %v1532
    %v1565 = vpack.c.bf16 %v1533, %v1533
    %v1566 = vpack.c.bf16 %v1534, %v1534
    %v1567 = vpack.c.bf16 %v1535, %v1535
    %v1568 = vpack.c.bf16 %v1536, %v1536
    %v1569 = vpack.c.bf16 %v1537, %v1537
    %v1570 = vpack.c.bf16 %v1538, %v1538
    %v1571 = vpack.c.bf16 %v1539, %v1539
    %v1572 = vpack.c.bf16 %v1540, %v1540
    %v1573 = vpack.c.bf16 %v1541, %v1541
    %v1574 = vpack.c.bf16 %v1542, %v1542
    %v1575 = vpack.c.bf16 %v1543, %v1543
    %v1576 = vpack.c.bf16 %v1544, %v1544
    %v1577 = vpack.c.bf16 %v1545, %v1545
    %v1578 = vpack.c.bf16 %v1546, %v1546
    %v1579 = vpack.c.bf16 %v1547, %v1547
    %v1580 = vpack.c.bf16 %v1548, %v1548
    %v1581 = vpack.c.bf16 %v1549, %v1549
    %v1582 = vpack.c.bf16 %v1550, %v1550
    %v1583 = vpack.c.bf16 %v1551, %v1551
    %v1584 = vpack.c.bf16 %v1552, %v1552
    %v1585 = vpack.c.bf16 %v1553, %v1553
    %v1586 = vpack.c.bf16 %v1554, %v1554
    %v1587 = vpack.c.bf16 %v1555, %v1555
    %v1588 = vpack.c.bf16 %v1556, %v1556
    %v1589 = vpack.c.bf16 %v1557, %v1557
    %v1590 = vpack.c.bf16 %v1558, %v1558
    %v1591 = vpack.c.bf16 %v1559, %v1559
    %v1592 = vpack.c.bf16 %v1560, %v1560
    %v1593 = vpack.c.bf16 %v1561, %v1561
    %v1594 = vpack.c.bf16 %v1562, %v1562
    %v1595 = vpack.c.bf16 %v1563, %v1563
    %v1597 = vsel %vm1211, %v1564, 0
    %vm1599 = vcmask 1043456
    %v1601 = vsel %vm1599, %v571, 0
    %1603 = vmatpush.bf16.msra.mxu0 0
    %1604 = vmatpush.bf16.msra.mxu0 0
    %1605 = vmatpush.bf16.msra.mxu0 0
    %1606 = vmatpush.bf16.msra.mxu0 0
    %1607 = vmatpush.bf16.msra.mxu0 0
    %1608 = vmatpush.bf16.msra.mxu0 0
    %1609 = vmatpush.bf16.msra.mxu0 0
    %1610 = vmatpush.bf16.msra.mxu0 %v1601
    %1611 = vmatmul.bf16.gmra.mxu0 %v1597
    %v1612 = vpop.f32.mrf.mxu0
    %v1613 = vadd.f32 0.0, %v1612
    %v1614 = vpop.f32.mrf.mxu0
    %1615 = vdwg.mxu0
    %v1617 = vsel %vm1211, %v1565, 0
    %v1620 = vsel %vm1599, %v572, 0
    %1622 = vmatpush.bf16.msra.mxu0 0
    %1623 = vmatpush.bf16.msra.mxu0 0
    %1624 = vmatpush.bf16.msra.mxu0 0
    %1625 = vmatpush.bf16.msra.mxu0 0
    %1626 = vmatpush.bf16.msra.mxu0 0
    %1627 = vmatpush.bf16.msra.mxu0 0
    %1628 = vmatpush.bf16.msra.mxu0 0
    %1629 = vmatpush.bf16.msra.mxu0 %v1620
    %1630 = vmatmul.bf16.gmra.mxu0 %v1617
    %v1631 = vpop.f32.mrf.mxu0
    %v1632 = vadd.f32 0.0, %v1631
    %v1633 = vpop.f32.mrf.mxu0
    %1634 = vdwg.mxu0
    %v1636 = vsel %vm1211, %v1566, 0
    %v1639 = vsel %vm1599, %v573, 0
    %1641 = vmatpush.bf16.msra.mxu0 0
    %1642 = vmatpush.bf16.msra.mxu0 0
    %1643 = vmatpush.bf16.msra.mxu0 0
    %1644 = vmatpush.bf16.msra.mxu0 0
    %1645 = vmatpush.bf16.msra.mxu0 0
    %1646 = vmatpush.bf16.msra.mxu0 0
    %1647 = vmatpush.bf16.msra.mxu0 0
    %1648 = vmatpush.bf16.msra.mxu0 %v1639
    %1649 = vmatmul.bf16.gmra.mxu0 %v1636
    %v1650 = vpop.f32.mrf.mxu0
    %v1651 = vadd.f32 0.0, %v1650
    %v1652 = vpop.f32.mrf.mxu0
    %1653 = vdwg.mxu0
    %v1655 = vsel %vm1211, %v1567, 0
    %v1658 = vsel %vm1599, %v574, 0
    %1660 = vmatpush.bf16.msra.mxu0 0
    %1661 = vmatpush.bf16.msra.mxu0 0
    %1662 = vmatpush.bf16.msra.mxu0 0
    %1663 = vmatpush.bf16.msra.mxu0 0
    %1664 = vmatpush.bf16.msra.mxu0 0
    %1665 = vmatpush.bf16.msra.mxu0 0
    %1666 = vmatpush.bf16.msra.mxu0 0
    %1667 = vmatpush.bf16.msra.mxu0 %v1658
    %1668 = vmatmul.bf16.gmra.mxu0 %v1655
    %v1669 = vpop.f32.mrf.mxu0
    %v1670 = vadd.f32 0.0, %v1669
    %v1671 = vpop.f32.mrf.mxu0
    %1672 = vdwg.mxu0
    %v1674 = vsel %vm1211, %v1568, 0
    %v1677 = vsel %vm1599, %v575, 0
    %1679 = vmatpush.bf16.msra.mxu0 0
    %1680 = vmatpush.bf16.msra.mxu0 0
    %1681 = vmatpush.bf16.msra.mxu0 0
    %1682 = vmatpush.bf16.msra.mxu0 0
    %1683 = vmatpush.bf16.msra.mxu0 0
    %1684 = vmatpush.bf16.msra.mxu0 0
    %1685 = vmatpush.bf16.msra.mxu0 0
    %1686 = vmatpush.bf16.msra.mxu0 %v1677
    %1687 = vmatmul.bf16.gmra.mxu0 %v1674
    %v1688 = vpop.f32.mrf.mxu0
    %v1689 = vadd.f32 0.0, %v1688
    %v1690 = vpop.f32.mrf.mxu0
    %1691 = vdwg.mxu0
    %v1693 = vsel %vm1211, %v1569, 0
    %v1696 = vsel %vm1599, %v576, 0
    %1698 = vmatpush.bf16.msra.mxu0 0
    %1699 = vmatpush.bf16.msra.mxu0 0
    %1700 = vmatpush.bf16.msra.mxu0 0
    %1701 = vmatpush.bf16.msra.mxu0 0
    %1702 = vmatpush.bf16.msra.mxu0 0
    %1703 = vmatpush.bf16.msra.mxu0 0
    %1704 = vmatpush.bf16.msra.mxu0 0
    %1705 = vmatpush.bf16.msra.mxu0 %v1696
    %1706 = vmatmul.bf16.gmra.mxu0 %v1693
    %v1707 = vpop.f32.mrf.mxu0
    %v1708 = vadd.f32 0.0, %v1707
    %v1709 = vpop.f32.mrf.mxu0
    %1710 = vdwg.mxu0
    %v1712 = vsel %vm1211, %v1570, 0
    %v1715 = vsel %vm1599, %v577, 0
    %1717 = vmatpush.bf16.msra.mxu0 0
    %1718 = vmatpush.bf16.msra.mxu0 0
    %1719 = vmatpush.bf16.msra.mxu0 0
    %1720 = vmatpush.bf16.msra.mxu0 0
    %1721 = vmatpush.bf16.msra.mxu0 0
    %1722 = vmatpush.bf16.msra.mxu0 0
    %1723 = vmatpush.bf16.msra.mxu0 0
    %1724 = vmatpush.bf16.msra.mxu0 %v1715
    %1725 = vmatmul.bf16.gmra.mxu0 %v1712
    %v1726 = vpop.f32.mrf.mxu0
    %v1727 = vadd.f32 0.0, %v1726
    %v1728 = vpop.f32.mrf.mxu0
    %1729 = vdwg.mxu0
    %v1731 = vsel %vm1211, %v1571, 0
    %v1734 = vsel %vm1599, %v578, 0
    %1736 = vmatpush.bf16.msra.mxu0 0
    %1737 = vmatpush.bf16.msra.mxu0 0
    %1738 = vmatpush.bf16.msra.mxu0 0
    %1739 = vmatpush.bf16.msra.mxu0 0
    %1740 = vmatpush.bf16.msra.mxu0 0
    %1741 = vmatpush.bf16.msra.mxu0 0
    %1742 = vmatpush.bf16.msra.mxu0 0
    %1743 = vmatpush.bf16.msra.mxu0 %v1734
    %1744 = vmatmul.bf16.gmra.mxu0 %v1731
    %v1745 = vpop.f32.mrf.mxu0
    %v1746 = vadd.f32 0.0, %v1745
    %v1747 = vpop.f32.mrf.mxu0
    %1748 = vdwg.mxu0
    %v1750 = vsel %vm1211, %v1572, 0
    %v1753 = vsel %vm1599, %v579, 0
    %1755 = vmatpush.bf16.msra.mxu0 0
    %1756 = vmatpush.bf16.msra.mxu0 0
    %1757 = vmatpush.bf16.msra.mxu0 0
    %1758 = vmatpush.bf16.msra.mxu0 0
    %1759 = vmatpush.bf16.msra.mxu0 0
    %1760 = vmatpush.bf16.msra.mxu0 0
    %1761 = vmatpush.bf16.msra.mxu0 0
    %1762 = vmatpush.bf16.msra.mxu0 %v1753
    %1763 = vmatmul.bf16.gmra.mxu0 %v1750
    %v1764 = vpop.f32.mrf.mxu0
    %v1765 = vadd.f32 0.0, %v1764
    %v1766 = vpop.f32.mrf.mxu0
    %1767 = vdwg.mxu0
    %v1769 = vsel %vm1211, %v1573, 0
    %v1772 = vsel %vm1599, %v580, 0
    %1774 = vmatpush.bf16.msra.mxu0 0
    %1775 = vmatpush.bf16.msra.mxu0 0
    %1776 = vmatpush.bf16.msra.mxu0 0
    %1777 = vmatpush.bf16.msra.mxu0 0
    %1778 = vmatpush.bf16.msra.mxu0 0
    %1779 = vmatpush.bf16.msra.mxu0 0
    %1780 = vmatpush.bf16.msra.mxu0 0
    %1781 = vmatpush.bf16.msra.mxu0 %v1772
    %1782 = vmatmul.bf16.gmra.mxu0 %v1769
    %v1783 = vpop.f32.mrf.mxu0
    %v1784 = vadd.f32 0.0, %v1783
    %v1785 = vpop.f32.mrf.mxu0
    %1786 = vdwg.mxu0
    %v1788 = vsel %vm1211, %v1574, 0
    %v1791 = vsel %vm1599, %v581, 0
    %1793 = vmatpush.bf16.msra.mxu0 0
    %1794 = vmatpush.bf16.msra.mxu0 0
    %1795 = vmatpush.bf16.msra.mxu0 0
    %1796 = vmatpush.bf16.msra.mxu0 0
    %1797 = vmatpush.bf16.msra.mxu0 0
    %1798 = vmatpush.bf16.msra.mxu0 0
    %1799 = vmatpush.bf16.msra.mxu0 0
    %1800 = vmatpush.bf16.msra.mxu0 %v1791
    %1801 = vmatmul.bf16.gmra.mxu0 %v1788
    %v1802 = vpop.f32.mrf.mxu0
    %v1803 = vadd.f32 0.0, %v1802
    %v1804 = vpop.f32.mrf.mxu0
    %1805 = vdwg.mxu0
    %v1807 = vsel %vm1211, %v1575, 0
    %v1810 = vsel %vm1599, %v582, 0
    %1812 = vmatpush.bf16.msra.mxu0 0
    %1813 = vmatpush.bf16.msra.mxu0 0
    %1814 = vmatpush.bf16.msra.mxu0 0
    %1815 = vmatpush.bf16.msra.mxu0 0
    %1816 = vmatpush.bf16.msra.mxu0 0
    %1817 = vmatpush.bf16.msra.mxu0 0
    %1818 = vmatpush.bf16.msra.mxu0 0
    %1819 = vmatpush.bf16.msra.mxu0 %v1810
    %1820 = vmatmul.bf16.gmra.mxu0 %v1807
    %v1821 = vpop.f32.mrf.mxu0
    %v1822 = vadd.f32 0.0, %v1821
    %v1823 = vpop.f32.mrf.mxu0
    %1824 = vdwg.mxu0
    %v1826 = vsel %vm1211, %v1576, 0
    %v1829 = vsel %vm1599, %v583, 0
    %1831 = vmatpush.bf16.msra.mxu0 0
    %1832 = vmatpush.bf16.msra.mxu0 0
    %1833 = vmatpush.bf16.msra.mxu0 0
    %1834 = vmatpush.bf16.msra.mxu0 0
    %1835 = vmatpush.bf16.msra.mxu0 0
    %1836 = vmatpush.bf16.msra.mxu0 0
    %1837 = vmatpush.bf16.msra.mxu0 0
    %1838 = vmatpush.bf16.msra.mxu0 %v1829
    %1839 = vmatmul.bf16.gmra.mxu0 %v1826
    %v1840 = vpop.f32.mrf.mxu0
    %v1841 = vadd.f32 0.0, %v1840
    %v1842 = vpop.f32.mrf.mxu0
    %1843 = vdwg.mxu0
    %v1845 = vsel %vm1211, %v1577, 0
    %v1848 = vsel %vm1599, %v584, 0
    %1850 = vmatpush.bf16.msra.mxu0 0
    %1851 = vmatpush.bf16.msra.mxu0 0
    %1852 = vmatpush.bf16.msra.mxu0 0
    %1853 = vmatpush.bf16.msra.mxu0 0
    %1854 = vmatpush.bf16.msra.mxu0 0
    %1855 = vmatpush.bf16.msra.mxu0 0
    %1856 = vmatpush.bf16.msra.mxu0 0
    %1857 = vmatpush.bf16.msra.mxu0 %v1848
    %1858 = vmatmul.bf16.gmra.mxu0 %v1845
    %v1859 = vpop.f32.mrf.mxu0
    %v1860 = vadd.f32 0.0, %v1859
    %v1861 = vpop.f32.mrf.mxu0
    %1862 = vdwg.mxu0
    %v1864 = vsel %vm1211, %v1578, 0
    %v1867 = vsel %vm1599, %v585, 0
    %1869 = vmatpush.bf16.msra.mxu0 0
    %1870 = vmatpush.bf16.msra.mxu0 0
    %1871 = vmatpush.bf16.msra.mxu0 0
    %1872 = vmatpush.bf16.msra.mxu0 0
    %1873 = vmatpush.bf16.msra.mxu0 0
    %1874 = vmatpush.bf16.msra.mxu0 0
    %1875 = vmatpush.bf16.msra.mxu0 0
    %1876 = vmatpush.bf16.msra.mxu0 %v1867
    %1877 = vmatmul.bf16.gmra.mxu0 %v1864
    %v1878 = vpop.f32.mrf.mxu0
    %v1879 = vadd.f32 0.0, %v1878
    %v1880 = vpop.f32.mrf.mxu0
    %1881 = vdwg.mxu0
    %v1883 = vsel %vm1211, %v1579, 0
    %v1886 = vsel %vm1599, %v586, 0
    %1888 = vmatpush.bf16.msra.mxu0 0
    %1889 = vmatpush.bf16.msra.mxu0 0
    %1890 = vmatpush.bf16.msra.mxu0 0
    %1891 = vmatpush.bf16.msra.mxu0 0
    %1892 = vmatpush.bf16.msra.mxu0 0
    %1893 = vmatpush.bf16.msra.mxu0 0
    %1894 = vmatpush.bf16.msra.mxu0 0
    %1895 = vmatpush.bf16.msra.mxu0 %v1886
    %1896 = vmatmul.bf16.gmra.mxu0 %v1883
    %v1897 = vpop.f32.mrf.mxu0
    %v1898 = vadd.f32 0.0, %v1897
    %v1899 = vpop.f32.mrf.mxu0
    %1900 = vdwg.mxu0
    %v1902 = vsel %vm1211, %v1580, 0
    %v1905 = vsel %vm1599, %v587, 0
    %1907 = vmatpush.bf16.msra.mxu0 0
    %1908 = vmatpush.bf16.msra.mxu0 0
    %1909 = vmatpush.bf16.msra.mxu0 0
    %1910 = vmatpush.bf16.msra.mxu0 0
    %1911 = vmatpush.bf16.msra.mxu0 0
    %1912 = vmatpush.bf16.msra.mxu0 0
    %1913 = vmatpush.bf16.msra.mxu0 0
    %1914 = vmatpush.bf16.msra.mxu0 %v1905
    %1915 = vmatmul.bf16.gmra.mxu0 %v1902
    %v1916 = vpop.f32.mrf.mxu0
    %v1917 = vadd.f32 0.0, %v1916
    %v1918 = vpop.f32.mrf.mxu0
    %1919 = vdwg.mxu0
    %v1921 = vsel %vm1211, %v1581, 0
    %v1924 = vsel %vm1599, %v588, 0
    %1926 = vmatpush.bf16.msra.mxu0 0
    %1927 = vmatpush.bf16.msra.mxu0 0
    %1928 = vmatpush.bf16.msra.mxu0 0
    %1929 = vmatpush.bf16.msra.mxu0 0
    %1930 = vmatpush.bf16.msra.mxu0 0
    %1931 = vmatpush.bf16.msra.mxu0 0
    %1932 = vmatpush.bf16.msra.mxu0 0
    %1933 = vmatpush.bf16.msra.mxu0 %v1924
    %1934 = vmatmul.bf16.gmra.mxu0 %v1921
    %v1935 = vpop.f32.mrf.mxu0
    %v1936 = vadd.f32 0.0, %v1935
    %v1937 = vpop.f32.mrf.mxu0
    %1938 = vdwg.mxu0
    %v1940 = vsel %vm1211, %v1582, 0
    %v1943 = vsel %vm1599, %v589, 0
    %1945 = vmatpush.bf16.msra.mxu0 0
    %1946 = vmatpush.bf16.msra.mxu0 0
    %1947 = vmatpush.bf16.msra.mxu0 0
    %1948 = vmatpush.bf16.msra.mxu0 0
    %1949 = vmatpush.bf16.msra.mxu0 0
    %1950 = vmatpush.bf16.msra.mxu0 0
    %1951 = vmatpush.bf16.msra.mxu0 0
    %1952 = vmatpush.bf16.msra.mxu0 %v1943
    %1953 = vmatmul.bf16.gmra.mxu0 %v1940
    %v1954 = vpop.f32.mrf.mxu0
    %v1955 = vadd.f32 0.0, %v1954
    %v1956 = vpop.f32.mrf.mxu0
    %1957 = vdwg.mxu0
    %v1959 = vsel %vm1211, %v1583, 0
    %v1962 = vsel %vm1599, %v590, 0
    %1964 = vmatpush.bf16.msra.mxu0 0
    %1965 = vmatpush.bf16.msra.mxu0 0
    %1966 = vmatpush.bf16.msra.mxu0 0
    %1967 = vmatpush.bf16.msra.mxu0 0
    %1968 = vmatpush.bf16.msra.mxu0 0
    %1969 = vmatpush.bf16.msra.mxu0 0
    %1970 = vmatpush.bf16.msra.mxu0 0
    %1971 = vmatpush.bf16.msra.mxu0 %v1962
    %1972 = vmatmul.bf16.gmra.mxu0 %v1959
    %v1973 = vpop.f32.mrf.mxu0
    %v1974 = vadd.f32 0.0, %v1973
    %v1975 = vpop.f32.mrf.mxu0
    %1976 = vdwg.mxu0
    %v1978 = vsel %vm1211, %v1584, 0
    %v1981 = vsel %vm1599, %v591, 0
    %1983 = vmatpush.bf16.msra.mxu0 0
    %1984 = vmatpush.bf16.msra.mxu0 0
    %1985 = vmatpush.bf16.msra.mxu0 0
    %1986 = vmatpush.bf16.msra.mxu0 0
    %1987 = vmatpush.bf16.msra.mxu0 0
    %1988 = vmatpush.bf16.msra.mxu0 0
    %1989 = vmatpush.bf16.msra.mxu0 0
    %1990 = vmatpush.bf16.msra.mxu0 %v1981
    %1991 = vmatmul.bf16.gmra.mxu0 %v1978
    %v1992 = vpop.f32.mrf.mxu0
    %v1993 = vadd.f32 0.0, %v1992
    %v1994 = vpop.f32.mrf.mxu0
    %1995 = vdwg.mxu0
    %v1997 = vsel %vm1211, %v1585, 0
    %v2000 = vsel %vm1599, %v592, 0
    %2002 = vmatpush.bf16.msra.mxu0 0
    %2003 = vmatpush.bf16.msra.mxu0 0
    %2004 = vmatpush.bf16.msra.mxu0 0
    %2005 = vmatpush.bf16.msra.mxu0 0
    %2006 = vmatpush.bf16.msra.mxu0 0
    %2007 = vmatpush.bf16.msra.mxu0 0
    %2008 = vmatpush.bf16.msra.mxu0 0
    %2009 = vmatpush.bf16.msra.mxu0 %v2000
    %2010 = vmatmul.bf16.gmra.mxu0 %v1997
    %v2011 = vpop.f32.mrf.mxu0
    %v2012 = vadd.f32 0.0, %v2011
    %v2013 = vpop.f32.mrf.mxu0
    %2014 = vdwg.mxu0
    %v2016 = vsel %vm1211, %v1586, 0
    %v2019 = vsel %vm1599, %v593, 0
    %2021 = vmatpush.bf16.msra.mxu0 0
    %2022 = vmatpush.bf16.msra.mxu0 0
    %2023 = vmatpush.bf16.msra.mxu0 0
    %2024 = vmatpush.bf16.msra.mxu0 0
    %2025 = vmatpush.bf16.msra.mxu0 0
    %2026 = vmatpush.bf16.msra.mxu0 0
    %2027 = vmatpush.bf16.msra.mxu0 0
    %2028 = vmatpush.bf16.msra.mxu0 %v2019
    %2029 = vmatmul.bf16.gmra.mxu0 %v2016
    %v2030 = vpop.f32.mrf.mxu0
    %v2031 = vadd.f32 0.0, %v2030
    %v2032 = vpop.f32.mrf.mxu0
    %2033 = vdwg.mxu0
    %v2035 = vsel %vm1211, %v1587, 0
    %v2038 = vsel %vm1599, %v594, 0
    %2040 = vmatpush.bf16.msra.mxu0 0
    %2041 = vmatpush.bf16.msra.mxu0 0
    %2042 = vmatpush.bf16.msra.mxu0 0
    %2043 = vmatpush.bf16.msra.mxu0 0
    %2044 = vmatpush.bf16.msra.mxu0 0
    %2045 = vmatpush.bf16.msra.mxu0 0
    %2046 = vmatpush.bf16.msra.mxu0 0
    %2047 = vmatpush.bf16.msra.mxu0 %v2038
    %2048 = vmatmul.bf16.gmra.mxu0 %v2035
    %v2049 = vpop.f32.mrf.mxu0
    %v2050 = vadd.f32 0.0, %v2049
    %v2051 = vpop.f32.mrf.mxu0
    %2052 = vdwg.mxu0
    %v2054 = vsel %vm1211, %v1588, 0
    %v2057 = vsel %vm1599, %v595, 0
    %2059 = vmatpush.bf16.msra.mxu0 0
    %2060 = vmatpush.bf16.msra.mxu0 0
    %2061 = vmatpush.bf16.msra.mxu0 0
    %2062 = vmatpush.bf16.msra.mxu0 0
    %2063 = vmatpush.bf16.msra.mxu0 0
    %2064 = vmatpush.bf16.msra.mxu0 0
    %2065 = vmatpush.bf16.msra.mxu0 0
    %2066 = vmatpush.bf16.msra.mxu0 %v2057
    %2067 = vmatmul.bf16.gmra.mxu0 %v2054
    %v2068 = vpop.f32.mrf.mxu0
    %v2069 = vadd.f32 0.0, %v2068
    %v2070 = vpop.f32.mrf.mxu0
    %2071 = vdwg.mxu0
    %v2073 = vsel %vm1211, %v1589, 0
    %v2076 = vsel %vm1599, %v596, 0
    %2078 = vmatpush.bf16.msra.mxu0 0
    %2079 = vmatpush.bf16.msra.mxu0 0
    %2080 = vmatpush.bf16.msra.mxu0 0
    %2081 = vmatpush.bf16.msra.mxu0 0
    %2082 = vmatpush.bf16.msra.mxu0 0
    %2083 = vmatpush.bf16.msra.mxu0 0
    %2084 = vmatpush.bf16.msra.mxu0 0
    %2085 = vmatpush.bf16.msra.mxu0 %v2076
    %2086 = vmatmul.bf16.gmra.mxu0 %v2073
    %v2087 = vpop.f32.mrf.mxu0
    %v2088 = vadd.f32 0.0, %v2087
    %v2089 = vpop.f32.mrf.mxu0
    %2090 = vdwg.mxu0
    %v2092 = vsel %vm1211, %v1590, 0
    %v2095 = vsel %vm1599, %v597, 0
    %2097 = vmatpush.bf16.msra.mxu0 0
    %2098 = vmatpush.bf16.msra.mxu0 0
    %2099 = vmatpush.bf16.msra.mxu0 0
    %2100 = vmatpush.bf16.msra.mxu0 0
    %2101 = vmatpush.bf16.msra.mxu0 0
    %2102 = vmatpush.bf16.msra.mxu0 0
    %2103 = vmatpush.bf16.msra.mxu0 0
    %2104 = vmatpush.bf16.msra.mxu0 %v2095
    %2105 = vmatmul.bf16.gmra.mxu0 %v2092
    %v2106 = vpop.f32.mrf.mxu0
    %v2107 = vadd.f32 0.0, %v2106
    %v2108 = vpop.f32.mrf.mxu0
    %2109 = vdwg.mxu0
    %v2111 = vsel %vm1211, %v1591, 0
    %v2114 = vsel %vm1599, %v598, 0
    %2116 = vmatpush.bf16.msra.mxu0 0
    %2117 = vmatpush.bf16.msra.mxu0 0
    %2118 = vmatpush.bf16.msra.mxu0 0
    %2119 = vmatpush.bf16.msra.mxu0 0
    %2120 = vmatpush.bf16.msra.mxu0 0
    %2121 = vmatpush.bf16.msra.mxu0 0
    %2122 = vmatpush.bf16.msra.mxu0 0
    %2123 = vmatpush.bf16.msra.mxu0 %v2114
    %2124 = vmatmul.bf16.gmra.mxu0 %v2111
    %v2125 = vpop.f32.mrf.mxu0
    %v2126 = vadd.f32 0.0, %v2125
    %v2127 = vpop.f32.mrf.mxu0
    %2128 = vdwg.mxu0
    %v2130 = vsel %vm1211, %v1592, 0
    %v2133 = vsel %vm1599, %v599, 0
    %2135 = vmatpush.bf16.msra.mxu0 0
    %2136 = vmatpush.bf16.msra.mxu0 0
    %2137 = vmatpush.bf16.msra.mxu0 0
    %2138 = vmatpush.bf16.msra.mxu0 0
    %2139 = vmatpush.bf16.msra.mxu0 0
    %2140 = vmatpush.bf16.msra.mxu0 0
    %2141 = vmatpush.bf16.msra.mxu0 0
    %2142 = vmatpush.bf16.msra.mxu0 %v2133
    %2143 = vmatmul.bf16.gmra.mxu0 %v2130
    %v2144 = vpop.f32.mrf.mxu0
    %v2145 = vadd.f32 0.0, %v2144
    %v2146 = vpop.f32.mrf.mxu0
    %2147 = vdwg.mxu0
    %v2149 = vsel %vm1211, %v1593, 0
    %v2152 = vsel %vm1599, %v600, 0
    %2154 = vmatpush.bf16.msra.mxu0 0
    %2155 = vmatpush.bf16.msra.mxu0 0
    %2156 = vmatpush.bf16.msra.mxu0 0
    %2157 = vmatpush.bf16.msra.mxu0 0
    %2158 = vmatpush.bf16.msra.mxu0 0
    %2159 = vmatpush.bf16.msra.mxu0 0
    %2160 = vmatpush.bf16.msra.mxu0 0
    %2161 = vmatpush.bf16.msra.mxu0 %v2152
    %2162 = vmatmul.bf16.gmra.mxu0 %v2149
    %v2163 = vpop.f32.mrf.mxu0
    %v2164 = vadd.f32 0.0, %v2163
    %v2165 = vpop.f32.mrf.mxu0
    %2166 = vdwg.mxu0
    %v2168 = vsel %vm1211, %v1594, 0
    %v2171 = vsel %vm1599, %v601, 0
    %2173 = vmatpush.bf16.msra.mxu0 0
    %2174 = vmatpush.bf16.msra.mxu0 0
    %2175 = vmatpush.bf16.msra.mxu0 0
    %2176 = vmatpush.bf16.msra.mxu0 0
    %2177 = vmatpush.bf16.msra.mxu0 0
    %2178 = vmatpush.bf16.msra.mxu0 0
    %2179 = vmatpush.bf16.msra.mxu0 0
    %2180 = vmatpush.bf16.msra.mxu0 %v2171
    %2181 = vmatmul.bf16.gmra.mxu0 %v2168
    %v2182 = vpop.f32.mrf.mxu0
    %v2183 = vadd.f32 0.0, %v2182
    %v2184 = vpop.f32.mrf.mxu0
    %2185 = vdwg.mxu0
    %v2187 = vsel %vm1211, %v1595, 0
    %v2190 = vsel %vm1599, %v602, 0
    %2192 = vmatpush.bf16.msra.mxu0 0
    %2193 = vmatpush.bf16.msra.mxu0 0
    %2194 = vmatpush.bf16.msra.mxu0 0
    %2195 = vmatpush.bf16.msra.mxu0 0
    %2196 = vmatpush.bf16.msra.mxu0 0
    %2197 = vmatpush.bf16.msra.mxu0 0
    %2198 = vmatpush.bf16.msra.mxu0 0
    %2199 = vmatpush.bf16.msra.mxu0 %v2190
    %2200 = vmatmul.bf16.gmra.mxu0 %v2187
    %v2201 = vpop.f32.mrf.mxu0
    %v2202 = vadd.f32 0.0, %v2201
    %v2203 = vpop.f32.mrf.mxu0
    %2204 = vdwg.mxu0
    %v2205 = vsel %vm277, %v1613, 0.0
    %v2206 = vsel %vm277, %v1632, 0.0
    %v2207 = vadd.f32 %v2205, %v2206
    %v2208 = vsel %vm277, %v1651, 0.0
    %v2209 = vadd.f32 %v2207, %v2208
    %v2210 = vsel %vm277, %v1670, 0.0
    %v2211 = vadd.f32 %v2209, %v2210
    %v2212 = vsel %vm277, %v1689, 0.0
    %v2213 = vadd.f32 %v2211, %v2212
    %v2214 = vsel %vm277, %v1708, 0.0
    %v2215 = vadd.f32 %v2213, %v2214
    %v2216 = vsel %vm277, %v1727, 0.0
    %v2217 = vadd.f32 %v2215, %v2216
    %v2218 = vsel %vm277, %v1746, 0.0
    %v2219 = vadd.f32 %v2217, %v2218
    %v2220 = vsel %vm277, %v1765, 0.0
    %v2221 = vadd.f32 %v2219, %v2220
    %v2222 = vsel %vm277, %v1784, 0.0
    %v2223 = vadd.f32 %v2221, %v2222
    %v2224 = vsel %vm277, %v1803, 0.0
    %v2225 = vadd.f32 %v2223, %v2224
    %v2226 = vsel %vm277, %v1822, 0.0
    %v2227 = vadd.f32 %v2225, %v2226
    %v2228 = vsel %vm277, %v1841, 0.0
    %v2229 = vadd.f32 %v2227, %v2228
    %v2230 = vsel %vm277, %v1860, 0.0
    %v2231 = vadd.f32 %v2229, %v2230
    %v2232 = vsel %vm277, %v1879, 0.0
    %v2233 = vadd.f32 %v2231, %v2232
    %v2234 = vsel %vm277, %v1898, 0.0
    %v2235 = vadd.f32 %v2233, %v2234
    %v2236 = vsel %vm277, %v1917, 0.0
    %v2237 = vsel %vm277, %v1936, 0.0
    %v2238 = vadd.f32 %v2236, %v2237
    %v2239 = vsel %vm277, %v1955, 0.0
    %v2240 = vadd.f32 %v2238, %v2239
    %v2241 = vsel %vm277, %v1974, 0.0
    %v2242 = vadd.f32 %v2240, %v2241
    %v2243 = vsel %vm277, %v1993, 0.0
    %v2244 = vadd.f32 %v2242, %v2243
    %v2245 = vsel %vm277, %v2012, 0.0
    %v2246 = vadd.f32 %v2244, %v2245
    %v2247 = vsel %vm277, %v2031, 0.0
    %v2248 = vadd.f32 %v2246, %v2247
    %v2249 = vsel %vm277, %v2050, 0.0
    %v2250 = vadd.f32 %v2248, %v2249
    %v2251 = vsel %vm277, %v2069, 0.0
    %v2252 = vadd.f32 %v2250, %v2251
    %v2253 = vsel %vm277, %v2088, 0.0
    %v2254 = vadd.f32 %v2252, %v2253
    %v2255 = vsel %vm277, %v2107, 0.0
    %v2256 = vadd.f32 %v2254, %v2255
    %v2257 = vsel %vm277, %v2126, 0.0
    %v2258 = vadd.f32 %v2256, %v2257
    %v2259 = vsel %vm277, %v2145, 0.0
    %v2260 = vadd.f32 %v2258, %v2259
    %v2261 = vsel %vm277, %v2164, 0.0
    %v2262 = vadd.f32 %v2260, %v2261
    %v2263 = vsel %vm277, %v2183, 0.0
    %v2264 = vadd.f32 %v2262, %v2263
    %v2265 = vsel %vm277, %v2202, 0.0
    %v2266 = vadd.f32 %v2264, %v2265
    %v2267 = vpack.c.bf16 %v2266, %v2235
    %v2268 = vld [vmem:[%s10] sm:$0xf]
    %v2269 = vld [vmem:[%s10 + $0x4] sm:$0xf]
    %v2270 = vld [vmem:[%s10 + $0x8] sm:$0xf]
    %v2271 = vld [vmem:[%s10 + $0xc] sm:$0xf]
    %v2272 = vld [vmem:[#allocation11] sm:$0x1]
    %v2274 = vperm.slane %v2272, 0
    %v2280 = vunpack.c.l.b16 %v2268
    %v2281 = vunpack.c.l.b16 %v2269
    %v2282 = vunpack.c.l.b16 %v2270
    %v2283 = vunpack.c.l.b16 %v2271
    %v2284 = vpack.c.b16 %v2281, %v2280
    %v2285 = vpack.c.b16 %v2283, %v2282
    %v2289 = vsel %vm277, %v2267, 0
    %2291 = vmatpush.bf16.msra.mxu0 0
    %2292 = vmatpush.bf16.msra.mxu0 0
    %2293 = vmatpush.bf16.msra.mxu0 0
    %2294 = vmatpush.bf16.msra.mxu0 0
    %2295 = vmatpush.bf16.msra.mxu0 0
    %2296 = vmatpush.bf16.msra.mxu0 0
    %2297 = vmatpush.bf16.msra.mxu0 %v2285
    %2298 = vmatpush.bf16.msra.mxu0 %v2284
    %2299 = vmatmul.bf16.gmra.mxu0 %v2289
    %v2300 = vpop.f32.mrf.mxu0
    %v2301 = vadd.f32 %v2274, %v2300
    %v2302 = vpop.f32.mrf.mxu0
    %v2303 = vadd.f32 %v2274, %v2302
    %2304 = vdwg.mxu0
    %v2305 = vadd.f32 %v238, %v2301
    %v2306 = vadd.f32 %v239, %v2303
    %v2307 = vld [vmem:[%s16] sm:$0x1]
    %v2308 = vld [vmem:[#allocation13] sm:$0x1]
    %v2309 = vsel %vm277, %v2305, 0.0
    %2310 = vadd.xlane.f32.xlu0 %v2309
    %v2311 = vpop.xlane.xlu0 %2310
    %v2312 = vsel %vm277, %v2306, 0.0
    %2313 = vadd.xlane.f32.xlu0 %v2312
    %v2314 = vpop.xlane.xlu0 %2313
    %v2315 = vrcp.pop 32.0
    %v2316 = vmul.f32 32.0, %v2315
    %v2317 = vsub.f32 1.0, %v2316
    %v2318 = vmul.f32 %v2315, %v2317
    %v2319 = vadd.f32 %v2315, %v2318
    %vm2320 = vweird.f32 %v2315
    %v2321 = vsel %vm2320, %v2315, %v2319
    %v2322 = vmul.f32 %v2311, %v2321
    %v2323 = vmul.f32 %v2314, %v2321
    %v2324 = vsub.f32 %v2305, %v2322
    %v2325 = vsub.f32 %v2306, %v2323
    %v2326 = vmul.f32 %v2324, %v2324
    %v2327 = vmul.f32 %v2325, %v2325
    %v2328 = vsel %vm277, %v2326, 0.0
    %2329 = vadd.xlane.f32.xlu0 %v2328
    %v2330 = vpop.xlane.xlu0 %2329
    %v2331 = vsel %vm277, %v2327, 0.0
    %2332 = vadd.xlane.f32.xlu0 %v2331
    %v2333 = vpop.xlane.xlu0 %2332
    %v2334 = vmul.f32 %v2330, %v2321
    %v2335 = vmul.f32 %v2333, %v2321
    %v2336 = vadd.f32 %v2334, 1e-05
    %v2337 = vadd.f32 %v2335, 1e-05
    %v2338 = vrsqrt.pop %v2336
    %v2339 = vmul.f32 %v2338, %v2336
    %v2340 = vmul.f32 %v2339, %v2338
    %v2341 = vmul.f32 0.5, %v2340
    %v2342 = vsub.f32 1.5, %v2341
    %v2343 = vmul.f32 %v2338, %v2342
    %vm2344 = vweird.f32 %v2336
    %vm2345 = vweird.f32 %v2338
    %vm2346 = vmor %vm2344, %vm2345
    %v2347 = vsel %vm2346, %v2338, %v2343
    %v2348 = vrsqrt.pop %v2337
    %v2349 = vmul.f32 %v2348, %v2337
    %v2350 = vmul.f32 %v2349, %v2348
    %v2351 = vmul.f32 0.5, %v2350
    %v2352 = vsub.f32 1.5, %v2351
    %v2353 = vmul.f32 %v2348, %v2352
    %vm2354 = vweird.f32 %v2337
    %vm2355 = vweird.f32 %v2348
    %vm2356 = vmor %vm2354, %vm2355
    %v2357 = vsel %vm2356, %v2348, %v2353
    %v2358 = vmul.f32 %v2324, %v2347
    %v2359 = vmul.f32 %v2325, %v2357
    %v2361 = vperm.slane %v2307, 0
    %v2363 = vmul.f32 %v2358, %v2361
    %v2364 = vmul.f32 %v2359, %v2361
    %v2366 = vperm.slane %v2308, 0
    %v2368 = vadd.f32 %v2363, %v2366
    %v2369 = vadd.f32 %v2364, %v2366
    %v2370 = vpack.c.bf16 %v2369, %v2368
    %v2371 = vld [vmem:[%s12] sm:$0xf]
    %v2372 = vld [vmem:[%s12 + $0x4] sm:$0xf]
    %v2373 = vld [vmem:[%s12 + $0x8] sm:$0xf]
    %v2374 = vld [vmem:[%s12 + $0xc] sm:$0xf]
    %v2375 = vld [vmem:[%s13] sm:$0x1]
    %v2377 = vperm.slane %v2375, 0
    %v2383 = vunpack.c.l.b16 %v2371
    %v2384 = vunpack.c.l.b16 %v2372
    %v2385 = vunpack.c.l.b16 %v2373
    %v2386 = vunpack.c.l.b16 %v2374
    %v2387 = vpack.c.b16 %v2384, %v2383
    %v2388 = vpack.c.b16 %v2386, %v2385
    %v2392 = vsel %vm277, %v2370, 0
    %2394 = vmatpush.bf16.msra.mxu0 0
    %2395 = vmatpush.bf16.msra.mxu0 0
    %2396 = vmatpush.bf16.msra.mxu0 0
    %2397 = vmatpush.bf16.msra.mxu0 0
    %2398 = vmatpush.bf16.msra.mxu0 0
    %2399 = vmatpush.bf16.msra.mxu0 0
    %2400 = vmatpush.bf16.msra.mxu0 %v2388
    %2401 = vmatpush.bf16.msra.mxu0 %v2387
    %2402 = vmatmul.bf16.gmra.mxu0 %v2392
    %v2403 = vpop.f32.mrf.mxu0
    %v2404 = vadd.f32 %v2377, %v2403
    %v2405 = vpop.f32.mrf.mxu0
    %v2406 = vadd.f32 %v2377, %v2405
    %2407 = vdwg.mxu0
    %v2408 = vmax.f32 %v2404, 0.0
    %v2409 = vmax.f32 %v2406, 0.0
    %v2410 = vpack.c.bf16 %v2409, %v2408
    %v2411 = vld [vmem:[%s14] sm:$0xf]
    %v2412 = vld [vmem:[%s14 + $0x4] sm:$0xf]
    %v2413 = vld [vmem:[%s14 + $0x8] sm:$0xf]
    %v2414 = vld [vmem:[%s14 + $0xc] sm:$0xf]
    %v2415 = vld [vmem:[%s14 + $0x10] sm:$0xf]
    %v2416 = vld [vmem:[%s14 + $0x14] sm:$0xf]
    %v2417 = vld [vmem:[%s14 + $0x18] sm:$0xf]
    %v2418 = vld [vmem:[%s14 + $0x1c] sm:$0xf]
    %v2419 = vld [vmem:[%s15] sm:$0x1]
    %v2421 = vperm.slane %v2419, 0
    %v2431 = vunpack.c.l.b16 %v2411
    %v2432 = vunpack.c.l.b16 %v2412
    %v2433 = vunpack.c.l.b16 %v2413
    %v2434 = vunpack.c.l.b16 %v2414
    %v2435 = vunpack.c.l.b16 %v2415
    %v2436 = vunpack.c.l.b16 %v2416
    %v2437 = vunpack.c.l.b16 %v2417
    %v2438 = vunpack.c.l.b16 %v2418
    %v2439 = vpack.c.b16 %v2432, %v2431
    %v2440 = vpack.c.b16 %v2434, %v2433
    %v2441 = vpack.c.b16 %v2436, %v2435
    %v2442 = vpack.c.b16 %v2438, %v2437
    %vm2447 = vcmask 523264
    %v2449 = vsel %vm2447, %v2410, 0
    %2451 = vmatpush.bf16.msra.mxu0 0
    %2452 = vmatpush.bf16.msra.mxu0 0
    %2453 = vmatpush.bf16.msra.mxu0 0
    %2454 = vmatpush.bf16.msra.mxu0 0
    %2455 = vmatpush.bf16.msra.mxu0 %v2442
    %2456 = vmatpush.bf16.msra.mxu0 %v2441
    %2457 = vmatpush.bf16.msra.mxu0 %v2440
    %2458 = vmatpush.bf16.msra.mxu0 %v2439
    %2459 = vmatmul.bf16.gmra.mxu0 %v2449
    %v2460 = vpop.f32.mrf.mxu0
    %v2461 = vadd.f32 %v2421, %v2460
    %v2462 = vpop.f32.mrf.mxu0
    %v2463 = vadd.f32 %v2421, %v2462
    %2464 = vdwg.mxu0
    %v2465 = vadd.f32 %v2368, %v2461
    %v2466 = vadd.f32 %v2369, %v2463
    %v2467 = vld [vmem:[%s18] sm:$0x1]
    %v2468 = vld [vmem:[%s19] sm:$0x1]
    %v2469 = vsel %vm277, %v2465, 0.0
    %2470 = vadd.xlane.f32.xlu0 %v2469
    %v2471 = vpop.xlane.xlu0 %2470
    %v2472 = vsel %vm277, %v2466, 0.0
    %2473 = vadd.xlane.f32.xlu0 %v2472
    %v2474 = vpop.xlane.xlu0 %2473
    %v2475 = vmul.f32 %v2471, %v2321
    %v2476 = vmul.f32 %v2474, %v2321
    %v2477 = vsub.f32 %v2465, %v2475
    %v2478 = vsub.f32 %v2466, %v2476
    %v2479 = vmul.f32 %v2477, %v2477
    %v2480 = vmul.f32 %v2478, %v2478
    %v2481 = vsel %vm277, %v2479, 0.0
    %2482 = vadd.xlane.f32.xlu0 %v2481
    %v2483 = vpop.xlane.xlu0 %2482
    %v2484 = vsel %vm277, %v2480, 0.0
    %2485 = vadd.xlane.f32.xlu0 %v2484
    %v2486 = vpop.xlane.xlu0 %2485
    %v2487 = vmul.f32 %v2483, %v2321
    %v2488 = vmul.f32 %v2486, %v2321
    %v2489 = vadd.f32 %v2487, 1e-05
    %v2490 = vadd.f32 %v2488, 1e-05
    %v2491 = vrsqrt.pop %v2489
    %v2492 = vmul.f32 %v2491, %v2489
    %v2493 = vmul.f32 %v2492, %v2491
    %v2494 = vmul.f32 0.5, %v2493
    %v2495 = vsub.f32 1.5, %v2494
    %v2496 = vmul.f32 %v2491, %v2495
    %vm2497 = vweird.f32 %v2489
    %vm2498 = vweird.f32 %v2491
    %vm2499 = vmor %vm2497, %vm2498
    %v2500 = vsel %vm2499, %v2491, %v2496
    %v2501 = vrsqrt.pop %v2490
    %v2502 = vmul.f32 %v2501, %v2490
    %v2503 = vmul.f32 %v2502, %v2501
    %v2504 = vmul.f32 0.5, %v2503
    %v2505 = vsub.f32 1.5, %v2504
    %v2506 = vmul.f32 %v2501, %v2505
    %vm2507 = vweird.f32 %v2490
    %vm2508 = vweird.f32 %v2501
    %vm2509 = vmor %vm2507, %vm2508
    %v2510 = vsel %vm2509, %v2501, %v2506
    %v2511 = vmul.f32 %v2477, %v2500
    %v2512 = vmul.f32 %v2478, %v2510
    %v2514 = vperm.slane %v2467, 0
    %v2516 = vmul.f32 %v2511, %v2514
    %v2517 = vmul.f32 %v2512, %v2514
    %v2519 = vperm.slane %v2468, 0
    %v2521 = vadd.f32 %v2516, %v2519
    %v2522 = vadd.f32 %v2517, %v2519
    %v2523 = vpack.c.bf16 %v2522, %v2521
    %s2524 = scalar_lea.vmem %s4, 16
    %v2525 = vld [vmem:[%s2524] sm:$0xf]
    %v2526 = vld [vmem:[%s2524 + $0x4] sm:$0xf]
    %v2527 = vld [vmem:[%s2524 + $0x8] sm:$0xf]
    %v2528 = vld [vmem:[%s2524 + $0xc] sm:$0xf]
    %s2529 = scalar_lea.vmem [#allocation7], 1
    %v2530 = vld [vmem:[%s2529] sm:$0x1]
    %v2532 = vperm.slane %v2530, 0
    %v2538 = vunpack.c.l.b16 %v2525
    %v2539 = vunpack.c.l.b16 %v2526
    %v2540 = vunpack.c.l.b16 %v2527
    %v2541 = vunpack.c.l.b16 %v2528
    %v2542 = vpack.c.b16 %v2539, %v2538
    %v2543 = vpack.c.b16 %v2541, %v2540
    %v2547 = vsel %vm277, %v2523, 0
    %2549 = vmatpush.bf16.msra.mxu0 0
    %2550 = vmatpush.bf16.msra.mxu0 0
    %2551 = vmatpush.bf16.msra.mxu0 0
    %2552 = vmatpush.bf16.msra.mxu0 0
    %2553 = vmatpush.bf16.msra.mxu0 0
    %2554 = vmatpush.bf16.msra.mxu0 0
    %2555 = vmatpush.bf16.msra.mxu0 %v2543
    %2556 = vmatpush.bf16.msra.mxu0 %v2542
    %2557 = vmatmul.bf16.gmra.mxu0 %v2547
    %v2558 = vpop.f32.mrf.mxu0
    %v2559 = vadd.f32 %v2532, %v2558
    %v2560 = vpop.f32.mrf.mxu0
    %v2561 = vadd.f32 %v2532, %v2560
    %2562 = vdwg.mxu0
    %s2563 = scalar_lea.vmem %s6, 16
    %v2564 = vld [vmem:[%s2563] sm:$0xf]
    %v2565 = vld [vmem:[%s2563 + $0x4] sm:$0xf]
    %v2566 = vld [vmem:[%s2563 + $0x8] sm:$0xf]
    %v2567 = vld [vmem:[%s2563 + $0xc] sm:$0xf]
    %s2568 = scalar_lea.vmem [#allocation8], 1
    %v2569 = vld [vmem:[%s2568] sm:$0x1]
    %v2571 = vperm.slane %v2569, 0
    %v2577 = vunpack.c.l.b16 %v2564
    %v2578 = vunpack.c.l.b16 %v2565
    %v2579 = vunpack.c.l.b16 %v2566
    %v2580 = vunpack.c.l.b16 %v2567
    %v2581 = vpack.c.b16 %v2578, %v2577
    %v2582 = vpack.c.b16 %v2580, %v2579
    %2585 = vmatpush.bf16.msra.mxu0 0
    %2586 = vmatpush.bf16.msra.mxu0 0
    %2587 = vmatpush.bf16.msra.mxu0 0
    %2588 = vmatpush.bf16.msra.mxu0 0
    %2589 = vmatpush.bf16.msra.mxu0 0
    %2590 = vmatpush.bf16.msra.mxu0 0
    %2591 = vmatpush.bf16.msra.mxu0 %v2582
    %2592 = vmatpush.bf16.msra.mxu0 %v2581
    %2593 = vmatmul.bf16.gmra.mxu0 %v2547
    %v2594 = vpop.f32.mrf.mxu0
    %v2595 = vadd.f32 %v2571, %v2594
    %v2596 = vpop.f32.mrf.mxu0
    %v2597 = vadd.f32 %v2571, %v2596
    %2598 = vdwg.mxu0
    %s2599 = scalar_lea.vmem %s8, 16
    %v2600 = vld [vmem:[%s2599] sm:$0xf]
    %v2601 = vld [vmem:[%s2599 + $0x4] sm:$0xf]
    %v2602 = vld [vmem:[%s2599 + $0x8] sm:$0xf]
    %v2603 = vld [vmem:[%s2599 + $0xc] sm:$0xf]
    %s2604 = scalar_lea.vmem [#allocation10], 1
    %v2605 = vld [vmem:[%s2604] sm:$0x1]
    %v2607 = vperm.slane %v2605, 0
    %v2613 = vunpack.c.l.b16 %v2600
    %v2614 = vunpack.c.l.b16 %v2601
    %v2615 = vunpack.c.l.b16 %v2602
    %v2616 = vunpack.c.l.b16 %v2603
    %v2617 = vpack.c.b16 %v2614, %v2613
    %v2618 = vpack.c.b16 %v2616, %v2615
    %2621 = vmatpush.bf16.msra.mxu0 0
    %2622 = vmatpush.bf16.msra.mxu0 0
    %2623 = vmatpush.bf16.msra.mxu0 0
    %2624 = vmatpush.bf16.msra.mxu0 0
    %2625 = vmatpush.bf16.msra.mxu0 0
    %2626 = vmatpush.bf16.msra.mxu0 0
    %2627 = vmatpush.bf16.msra.mxu0 %v2618
    %2628 = vmatpush.bf16.msra.mxu0 %v2617
    %2629 = vmatmul.bf16.gmra.mxu0 %v2547
    %v2630 = vpop.f32.mrf.mxu0
    %v2631 = vadd.f32 %v2607, %v2630
    %v2632 = vpop.f32.mrf.mxu0
    %v2633 = vadd.f32 %v2607, %v2632
    %2634 = vdwg.mxu0
    %v2635 = vmul.f32 %v2559, %v379
    %v2636 = vmul.f32 %v2559, %v380
    %v2637 = vmul.f32 %v2559, %v381
    %v2638 = vmul.f32 %v2559, %v382
    %v2639 = vmul.f32 %v2559, %v383
    %v2640 = vmul.f32 %v2559, %v384
    %v2641 = vmul.f32 %v2559, %v385
    %v2642 = vmul.f32 %v2559, %v386
    %v2643 = vmul.f32 %v2559, %v387
    %v2644 = vmul.f32 %v2559, %v388
    %v2645 = vmul.f32 %v2559, %v389
    %v2646 = vmul.f32 %v2559, %v390
    %v2647 = vmul.f32 %v2559, %v391
    %v2648 = vmul.f32 %v2559, %v392
    %v2649 = vmul.f32 %v2559, %v393
    %v2650 = vmul.f32 %v2559, %v394
    %v2651 = vmul.f32 %v2561, %v379
    %v2652 = vmul.f32 %v2561, %v380
    %v2653 = vmul.f32 %v2561, %v381
    %v2654 = vmul.f32 %v2561, %v382
    %v2655 = vmul.f32 %v2561, %v383
    %v2656 = vmul.f32 %v2561, %v384
    %v2657 = vmul.f32 %v2561, %v385
    %v2658 = vmul.f32 %v2561, %v386
    %v2659 = vmul.f32 %v2561, %v387
    %v2660 = vmul.f32 %v2561, %v388
    %v2661 = vmul.f32 %v2561, %v389
    %v2662 = vmul.f32 %v2561, %v390
    %v2663 = vmul.f32 %v2561, %v391
    %v2664 = vmul.f32 %v2561, %v392
    %v2665 = vmul.f32 %v2561, %v393
    %v2666 = vmul.f32 %v2561, %v394
    %v2667 = vpack.c.bf16 %v2635, %v2635
    %v2668 = vpack.c.bf16 %v2636, %v2636
    %v2669 = vpack.c.bf16 %v2637, %v2637
    %v2670 = vpack.c.bf16 %v2638, %v2638
    %v2671 = vpack.c.bf16 %v2639, %v2639
    %v2672 = vpack.c.bf16 %v2640, %v2640
    %v2673 = vpack.c.bf16 %v2641, %v2641
    %v2674 = vpack.c.bf16 %v2642, %v2642
    %v2675 = vpack.c.bf16 %v2643, %v2643
    %v2676 = vpack.c.bf16 %v2644, %v2644
    %v2677 = vpack.c.bf16 %v2645, %v2645
    %v2678 = vpack.c.bf16 %v2646, %v2646
    %v2679 = vpack.c.bf16 %v2647, %v2647
    %v2680 = vpack.c.bf16 %v2648, %v2648
    %v2681 = vpack.c.bf16 %v2649, %v2649
    %v2682 = vpack.c.bf16 %v2650, %v2650
    %v2683 = vpack.c.bf16 %v2651, %v2651
    %v2684 = vpack.c.bf16 %v2652, %v2652
    %v2685 = vpack.c.bf16 %v2653, %v2653
    %v2686 = vpack.c.bf16 %v2654, %v2654
    %v2687 = vpack.c.bf16 %v2655, %v2655
    %v2688 = vpack.c.bf16 %v2656, %v2656
    %v2689 = vpack.c.bf16 %v2657, %v2657
    %v2690 = vpack.c.bf16 %v2658, %v2658
    %v2691 = vpack.c.bf16 %v2659, %v2659
    %v2692 = vpack.c.bf16 %v2660, %v2660
    %v2693 = vpack.c.bf16 %v2661, %v2661
    %v2694 = vpack.c.bf16 %v2662, %v2662
    %v2695 = vpack.c.bf16 %v2663, %v2663
    %v2696 = vpack.c.bf16 %v2664, %v2664
    %v2697 = vpack.c.bf16 %v2665, %v2665
    %v2698 = vpack.c.bf16 %v2666, %v2666
    %v2699 = vmul.f32 %v2595, %v379
    %v2700 = vmul.f32 %v2595, %v380
    %v2701 = vmul.f32 %v2595, %v381
    %v2702 = vmul.f32 %v2595, %v382
    %v2703 = vmul.f32 %v2595, %v383
    %v2704 = vmul.f32 %v2595, %v384
    %v2705 = vmul.f32 %v2595, %v385
    %v2706 = vmul.f32 %v2595, %v386
    %v2707 = vmul.f32 %v2595, %v387
    %v2708 = vmul.f32 %v2595, %v388
    %v2709 = vmul.f32 %v2595, %v389
    %v2710 = vmul.f32 %v2595, %v390
    %v2711 = vmul.f32 %v2595, %v391
    %v2712 = vmul.f32 %v2595, %v392
    %v2713 = vmul.f32 %v2595, %v393
    %v2714 = vmul.f32 %v2595, %v394
    %v2715 = vmul.f32 %v2597, %v379
    %v2716 = vmul.f32 %v2597, %v380
    %v2717 = vmul.f32 %v2597, %v381
    %v2718 = vmul.f32 %v2597, %v382
    %v2719 = vmul.f32 %v2597, %v383
    %v2720 = vmul.f32 %v2597, %v384
    %v2721 = vmul.f32 %v2597, %v385
    %v2722 = vmul.f32 %v2597, %v386
    %v2723 = vmul.f32 %v2597, %v387
    %v2724 = vmul.f32 %v2597, %v388
    %v2725 = vmul.f32 %v2597, %v389
    %v2726 = vmul.f32 %v2597, %v390
    %v2727 = vmul.f32 %v2597, %v391
    %v2728 = vmul.f32 %v2597, %v392
    %v2729 = vmul.f32 %v2597, %v393
    %v2730 = vmul.f32 %v2597, %v394
    %v2731 = vpack.c.bf16 %v2699, %v2699
    %v2732 = vpack.c.bf16 %v2700, %v2700
    %v2733 = vpack.c.bf16 %v2701, %v2701
    %v2734 = vpack.c.bf16 %v2702, %v2702
    %v2735 = vpack.c.bf16 %v2703, %v2703
    %v2736 = vpack.c.bf16 %v2704, %v2704
    %v2737 = vpack.c.bf16 %v2705, %v2705
    %v2738 = vpack.c.bf16 %v2706, %v2706
    %v2739 = vpack.c.bf16 %v2707, %v2707
    %v2740 = vpack.c.bf16 %v2708, %v2708
    %v2741 = vpack.c.bf16 %v2709, %v2709
    %v2742 = vpack.c.bf16 %v2710, %v2710
    %v2743 = vpack.c.bf16 %v2711, %v2711
    %v2744 = vpack.c.bf16 %v2712, %v2712
    %v2745 = vpack.c.bf16 %v2713, %v2713
    %v2746 = vpack.c.bf16 %v2714, %v2714
    %v2747 = vpack.c.bf16 %v2715, %v2715
    %v2748 = vpack.c.bf16 %v2716, %v2716
    %v2749 = vpack.c.bf16 %v2717, %v2717
    %v2750 = vpack.c.bf16 %v2718, %v2718
    %v2751 = vpack.c.bf16 %v2719, %v2719
    %v2752 = vpack.c.bf16 %v2720, %v2720
    %v2753 = vpack.c.bf16 %v2721, %v2721
    %v2754 = vpack.c.bf16 %v2722, %v2722
    %v2755 = vpack.c.bf16 %v2723, %v2723
    %v2756 = vpack.c.bf16 %v2724, %v2724
    %v2757 = vpack.c.bf16 %v2725, %v2725
    %v2758 = vpack.c.bf16 %v2726, %v2726
    %v2759 = vpack.c.bf16 %v2727, %v2727
    %v2760 = vpack.c.bf16 %v2728, %v2728
    %v2761 = vpack.c.bf16 %v2729, %v2729
    %v2762 = vpack.c.bf16 %v2730, %v2730
    %v2763 = vmul.f32 %v2631, %v379
    %v2764 = vmul.f32 %v2631, %v380
    %v2765 = vmul.f32 %v2631, %v381
    %v2766 = vmul.f32 %v2631, %v382
    %v2767 = vmul.f32 %v2631, %v383
    %v2768 = vmul.f32 %v2631, %v384
    %v2769 = vmul.f32 %v2631, %v385
    %v2770 = vmul.f32 %v2631, %v386
    %v2771 = vmul.f32 %v2631, %v387
    %v2772 = vmul.f32 %v2631, %v388
    %v2773 = vmul.f32 %v2631, %v389
    %v2774 = vmul.f32 %v2631, %v390
    %v2775 = vmul.f32 %v2631, %v391
    %v2776 = vmul.f32 %v2631, %v392
    %v2777 = vmul.f32 %v2631, %v393
    %v2778 = vmul.f32 %v2631, %v394
    %v2779 = vmul.f32 %v2633, %v379
    %v2780 = vmul.f32 %v2633, %v380
    %v2781 = vmul.f32 %v2633, %v381
    %v2782 = vmul.f32 %v2633, %v382
    %v2783 = vmul.f32 %v2633, %v383
    %v2784 = vmul.f32 %v2633, %v384
    %v2785 = vmul.f32 %v2633, %v385
    %v2786 = vmul.f32 %v2633, %v386
    %v2787 = vmul.f32 %v2633, %v387
    %v2788 = vmul.f32 %v2633, %v388
    %v2789 = vmul.f32 %v2633, %v389
    %v2790 = vmul.f32 %v2633, %v390
    %v2791 = vmul.f32 %v2633, %v391
    %v2792 = vmul.f32 %v2633, %v392
    %v2793 = vmul.f32 %v2633, %v393
    %v2794 = vmul.f32 %v2633, %v394
    %v2795 = vpack.c.bf16 %v2763, %v2763
    %v2796 = vpack.c.bf16 %v2764, %v2764
    %v2797 = vpack.c.bf16 %v2765, %v2765
    %v2798 = vpack.c.bf16 %v2766, %v2766
    %v2799 = vpack.c.bf16 %v2767, %v2767
    %v2800 = vpack.c.bf16 %v2768, %v2768
    %v2801 = vpack.c.bf16 %v2769, %v2769
    %v2802 = vpack.c.bf16 %v2770, %v2770
    %v2803 = vpack.c.bf16 %v2771, %v2771
    %v2804 = vpack.c.bf16 %v2772, %v2772
    %v2805 = vpack.c.bf16 %v2773, %v2773
    %v2806 = vpack.c.bf16 %v2774, %v2774
    %v2807 = vpack.c.bf16 %v2775, %v2775
    %v2808 = vpack.c.bf16 %v2776, %v2776
    %v2809 = vpack.c.bf16 %v2777, %v2777
    %v2810 = vpack.c.bf16 %v2778, %v2778
    %v2811 = vpack.c.bf16 %v2779, %v2779
    %v2812 = vpack.c.bf16 %v2780, %v2780
    %v2813 = vpack.c.bf16 %v2781, %v2781
    %v2814 = vpack.c.bf16 %v2782, %v2782
    %v2815 = vpack.c.bf16 %v2783, %v2783
    %v2816 = vpack.c.bf16 %v2784, %v2784
    %v2817 = vpack.c.bf16 %v2785, %v2785
    %v2818 = vpack.c.bf16 %v2786, %v2786
    %v2819 = vpack.c.bf16 %v2787, %v2787
    %v2820 = vpack.c.bf16 %v2788, %v2788
    %v2821 = vpack.c.bf16 %v2789, %v2789
    %v2822 = vpack.c.bf16 %v2790, %v2790
    %v2823 = vpack.c.bf16 %v2791, %v2791
    %v2824 = vpack.c.bf16 %v2792, %v2792
    %v2825 = vpack.c.bf16 %v2793, %v2793
    %v2826 = vpack.c.bf16 %v2794, %v2794
    %v2828 = vsel %vm277, %v2667, 0
    %v2831 = vsel %vm277, %v2731, 0
    %2833 = vmatpush.bf16.xpose.msra.mxu0 0
    %2834 = vmatpush.bf16.xpose.msra.mxu0 0
    %2835 = vmatpush.bf16.xpose.msra.mxu0 0
    %2836 = vmatpush.bf16.xpose.msra.mxu0 0
    %2837 = vmatpush.bf16.xpose.msra.mxu0 0
    %2838 = vmatpush.bf16.xpose.msra.mxu0 0
    %2839 = vmatpush.bf16.xpose.msra.mxu0 0
    %2840 = vmatpush.bf16.xpose.msra.mxu0 %v2831
    %2841 = vmatmul.bf16.gmra.mxu0 %v2828
    %v2842 = vpop.f32.mrf.mxu0
    %v2843 = vadd.f32 0.0, %v2842
    %v2844 = vpop.f32.mrf.mxu0
    %2845 = vdwg.mxu0
    %v2847 = vsel %vm277, %v2668, 0
    %v2850 = vsel %vm277, %v2732, 0
    %2852 = vmatpush.bf16.xpose.msra.mxu0 0
    %2853 = vmatpush.bf16.xpose.msra.mxu0 0
    %2854 = vmatpush.bf16.xpose.msra.mxu0 0
    %2855 = vmatpush.bf16.xpose.msra.mxu0 0
    %2856 = vmatpush.bf16.xpose.msra.mxu0 0
    %2857 = vmatpush.bf16.xpose.msra.mxu0 0
    %2858 = vmatpush.bf16.xpose.msra.mxu0 0
    %2859 = vmatpush.bf16.xpose.msra.mxu0 %v2850
    %2860 = vmatmul.bf16.gmra.mxu0 %v2847
    %v2861 = vpop.f32.mrf.mxu0
    %v2862 = vadd.f32 0.0, %v2861
    %v2863 = vpop.f32.mrf.mxu0
    %2864 = vdwg.mxu0
    %v2866 = vsel %vm277, %v2669, 0
    %v2869 = vsel %vm277, %v2733, 0
    %2871 = vmatpush.bf16.xpose.msra.mxu0 0
    %2872 = vmatpush.bf16.xpose.msra.mxu0 0
    %2873 = vmatpush.bf16.xpose.msra.mxu0 0
    %2874 = vmatpush.bf16.xpose.msra.mxu0 0
    %2875 = vmatpush.bf16.xpose.msra.mxu0 0
    %2876 = vmatpush.bf16.xpose.msra.mxu0 0
    %2877 = vmatpush.bf16.xpose.msra.mxu0 0
    %2878 = vmatpush.bf16.xpose.msra.mxu0 %v2869
    %2879 = vmatmul.bf16.gmra.mxu0 %v2866
    %v2880 = vpop.f32.mrf.mxu0
    %v2881 = vadd.f32 0.0, %v2880
    %v2882 = vpop.f32.mrf.mxu0
    %2883 = vdwg.mxu0
    %v2885 = vsel %vm277, %v2670, 0
    %v2888 = vsel %vm277, %v2734, 0
    %2890 = vmatpush.bf16.xpose.msra.mxu0 0
    %2891 = vmatpush.bf16.xpose.msra.mxu0 0
    %2892 = vmatpush.bf16.xpose.msra.mxu0 0
    %2893 = vmatpush.bf16.xpose.msra.mxu0 0
    %2894 = vmatpush.bf16.xpose.msra.mxu0 0
    %2895 = vmatpush.bf16.xpose.msra.mxu0 0
    %2896 = vmatpush.bf16.xpose.msra.mxu0 0
    %2897 = vmatpush.bf16.xpose.msra.mxu0 %v2888
    %2898 = vmatmul.bf16.gmra.mxu0 %v2885
    %v2899 = vpop.f32.mrf.mxu0
    %v2900 = vadd.f32 0.0, %v2899
    %v2901 = vpop.f32.mrf.mxu0
    %2902 = vdwg.mxu0
    %v2904 = vsel %vm277, %v2671, 0
    %v2907 = vsel %vm277, %v2735, 0
    %2909 = vmatpush.bf16.xpose.msra.mxu0 0
    %2910 = vmatpush.bf16.xpose.msra.mxu0 0
    %2911 = vmatpush.bf16.xpose.msra.mxu0 0
    %2912 = vmatpush.bf16.xpose.msra.mxu0 0
    %2913 = vmatpush.bf16.xpose.msra.mxu0 0
    %2914 = vmatpush.bf16.xpose.msra.mxu0 0
    %2915 = vmatpush.bf16.xpose.msra.mxu0 0
    %2916 = vmatpush.bf16.xpose.msra.mxu0 %v2907
    %2917 = vmatmul.bf16.gmra.mxu0 %v2904
    %v2918 = vpop.f32.mrf.mxu0
    %v2919 = vadd.f32 0.0, %v2918
    %v2920 = vpop.f32.mrf.mxu0
    %2921 = vdwg.mxu0
    %v2923 = vsel %vm277, %v2672, 0
    %v2926 = vsel %vm277, %v2736, 0
    %2928 = vmatpush.bf16.xpose.msra.mxu0 0
    %2929 = vmatpush.bf16.xpose.msra.mxu0 0
    %2930 = vmatpush.bf16.xpose.msra.mxu0 0
    %2931 = vmatpush.bf16.xpose.msra.mxu0 0
    %2932 = vmatpush.bf16.xpose.msra.mxu0 0
    %2933 = vmatpush.bf16.xpose.msra.mxu0 0
    %2934 = vmatpush.bf16.xpose.msra.mxu0 0
    %2935 = vmatpush.bf16.xpose.msra.mxu0 %v2926
    %2936 = vmatmul.bf16.gmra.mxu0 %v2923
    %v2937 = vpop.f32.mrf.mxu0
    %v2938 = vadd.f32 0.0, %v2937
    %v2939 = vpop.f32.mrf.mxu0
    %2940 = vdwg.mxu0
    %v2942 = vsel %vm277, %v2673, 0
    %v2945 = vsel %vm277, %v2737, 0
    %2947 = vmatpush.bf16.xpose.msra.mxu0 0
    %2948 = vmatpush.bf16.xpose.msra.mxu0 0
    %2949 = vmatpush.bf16.xpose.msra.mxu0 0
    %2950 = vmatpush.bf16.xpose.msra.mxu0 0
    %2951 = vmatpush.bf16.xpose.msra.mxu0 0
    %2952 = vmatpush.bf16.xpose.msra.mxu0 0
    %2953 = vmatpush.bf16.xpose.msra.mxu0 0
    %2954 = vmatpush.bf16.xpose.msra.mxu0 %v2945
    %2955 = vmatmul.bf16.gmra.mxu0 %v2942
    %v2956 = vpop.f32.mrf.mxu0
    %v2957 = vadd.f32 0.0, %v2956
    %v2958 = vpop.f32.mrf.mxu0
    %2959 = vdwg.mxu0
    %v2961 = vsel %vm277, %v2674, 0
    %v2964 = vsel %vm277, %v2738, 0
    %2966 = vmatpush.bf16.xpose.msra.mxu0 0
    %2967 = vmatpush.bf16.xpose.msra.mxu0 0
    %2968 = vmatpush.bf16.xpose.msra.mxu0 0
    %2969 = vmatpush.bf16.xpose.msra.mxu0 0
    %2970 = vmatpush.bf16.xpose.msra.mxu0 0
    %2971 = vmatpush.bf16.xpose.msra.mxu0 0
    %2972 = vmatpush.bf16.xpose.msra.mxu0 0
    %2973 = vmatpush.bf16.xpose.msra.mxu0 %v2964
    %2974 = vmatmul.bf16.gmra.mxu0 %v2961
    %v2975 = vpop.f32.mrf.mxu0
    %v2976 = vadd.f32 0.0, %v2975
    %v2977 = vpop.f32.mrf.mxu0
    %2978 = vdwg.mxu0
    %v2980 = vsel %vm277, %v2675, 0
    %v2983 = vsel %vm277, %v2739, 0
    %2985 = vmatpush.bf16.xpose.msra.mxu0 0
    %2986 = vmatpush.bf16.xpose.msra.mxu0 0
    %2987 = vmatpush.bf16.xpose.msra.mxu0 0
    %2988 = vmatpush.bf16.xpose.msra.mxu0 0
    %2989 = vmatpush.bf16.xpose.msra.mxu0 0
    %2990 = vmatpush.bf16.xpose.msra.mxu0 0
    %2991 = vmatpush.bf16.xpose.msra.mxu0 0
    %2992 = vmatpush.bf16.xpose.msra.mxu0 %v2983
    %2993 = vmatmul.bf16.gmra.mxu0 %v2980
    %v2994 = vpop.f32.mrf.mxu0
    %v2995 = vadd.f32 0.0, %v2994
    %v2996 = vpop.f32.mrf.mxu0
    %2997 = vdwg.mxu0
    %v2999 = vsel %vm277, %v2676, 0
    %v3002 = vsel %vm277, %v2740, 0
    %3004 = vmatpush.bf16.xpose.msra.mxu0 0
    %3005 = vmatpush.bf16.xpose.msra.mxu0 0
    %3006 = vmatpush.bf16.xpose.msra.mxu0 0
    %3007 = vmatpush.bf16.xpose.msra.mxu0 0
    %3008 = vmatpush.bf16.xpose.msra.mxu0 0
    %3009 = vmatpush.bf16.xpose.msra.mxu0 0
    %3010 = vmatpush.bf16.xpose.msra.mxu0 0
    %3011 = vmatpush.bf16.xpose.msra.mxu0 %v3002
    %3012 = vmatmul.bf16.gmra.mxu0 %v2999
    %v3013 = vpop.f32.mrf.mxu0
    %v3014 = vadd.f32 0.0, %v3013
    %v3015 = vpop.f32.mrf.mxu0
    %3016 = vdwg.mxu0
    %v3018 = vsel %vm277, %v2677, 0
    %v3021 = vsel %vm277, %v2741, 0
    %3023 = vmatpush.bf16.xpose.msra.mxu0 0
    %3024 = vmatpush.bf16.xpose.msra.mxu0 0
    %3025 = vmatpush.bf16.xpose.msra.mxu0 0
    %3026 = vmatpush.bf16.xpose.msra.mxu0 0
    %3027 = vmatpush.bf16.xpose.msra.mxu0 0
    %3028 = vmatpush.bf16.xpose.msra.mxu0 0
    %3029 = vmatpush.bf16.xpose.msra.mxu0 0
    %3030 = vmatpush.bf16.xpose.msra.mxu0 %v3021
    %3031 = vmatmul.bf16.gmra.mxu0 %v3018
    %v3032 = vpop.f32.mrf.mxu0
    %v3033 = vadd.f32 0.0, %v3032
    %v3034 = vpop.f32.mrf.mxu0
    %3035 = vdwg.mxu0
    %v3037 = vsel %vm277, %v2678, 0
    %v3040 = vsel %vm277, %v2742, 0
    %3042 = vmatpush.bf16.xpose.msra.mxu0 0
    %3043 = vmatpush.bf16.xpose.msra.mxu0 0
    %3044 = vmatpush.bf16.xpose.msra.mxu0 0
    %3045 = vmatpush.bf16.xpose.msra.mxu0 0
    %3046 = vmatpush.bf16.xpose.msra.mxu0 0
    %3047 = vmatpush.bf16.xpose.msra.mxu0 0
    %3048 = vmatpush.bf16.xpose.msra.mxu0 0
    %3049 = vmatpush.bf16.xpose.msra.mxu0 %v3040
    %3050 = vmatmul.bf16.gmra.mxu0 %v3037
    %v3051 = vpop.f32.mrf.mxu0
    %v3052 = vadd.f32 0.0, %v3051
    %v3053 = vpop.f32.mrf.mxu0
    %3054 = vdwg.mxu0
    %v3056 = vsel %vm277, %v2679, 0
    %v3059 = vsel %vm277, %v2743, 0
    %3061 = vmatpush.bf16.xpose.msra.mxu0 0
    %3062 = vmatpush.bf16.xpose.msra.mxu0 0
    %3063 = vmatpush.bf16.xpose.msra.mxu0 0
    %3064 = vmatpush.bf16.xpose.msra.mxu0 0
    %3065 = vmatpush.bf16.xpose.msra.mxu0 0
    %3066 = vmatpush.bf16.xpose.msra.mxu0 0
    %3067 = vmatpush.bf16.xpose.msra.mxu0 0
    %3068 = vmatpush.bf16.xpose.msra.mxu0 %v3059
    %3069 = vmatmul.bf16.gmra.mxu0 %v3056
    %v3070 = vpop.f32.mrf.mxu0
    %v3071 = vadd.f32 0.0, %v3070
    %v3072 = vpop.f32.mrf.mxu0
    %3073 = vdwg.mxu0
    %v3075 = vsel %vm277, %v2680, 0
    %v3078 = vsel %vm277, %v2744, 0
    %3080 = vmatpush.bf16.xpose.msra.mxu0 0
    %3081 = vmatpush.bf16.xpose.msra.mxu0 0
    %3082 = vmatpush.bf16.xpose.msra.mxu0 0
    %3083 = vmatpush.bf16.xpose.msra.mxu0 0
    %3084 = vmatpush.bf16.xpose.msra.mxu0 0
    %3085 = vmatpush.bf16.xpose.msra.mxu0 0
    %3086 = vmatpush.bf16.xpose.msra.mxu0 0
    %3087 = vmatpush.bf16.xpose.msra.mxu0 %v3078
    %3088 = vmatmul.bf16.gmra.mxu0 %v3075
    %v3089 = vpop.f32.mrf.mxu0
    %v3090 = vadd.f32 0.0, %v3089
    %v3091 = vpop.f32.mrf.mxu0
    %3092 = vdwg.mxu0
    %v3094 = vsel %vm277, %v2681, 0
    %v3097 = vsel %vm277, %v2745, 0
    %3099 = vmatpush.bf16.xpose.msra.mxu0 0
    %3100 = vmatpush.bf16.xpose.msra.mxu0 0
    %3101 = vmatpush.bf16.xpose.msra.mxu0 0
    %3102 = vmatpush.bf16.xpose.msra.mxu0 0
    %3103 = vmatpush.bf16.xpose.msra.mxu0 0
    %3104 = vmatpush.bf16.xpose.msra.mxu0 0
    %3105 = vmatpush.bf16.xpose.msra.mxu0 0
    %3106 = vmatpush.bf16.xpose.msra.mxu0 %v3097
    %3107 = vmatmul.bf16.gmra.mxu0 %v3094
    %v3108 = vpop.f32.mrf.mxu0
    %v3109 = vadd.f32 0.0, %v3108
    %v3110 = vpop.f32.mrf.mxu0
    %3111 = vdwg.mxu0
    %v3113 = vsel %vm277, %v2682, 0
    %v3116 = vsel %vm277, %v2746, 0
    %3118 = vmatpush.bf16.xpose.msra.mxu0 0
    %3119 = vmatpush.bf16.xpose.msra.mxu0 0
    %3120 = vmatpush.bf16.xpose.msra.mxu0 0
    %3121 = vmatpush.bf16.xpose.msra.mxu0 0
    %3122 = vmatpush.bf16.xpose.msra.mxu0 0
    %3123 = vmatpush.bf16.xpose.msra.mxu0 0
    %3124 = vmatpush.bf16.xpose.msra.mxu0 0
    %3125 = vmatpush.bf16.xpose.msra.mxu0 %v3116
    %3126 = vmatmul.bf16.gmra.mxu0 %v3113
    %v3127 = vpop.f32.mrf.mxu0
    %v3128 = vadd.f32 0.0, %v3127
    %v3129 = vpop.f32.mrf.mxu0
    %3130 = vdwg.mxu0
    %v3132 = vsel %vm277, %v2683, 0
    %v3135 = vsel %vm277, %v2747, 0
    %3137 = vmatpush.bf16.xpose.msra.mxu0 0
    %3138 = vmatpush.bf16.xpose.msra.mxu0 0
    %3139 = vmatpush.bf16.xpose.msra.mxu0 0
    %3140 = vmatpush.bf16.xpose.msra.mxu0 0
    %3141 = vmatpush.bf16.xpose.msra.mxu0 0
    %3142 = vmatpush.bf16.xpose.msra.mxu0 0
    %3143 = vmatpush.bf16.xpose.msra.mxu0 0
    %3144 = vmatpush.bf16.xpose.msra.mxu0 %v3135
    %3145 = vmatmul.bf16.gmra.mxu0 %v3132
    %v3146 = vpop.f32.mrf.mxu0
    %v3147 = vadd.f32 0.0, %v3146
    %v3148 = vpop.f32.mrf.mxu0
    %3149 = vdwg.mxu0
    %v3151 = vsel %vm277, %v2684, 0
    %v3154 = vsel %vm277, %v2748, 0
    %3156 = vmatpush.bf16.xpose.msra.mxu0 0
    %3157 = vmatpush.bf16.xpose.msra.mxu0 0
    %3158 = vmatpush.bf16.xpose.msra.mxu0 0
    %3159 = vmatpush.bf16.xpose.msra.mxu0 0
    %3160 = vmatpush.bf16.xpose.msra.mxu0 0
    %3161 = vmatpush.bf16.xpose.msra.mxu0 0
    %3162 = vmatpush.bf16.xpose.msra.mxu0 0
    %3163 = vmatpush.bf16.xpose.msra.mxu0 %v3154
    %3164 = vmatmul.bf16.gmra.mxu0 %v3151
    %v3165 = vpop.f32.mrf.mxu0
    %v3166 = vadd.f32 0.0, %v3165
    %v3167 = vpop.f32.mrf.mxu0
    %3168 = vdwg.mxu0
    %v3170 = vsel %vm277, %v2685, 0
    %v3173 = vsel %vm277, %v2749, 0
    %3175 = vmatpush.bf16.xpose.msra.mxu0 0
    %3176 = vmatpush.bf16.xpose.msra.mxu0 0
    %3177 = vmatpush.bf16.xpose.msra.mxu0 0
    %3178 = vmatpush.bf16.xpose.msra.mxu0 0
    %3179 = vmatpush.bf16.xpose.msra.mxu0 0
    %3180 = vmatpush.bf16.xpose.msra.mxu0 0
    %3181 = vmatpush.bf16.xpose.msra.mxu0 0
    %3182 = vmatpush.bf16.xpose.msra.mxu0 %v3173
    %3183 = vmatmul.bf16.gmra.mxu0 %v3170
    %v3184 = vpop.f32.mrf.mxu0
    %v3185 = vadd.f32 0.0, %v3184
    %v3186 = vpop.f32.mrf.mxu0
    %3187 = vdwg.mxu0
    %v3189 = vsel %vm277, %v2686, 0
    %v3192 = vsel %vm277, %v2750, 0
    %3194 = vmatpush.bf16.xpose.msra.mxu0 0
    %3195 = vmatpush.bf16.xpose.msra.mxu0 0
    %3196 = vmatpush.bf16.xpose.msra.mxu0 0
    %3197 = vmatpush.bf16.xpose.msra.mxu0 0
    %3198 = vmatpush.bf16.xpose.msra.mxu0 0
    %3199 = vmatpush.bf16.xpose.msra.mxu0 0
    %3200 = vmatpush.bf16.xpose.msra.mxu0 0
    %3201 = vmatpush.bf16.xpose.msra.mxu0 %v3192
    %3202 = vmatmul.bf16.gmra.mxu0 %v3189
    %v3203 = vpop.f32.mrf.mxu0
    %v3204 = vadd.f32 0.0, %v3203
    %v3205 = vpop.f32.mrf.mxu0
    %3206 = vdwg.mxu0
    %v3208 = vsel %vm277, %v2687, 0
    %v3211 = vsel %vm277, %v2751, 0
    %3213 = vmatpush.bf16.xpose.msra.mxu0 0
    %3214 = vmatpush.bf16.xpose.msra.mxu0 0
    %3215 = vmatpush.bf16.xpose.msra.mxu0 0
    %3216 = vmatpush.bf16.xpose.msra.mxu0 0
    %3217 = vmatpush.bf16.xpose.msra.mxu0 0
    %3218 = vmatpush.bf16.xpose.msra.mxu0 0
    %3219 = vmatpush.bf16.xpose.msra.mxu0 0
    %3220 = vmatpush.bf16.xpose.msra.mxu0 %v3211
    %3221 = vmatmul.bf16.gmra.mxu0 %v3208
    %v3222 = vpop.f32.mrf.mxu0
    %v3223 = vadd.f32 0.0, %v3222
    %v3224 = vpop.f32.mrf.mxu0
    %3225 = vdwg.mxu0
    %v3227 = vsel %vm277, %v2688, 0
    %v3230 = vsel %vm277, %v2752, 0
    %3232 = vmatpush.bf16.xpose.msra.mxu0 0
    %3233 = vmatpush.bf16.xpose.msra.mxu0 0
    %3234 = vmatpush.bf16.xpose.msra.mxu0 0
    %3235 = vmatpush.bf16.xpose.msra.mxu0 0
    %3236 = vmatpush.bf16.xpose.msra.mxu0 0
    %3237 = vmatpush.bf16.xpose.msra.mxu0 0
    %3238 = vmatpush.bf16.xpose.msra.mxu0 0
    %3239 = vmatpush.bf16.xpose.msra.mxu0 %v3230
    %3240 = vmatmul.bf16.gmra.mxu0 %v3227
    %v3241 = vpop.f32.mrf.mxu0
    %v3242 = vadd.f32 0.0, %v3241
    %v3243 = vpop.f32.mrf.mxu0
    %3244 = vdwg.mxu0
    %v3246 = vsel %vm277, %v2689, 0
    %v3249 = vsel %vm277, %v2753, 0
    %3251 = vmatpush.bf16.xpose.msra.mxu0 0
    %3252 = vmatpush.bf16.xpose.msra.mxu0 0
    %3253 = vmatpush.bf16.xpose.msra.mxu0 0
    %3254 = vmatpush.bf16.xpose.msra.mxu0 0
    %3255 = vmatpush.bf16.xpose.msra.mxu0 0
    %3256 = vmatpush.bf16.xpose.msra.mxu0 0
    %3257 = vmatpush.bf16.xpose.msra.mxu0 0
    %3258 = vmatpush.bf16.xpose.msra.mxu0 %v3249
    %3259 = vmatmul.bf16.gmra.mxu0 %v3246
    %v3260 = vpop.f32.mrf.mxu0
    %v3261 = vadd.f32 0.0, %v3260
    %v3262 = vpop.f32.mrf.mxu0
    %3263 = vdwg.mxu0
    %v3265 = vsel %vm277, %v2690, 0
    %v3268 = vsel %vm277, %v2754, 0
    %3270 = vmatpush.bf16.xpose.msra.mxu0 0
    %3271 = vmatpush.bf16.xpose.msra.mxu0 0
    %3272 = vmatpush.bf16.xpose.msra.mxu0 0
    %3273 = vmatpush.bf16.xpose.msra.mxu0 0
    %3274 = vmatpush.bf16.xpose.msra.mxu0 0
    %3275 = vmatpush.bf16.xpose.msra.mxu0 0
    %3276 = vmatpush.bf16.xpose.msra.mxu0 0
    %3277 = vmatpush.bf16.xpose.msra.mxu0 %v3268
    %3278 = vmatmul.bf16.gmra.mxu0 %v3265
    %v3279 = vpop.f32.mrf.mxu0
    %v3280 = vadd.f32 0.0, %v3279
    %v3281 = vpop.f32.mrf.mxu0
    %3282 = vdwg.mxu0
    %v3284 = vsel %vm277, %v2691, 0
    %v3287 = vsel %vm277, %v2755, 0
    %3289 = vmatpush.bf16.xpose.msra.mxu0 0
    %3290 = vmatpush.bf16.xpose.msra.mxu0 0
    %3291 = vmatpush.bf16.xpose.msra.mxu0 0
    %3292 = vmatpush.bf16.xpose.msra.mxu0 0
    %3293 = vmatpush.bf16.xpose.msra.mxu0 0
    %3294 = vmatpush.bf16.xpose.msra.mxu0 0
    %3295 = vmatpush.bf16.xpose.msra.mxu0 0
    %3296 = vmatpush.bf16.xpose.msra.mxu0 %v3287
    %3297 = vmatmul.bf16.gmra.mxu0 %v3284
    %v3298 = vpop.f32.mrf.mxu0
    %v3299 = vadd.f32 0.0, %v3298
    %v3300 = vpop.f32.mrf.mxu0
    %3301 = vdwg.mxu0
    %v3303 = vsel %vm277, %v2692, 0
    %v3306 = vsel %vm277, %v2756, 0
    %3308 = vmatpush.bf16.xpose.msra.mxu0 0
    %3309 = vmatpush.bf16.xpose.msra.mxu0 0
    %3310 = vmatpush.bf16.xpose.msra.mxu0 0
    %3311 = vmatpush.bf16.xpose.msra.mxu0 0
    %3312 = vmatpush.bf16.xpose.msra.mxu0 0
    %3313 = vmatpush.bf16.xpose.msra.mxu0 0
    %3314 = vmatpush.bf16.xpose.msra.mxu0 0
    %3315 = vmatpush.bf16.xpose.msra.mxu0 %v3306
    %3316 = vmatmul.bf16.gmra.mxu0 %v3303
    %v3317 = vpop.f32.mrf.mxu0
    %v3318 = vadd.f32 0.0, %v3317
    %v3319 = vpop.f32.mrf.mxu0
    %3320 = vdwg.mxu0
    %v3322 = vsel %vm277, %v2693, 0
    %v3325 = vsel %vm277, %v2757, 0
    %3327 = vmatpush.bf16.xpose.msra.mxu0 0
    %3328 = vmatpush.bf16.xpose.msra.mxu0 0
    %3329 = vmatpush.bf16.xpose.msra.mxu0 0
    %3330 = vmatpush.bf16.xpose.msra.mxu0 0
    %3331 = vmatpush.bf16.xpose.msra.mxu0 0
    %3332 = vmatpush.bf16.xpose.msra.mxu0 0
    %3333 = vmatpush.bf16.xpose.msra.mxu0 0
    %3334 = vmatpush.bf16.xpose.msra.mxu0 %v3325
    %3335 = vmatmul.bf16.gmra.mxu0 %v3322
    %v3336 = vpop.f32.mrf.mxu0
    %v3337 = vadd.f32 0.0, %v3336
    %v3338 = vpop.f32.mrf.mxu0
    %3339 = vdwg.mxu0
    %v3341 = vsel %vm277, %v2694, 0
    %v3344 = vsel %vm277, %v2758, 0
    %3346 = vmatpush.bf16.xpose.msra.mxu0 0
    %3347 = vmatpush.bf16.xpose.msra.mxu0 0
    %3348 = vmatpush.bf16.xpose.msra.mxu0 0
    %3349 = vmatpush.bf16.xpose.msra.mxu0 0
    %3350 = vmatpush.bf16.xpose.msra.mxu0 0
    %3351 = vmatpush.bf16.xpose.msra.mxu0 0
    %3352 = vmatpush.bf16.xpose.msra.mxu0 0
    %3353 = vmatpush.bf16.xpose.msra.mxu0 %v3344
    %3354 = vmatmul.bf16.gmra.mxu0 %v3341
    %v3355 = vpop.f32.mrf.mxu0
    %v3356 = vadd.f32 0.0, %v3355
    %v3357 = vpop.f32.mrf.mxu0
    %3358 = vdwg.mxu0
    %v3360 = vsel %vm277, %v2695, 0
    %v3363 = vsel %vm277, %v2759, 0
    %3365 = vmatpush.bf16.xpose.msra.mxu0 0
    %3366 = vmatpush.bf16.xpose.msra.mxu0 0
    %3367 = vmatpush.bf16.xpose.msra.mxu0 0
    %3368 = vmatpush.bf16.xpose.msra.mxu0 0
    %3369 = vmatpush.bf16.xpose.msra.mxu0 0
    %3370 = vmatpush.bf16.xpose.msra.mxu0 0
    %3371 = vmatpush.bf16.xpose.msra.mxu0 0
    %3372 = vmatpush.bf16.xpose.msra.mxu0 %v3363
    %3373 = vmatmul.bf16.gmra.mxu0 %v3360
    %v3374 = vpop.f32.mrf.mxu0
    %v3375 = vadd.f32 0.0, %v3374
    %v3376 = vpop.f32.mrf.mxu0
    %3377 = vdwg.mxu0
    %v3379 = vsel %vm277, %v2696, 0
    %v3382 = vsel %vm277, %v2760, 0
    %3384 = vmatpush.bf16.xpose.msra.mxu0 0
    %3385 = vmatpush.bf16.xpose.msra.mxu0 0
    %3386 = vmatpush.bf16.xpose.msra.mxu0 0
    %3387 = vmatpush.bf16.xpose.msra.mxu0 0
    %3388 = vmatpush.bf16.xpose.msra.mxu0 0
    %3389 = vmatpush.bf16.xpose.msra.mxu0 0
    %3390 = vmatpush.bf16.xpose.msra.mxu0 0
    %3391 = vmatpush.bf16.xpose.msra.mxu0 %v3382
    %3392 = vmatmul.bf16.gmra.mxu0 %v3379
    %v3393 = vpop.f32.mrf.mxu0
    %v3394 = vadd.f32 0.0, %v3393
    %v3395 = vpop.f32.mrf.mxu0
    %3396 = vdwg.mxu0
    %v3398 = vsel %vm277, %v2697, 0
    %v3401 = vsel %vm277, %v2761, 0
    %3403 = vmatpush.bf16.xpose.msra.mxu0 0
    %3404 = vmatpush.bf16.xpose.msra.mxu0 0
    %3405 = vmatpush.bf16.xpose.msra.mxu0 0
    %3406 = vmatpush.bf16.xpose.msra.mxu0 0
    %3407 = vmatpush.bf16.xpose.msra.mxu0 0
    %3408 = vmatpush.bf16.xpose.msra.mxu0 0
    %3409 = vmatpush.bf16.xpose.msra.mxu0 0
    %3410 = vmatpush.bf16.xpose.msra.mxu0 %v3401
    %3411 = vmatmul.bf16.gmra.mxu0 %v3398
    %v3412 = vpop.f32.mrf.mxu0
    %v3413 = vadd.f32 0.0, %v3412
    %v3414 = vpop.f32.mrf.mxu0
    %3415 = vdwg.mxu0
    %v3417 = vsel %vm277, %v2698, 0
    %v3420 = vsel %vm277, %v2762, 0
    %3422 = vmatpush.bf16.xpose.msra.mxu0 0
    %3423 = vmatpush.bf16.xpose.msra.mxu0 0
    %3424 = vmatpush.bf16.xpose.msra.mxu0 0
    %3425 = vmatpush.bf16.xpose.msra.mxu0 0
    %3426 = vmatpush.bf16.xpose.msra.mxu0 0
    %3427 = vmatpush.bf16.xpose.msra.mxu0 0
    %3428 = vmatpush.bf16.xpose.msra.mxu0 0
    %3429 = vmatpush.bf16.xpose.msra.mxu0 %v3420
    %3430 = vmatmul.bf16.gmra.mxu0 %v3417
    %v3431 = vpop.f32.mrf.mxu0
    %v3432 = vadd.f32 0.0, %v3431
    %v3433 = vpop.f32.mrf.mxu0
    %3434 = vdwg.mxu0
    %v3435 = vsel %vm1211, %v2843, -inf
    %3436 = vmax.xlane.f32.xlu0 %v3435
    %v3437 = vpop.xlane.xlu0 %3436
    %v3438 = vsel %vm1211, %v2862, -inf
    %3439 = vmax.xlane.f32.xlu0 %v3438
    %v3440 = vpop.xlane.xlu0 %3439
    %v3441 = vsel %vm1211, %v2881, -inf
    %3442 = vmax.xlane.f32.xlu0 %v3441
    %v3443 = vpop.xlane.xlu0 %3442
    %v3444 = vsel %vm1211, %v2900, -inf
    %3445 = vmax.xlane.f32.xlu0 %v3444
    %v3446 = vpop.xlane.xlu0 %3445
    %v3447 = vsel %vm1211, %v2919, -inf
    %3448 = vmax.xlane.f32.xlu0 %v3447
    %v3449 = vpop.xlane.xlu0 %3448
    %v3450 = vsel %vm1211, %v2938, -inf
    %3451 = vmax.xlane.f32.xlu0 %v3450
    %v3452 = vpop.xlane.xlu0 %3451
    %v3453 = vsel %vm1211, %v2957, -inf
    %3454 = vmax.xlane.f32.xlu0 %v3453
    %v3455 = vpop.xlane.xlu0 %3454
    %v3456 = vsel %vm1211, %v2976, -inf
    %3457 = vmax.xlane.f32.xlu0 %v3456
    %v3458 = vpop.xlane.xlu0 %3457
    %v3459 = vsel %vm1211, %v2995, -inf
    %3460 = vmax.xlane.f32.xlu0 %v3459
    %v3461 = vpop.xlane.xlu0 %3460
    %v3462 = vsel %vm1211, %v3014, -inf
    %3463 = vmax.xlane.f32.xlu0 %v3462
    %v3464 = vpop.xlane.xlu0 %3463
    %v3465 = vsel %vm1211, %v3033, -inf
    %3466 = vmax.xlane.f32.xlu0 %v3465
    %v3467 = vpop.xlane.xlu0 %3466
    %v3468 = vsel %vm1211, %v3052, -inf
    %3469 = vmax.xlane.f32.xlu0 %v3468
    %v3470 = vpop.xlane.xlu0 %3469
    %v3471 = vsel %vm1211, %v3071, -inf
    %3472 = vmax.xlane.f32.xlu0 %v3471
    %v3473 = vpop.xlane.xlu0 %3472
    %v3474 = vsel %vm1211, %v3090, -inf
    %3475 = vmax.xlane.f32.xlu0 %v3474
    %v3476 = vpop.xlane.xlu0 %3475
    %v3477 = vsel %vm1211, %v3109, -inf
    %3478 = vmax.xlane.f32.xlu0 %v3477
    %v3479 = vpop.xlane.xlu0 %3478
    %v3480 = vsel %vm1211, %v3128, -inf
    %3481 = vmax.xlane.f32.xlu0 %v3480
    %v3482 = vpop.xlane.xlu0 %3481
    %v3483 = vsel %vm1211, %v3147, -inf
    %3484 = vmax.xlane.f32.xlu0 %v3483
    %v3485 = vpop.xlane.xlu0 %3484
    %v3486 = vsel %vm1211, %v3166, -inf
    %3487 = vmax.xlane.f32.xlu0 %v3486
    %v3488 = vpop.xlane.xlu0 %3487
    %v3489 = vsel %vm1211, %v3185, -inf
    %3490 = vmax.xlane.f32.xlu0 %v3489
    %v3491 = vpop.xlane.xlu0 %3490
    %v3492 = vsel %vm1211, %v3204, -inf
    %3493 = vmax.xlane.f32.xlu0 %v3492
    %v3494 = vpop.xlane.xlu0 %3493
    %v3495 = vsel %vm1211, %v3223, -inf
    %3496 = vmax.xlane.f32.xlu0 %v3495
    %v3497 = vpop.xlane.xlu0 %3496
    %v3498 = vsel %vm1211, %v3242, -inf
    %3499 = vmax.xlane.f32.xlu0 %v3498
    %v3500 = vpop.xlane.xlu0 %3499
    %v3501 = vsel %vm1211, %v3261, -inf
    %3502 = vmax.xlane.f32.xlu0 %v3501
    %v3503 = vpop.xlane.xlu0 %3502
    %v3504 = vsel %vm1211, %v3280, -inf
    %3505 = vmax.xlane.f32.xlu0 %v3504
    %v3506 = vpop.xlane.xlu0 %3505
    %v3507 = vsel %vm1211, %v3299, -inf
    %3508 = vmax.xlane.f32.xlu0 %v3507
    %v3509 = vpop.xlane.xlu0 %3508
    %v3510 = vsel %vm1211, %v3318, -inf
    %3511 = vmax.xlane.f32.xlu0 %v3510
    %v3512 = vpop.xlane.xlu0 %3511
    %v3513 = vsel %vm1211, %v3337, -inf
    %3514 = vmax.xlane.f32.xlu0 %v3513
    %v3515 = vpop.xlane.xlu0 %3514
    %v3516 = vsel %vm1211, %v3356, -inf
    %3517 = vmax.xlane.f32.xlu0 %v3516
    %v3518 = vpop.xlane.xlu0 %3517
    %v3519 = vsel %vm1211, %v3375, -inf
    %3520 = vmax.xlane.f32.xlu0 %v3519
    %v3521 = vpop.xlane.xlu0 %3520
    %v3522 = vsel %vm1211, %v3394, -inf
    %3523 = vmax.xlane.f32.xlu0 %v3522
    %v3524 = vpop.xlane.xlu0 %3523
    %v3525 = vsel %vm1211, %v3413, -inf
    %3526 = vmax.xlane.f32.xlu0 %v3525
    %v3527 = vpop.xlane.xlu0 %3526
    %v3528 = vsel %vm1211, %v3432, -inf
    %3529 = vmax.xlane.f32.xlu0 %v3528
    %v3530 = vpop.xlane.xlu0 %3529
    %v3531 = vsub.f32 %v2843, %v3437
    %v3532 = vsub.f32 %v2862, %v3440
    %v3533 = vsub.f32 %v2881, %v3443
    %v3534 = vsub.f32 %v2900, %v3446
    %v3535 = vsub.f32 %v2919, %v3449
    %v3536 = vsub.f32 %v2938, %v3452
    %v3537 = vsub.f32 %v2957, %v3455
    %v3538 = vsub.f32 %v2976, %v3458
    %v3539 = vsub.f32 %v2995, %v3461
    %v3540 = vsub.f32 %v3014, %v3464
    %v3541 = vsub.f32 %v3033, %v3467
    %v3542 = vsub.f32 %v3052, %v3470
    %v3543 = vsub.f32 %v3071, %v3473
    %v3544 = vsub.f32 %v3090, %v3476
    %v3545 = vsub.f32 %v3109, %v3479
    %v3546 = vsub.f32 %v3128, %v3482
    %v3547 = vsub.f32 %v3147, %v3485
    %v3548 = vsub.f32 %v3166, %v3488
    %v3549 = vsub.f32 %v3185, %v3491
    %v3550 = vsub.f32 %v3204, %v3494
    %v3551 = vsub.f32 %v3223, %v3497
    %v3552 = vsub.f32 %v3242, %v3500
    %v3553 = vsub.f32 %v3261, %v3503
    %v3554 = vsub.f32 %v3280, %v3506
    %v3555 = vsub.f32 %v3299, %v3509
    %v3556 = vsub.f32 %v3318, %v3512
    %v3557 = vsub.f32 %v3337, %v3515
    %v3558 = vsub.f32 %v3356, %v3518
    %v3559 = vsub.f32 %v3375, %v3521
    %v3560 = vsub.f32 %v3394, %v3524
    %v3561 = vsub.f32 %v3413, %v3527
    %v3562 = vsub.f32 %v3432, %v3530
    %v3563 = vmul.f32 %v3531, 1.442695
    %v3564 = vpow.pop %v3563
    %v3565 = vmul.f32 %v3532, 1.442695
    %v3566 = vpow.pop %v3565
    %v3567 = vmul.f32 %v3533, 1.442695
    %v3568 = vpow.pop %v3567
    %v3569 = vmul.f32 %v3534, 1.442695
    %v3570 = vpow.pop %v3569
    %v3571 = vmul.f32 %v3535, 1.442695
    %v3572 = vpow.pop %v3571
    %v3573 = vmul.f32 %v3536, 1.442695
    %v3574 = vpow.pop %v3573
    %v3575 = vmul.f32 %v3537, 1.442695
    %v3576 = vpow.pop %v3575
    %v3577 = vmul.f32 %v3538, 1.442695
    %v3578 = vpow.pop %v3577
    %v3579 = vmul.f32 %v3539, 1.442695
    %v3580 = vpow.pop %v3579
    %v3581 = vmul.f32 %v3540, 1.442695
    %v3582 = vpow.pop %v3581
    %v3583 = vmul.f32 %v3541, 1.442695
    %v3584 = vpow.pop %v3583
    %v3585 = vmul.f32 %v3542, 1.442695
    %v3586 = vpow.pop %v3585
    %v3587 = vmul.f32 %v3543, 1.442695
    %v3588 = vpow.pop %v3587
    %v3589 = vmul.f32 %v3544, 1.442695
    %v3590 = vpow.pop %v3589
    %v3591 = vmul.f32 %v3545, 1.442695
    %v3592 = vpow.pop %v3591
    %v3593 = vmul.f32 %v3546, 1.442695
    %v3594 = vpow.pop %v3593
    %v3595 = vmul.f32 %v3547, 1.442695
    %v3596 = vpow.pop %v3595
    %v3597 = vmul.f32 %v3548, 1.442695
    %v3598 = vpow.pop %v3597
    %v3599 = vmul.f32 %v3549, 1.442695
    %v3600 = vpow.pop %v3599
    %v3601 = vmul.f32 %v3550, 1.442695
    %v3602 = vpow.pop %v3601
    %v3603 = vmul.f32 %v3551, 1.442695
    %v3604 = vpow.pop %v3603
    %v3605 = vmul.f32 %v3552, 1.442695
    %v3606 = vpow.pop %v3605
    %v3607 = vmul.f32 %v3553, 1.442695
    %v3608 = vpow.pop %v3607
    %v3609 = vmul.f32 %v3554, 1.442695
    %v3610 = vpow.pop %v3609
    %v3611 = vmul.f32 %v3555, 1.442695
    %v3612 = vpow.pop %v3611
    %v3613 = vmul.f32 %v3556, 1.442695
    %v3614 = vpow.pop %v3613
    %v3615 = vmul.f32 %v3557, 1.442695
    %v3616 = vpow.pop %v3615
    %v3617 = vmul.f32 %v3558, 1.442695
    %v3618 = vpow.pop %v3617
    %v3619 = vmul.f32 %v3559, 1.442695
    %v3620 = vpow.pop %v3619
    %v3621 = vmul.f32 %v3560, 1.442695
    %v3622 = vpow.pop %v3621
    %v3623 = vmul.f32 %v3561, 1.442695
    %v3624 = vpow.pop %v3623
    %v3625 = vmul.f32 %v3562, 1.442695
    %v3626 = vpow.pop %v3625
    %v3627 = vsel %vm1211, %v3564, 0.0
    %3628 = vadd.xlane.f32.xlu0 %v3627
    %v3629 = vpop.xlane.xlu0 %3628
    %v3630 = vsel %vm1211, %v3566, 0.0
    %3631 = vadd.xlane.f32.xlu0 %v3630
    %v3632 = vpop.xlane.xlu0 %3631
    %v3633 = vsel %vm1211, %v3568, 0.0
    %3634 = vadd.xlane.f32.xlu0 %v3633
    %v3635 = vpop.xlane.xlu0 %3634
    %v3636 = vsel %vm1211, %v3570, 0.0
    %3637 = vadd.xlane.f32.xlu0 %v3636
    %v3638 = vpop.xlane.xlu0 %3637
    %v3639 = vsel %vm1211, %v3572, 0.0
    %3640 = vadd.xlane.f32.xlu0 %v3639
    %v3641 = vpop.xlane.xlu0 %3640
    %v3642 = vsel %vm1211, %v3574, 0.0
    %3643 = vadd.xlane.f32.xlu0 %v3642
    %v3644 = vpop.xlane.xlu0 %3643
    %v3645 = vsel %vm1211, %v3576, 0.0
    %3646 = vadd.xlane.f32.xlu0 %v3645
    %v3647 = vpop.xlane.xlu0 %3646
    %v3648 = vsel %vm1211, %v3578, 0.0
    %3649 = vadd.xlane.f32.xlu0 %v3648
    %v3650 = vpop.xlane.xlu0 %3649
    %v3651 = vsel %vm1211, %v3580, 0.0
    %3652 = vadd.xlane.f32.xlu0 %v3651
    %v3653 = vpop.xlane.xlu0 %3652
    %v3654 = vsel %vm1211, %v3582, 0.0
    %3655 = vadd.xlane.f32.xlu0 %v3654
    %v3656 = vpop.xlane.xlu0 %3655
    %v3657 = vsel %vm1211, %v3584, 0.0
    %3658 = vadd.xlane.f32.xlu0 %v3657
    %v3659 = vpop.xlane.xlu0 %3658
    %v3660 = vsel %vm1211, %v3586, 0.0
    %3661 = vadd.xlane.f32.xlu0 %v3660
    %v3662 = vpop.xlane.xlu0 %3661
    %v3663 = vsel %vm1211, %v3588, 0.0
    %3664 = vadd.xlane.f32.xlu0 %v3663
    %v3665 = vpop.xlane.xlu0 %3664
    %v3666 = vsel %vm1211, %v3590, 0.0
    %3667 = vadd.xlane.f32.xlu0 %v3666
    %v3668 = vpop.xlane.xlu0 %3667
    %v3669 = vsel %vm1211, %v3592, 0.0
    %3670 = vadd.xlane.f32.xlu0 %v3669
    %v3671 = vpop.xlane.xlu0 %3670
    %v3672 = vsel %vm1211, %v3594, 0.0
    %3673 = vadd.xlane.f32.xlu0 %v3672
    %v3674 = vpop.xlane.xlu0 %3673
    %v3675 = vsel %vm1211, %v3596, 0.0
    %3676 = vadd.xlane.f32.xlu0 %v3675
    %v3677 = vpop.xlane.xlu0 %3676
    %v3678 = vsel %vm1211, %v3598, 0.0
    %3679 = vadd.xlane.f32.xlu0 %v3678
    %v3680 = vpop.xlane.xlu0 %3679
    %v3681 = vsel %vm1211, %v3600, 0.0
    %3682 = vadd.xlane.f32.xlu0 %v3681
    %v3683 = vpop.xlane.xlu0 %3682
    %v3684 = vsel %vm1211, %v3602, 0.0
    %3685 = vadd.xlane.f32.xlu0 %v3684
    %v3686 = vpop.xlane.xlu0 %3685
    %v3687 = vsel %vm1211, %v3604, 0.0
    %3688 = vadd.xlane.f32.xlu0 %v3687
    %v3689 = vpop.xlane.xlu0 %3688
    %v3690 = vsel %vm1211, %v3606, 0.0
    %3691 = vadd.xlane.f32.xlu0 %v3690
    %v3692 = vpop.xlane.xlu0 %3691
    %v3693 = vsel %vm1211, %v3608, 0.0
    %3694 = vadd.xlane.f32.xlu0 %v3693
    %v3695 = vpop.xlane.xlu0 %3694
    %v3696 = vsel %vm1211, %v3610, 0.0
    %3697 = vadd.xlane.f32.xlu0 %v3696
    %v3698 = vpop.xlane.xlu0 %3697
    %v3699 = vsel %vm1211, %v3612, 0.0
    %3700 = vadd.xlane.f32.xlu0 %v3699
    %v3701 = vpop.xlane.xlu0 %3700
    %v3702 = vsel %vm1211, %v3614, 0.0
    %3703 = vadd.xlane.f32.xlu0 %v3702
    %v3704 = vpop.xlane.xlu0 %3703
    %v3705 = vsel %vm1211, %v3616, 0.0
    %3706 = vadd.xlane.f32.xlu0 %v3705
    %v3707 = vpop.xlane.xlu0 %3706
    %v3708 = vsel %vm1211, %v3618, 0.0
    %3709 = vadd.xlane.f32.xlu0 %v3708
    %v3710 = vpop.xlane.xlu0 %3709
    %v3711 = vsel %vm1211, %v3620, 0.0
    %3712 = vadd.xlane.f32.xlu0 %v3711
    %v3713 = vpop.xlane.xlu0 %3712
    %v3714 = vsel %vm1211, %v3622, 0.0
    %3715 = vadd.xlane.f32.xlu0 %v3714
    %v3716 = vpop.xlane.xlu0 %3715
    %v3717 = vsel %vm1211, %v3624, 0.0
    %3718 = vadd.xlane.f32.xlu0 %v3717
    %v3719 = vpop.xlane.xlu0 %3718
    %v3720 = vsel %vm1211, %v3626, 0.0
    %3721 = vadd.xlane.f32.xlu0 %v3720
    %v3722 = vpop.xlane.xlu0 %3721
    %v3723 = vrcp.pop %v3629
    %v3724 = vrcp.pop %v3632
    %v3725 = vrcp.pop %v3635
    %v3726 = vrcp.pop %v3638
    %v3727 = vrcp.pop %v3641
    %v3728 = vrcp.pop %v3644
    %v3729 = vrcp.pop %v3647
    %v3730 = vrcp.pop %v3650
    %v3731 = vrcp.pop %v3653
    %v3732 = vrcp.pop %v3656
    %v3733 = vrcp.pop %v3659
    %v3734 = vrcp.pop %v3662
    %v3735 = vrcp.pop %v3665
    %v3736 = vrcp.pop %v3668
    %v3737 = vrcp.pop %v3671
    %v3738 = vrcp.pop %v3674
    %v3739 = vrcp.pop %v3677
    %v3740 = vrcp.pop %v3680
    %v3741 = vrcp.pop %v3683
    %v3742 = vrcp.pop %v3686
    %v3743 = vrcp.pop %v3689
    %v3744 = vrcp.pop %v3692
    %v3745 = vrcp.pop %v3695
    %v3746 = vrcp.pop %v3698
    %v3747 = vrcp.pop %v3701
    %v3748 = vrcp.pop %v3704
    %v3749 = vrcp.pop %v3707
    %v3750 = vrcp.pop %v3710
    %v3751 = vrcp.pop %v3713
    %v3752 = vrcp.pop %v3716
    %v3753 = vrcp.pop %v3719
    %v3754 = vrcp.pop %v3722
    %v3755 = vmul.f32 %v3564, %v3723
    %v3756 = vmul.f32 %v3566, %v3724
    %v3757 = vmul.f32 %v3568, %v3725
    %v3758 = vmul.f32 %v3570, %v3726
    %v3759 = vmul.f32 %v3572, %v3727
    %v3760 = vmul.f32 %v3574, %v3728
    %v3761 = vmul.f32 %v3576, %v3729
    %v3762 = vmul.f32 %v3578, %v3730
    %v3763 = vmul.f32 %v3580, %v3731
    %v3764 = vmul.f32 %v3582, %v3732
    %v3765 = vmul.f32 %v3584, %v3733
    %v3766 = vmul.f32 %v3586, %v3734
    %v3767 = vmul.f32 %v3588, %v3735
    %v3768 = vmul.f32 %v3590, %v3736
    %v3769 = vmul.f32 %v3592, %v3737
    %v3770 = vmul.f32 %v3594, %v3738
    %v3771 = vmul.f32 %v3596, %v3739
    %v3772 = vmul.f32 %v3598, %v3740
    %v3773 = vmul.f32 %v3600, %v3741
    %v3774 = vmul.f32 %v3602, %v3742
    %v3775 = vmul.f32 %v3604, %v3743
    %v3776 = vmul.f32 %v3606, %v3744
    %v3777 = vmul.f32 %v3608, %v3745
    %v3778 = vmul.f32 %v3610, %v3746
    %v3779 = vmul.f32 %v3612, %v3747
    %v3780 = vmul.f32 %v3614, %v3748
    %v3781 = vmul.f32 %v3616, %v3749
    %v3782 = vmul.f32 %v3618, %v3750
    %v3783 = vmul.f32 %v3620, %v3751
    %v3784 = vmul.f32 %v3622, %v3752
    %v3785 = vmul.f32 %v3624, %v3753
    %v3786 = vmul.f32 %v3626, %v3754
    %v3787 = vpack.c.bf16 %v3755, %v3755
    %v3788 = vpack.c.bf16 %v3756, %v3756
    %v3789 = vpack.c.bf16 %v3757, %v3757
    %v3790 = vpack.c.bf16 %v3758, %v3758
    %v3791 = vpack.c.bf16 %v3759, %v3759
    %v3792 = vpack.c.bf16 %v3760, %v3760
    %v3793 = vpack.c.bf16 %v3761, %v3761
    %v3794 = vpack.c.bf16 %v3762, %v3762
    %v3795 = vpack.c.bf16 %v3763, %v3763
    %v3796 = vpack.c.bf16 %v3764, %v3764
    %v3797 = vpack.c.bf16 %v3765, %v3765
    %v3798 = vpack.c.bf16 %v3766, %v3766
    %v3799 = vpack.c.bf16 %v3767, %v3767
    %v3800 = vpack.c.bf16 %v3768, %v3768
    %v3801 = vpack.c.bf16 %v3769, %v3769
    %v3802 = vpack.c.bf16 %v3770, %v3770
    %v3803 = vpack.c.bf16 %v3771, %v3771
    %v3804 = vpack.c.bf16 %v3772, %v3772
    %v3805 = vpack.c.bf16 %v3773, %v3773
    %v3806 = vpack.c.bf16 %v3774, %v3774
    %v3807 = vpack.c.bf16 %v3775, %v3775
    %v3808 = vpack.c.bf16 %v3776, %v3776
    %v3809 = vpack.c.bf16 %v3777, %v3777
    %v3810 = vpack.c.bf16 %v3778, %v3778
    %v3811 = vpack.c.bf16 %v3779, %v3779
    %v3812 = vpack.c.bf16 %v3780, %v3780
    %v3813 = vpack.c.bf16 %v3781, %v3781
    %v3814 = vpack.c.bf16 %v3782, %v3782
    %v3815 = vpack.c.bf16 %v3783, %v3783
    %v3816 = vpack.c.bf16 %v3784, %v3784
    %v3817 = vpack.c.bf16 %v3785, %v3785
    %v3818 = vpack.c.bf16 %v3786, %v3786
    %v3820 = vsel %vm1211, %v3787, 0
    %v3823 = vsel %vm1599, %v2795, 0
    %3825 = vmatpush.bf16.msra.mxu0 0
    %3826 = vmatpush.bf16.msra.mxu0 0
    %3827 = vmatpush.bf16.msra.mxu0 0
    %3828 = vmatpush.bf16.msra.mxu0 0
    %3829 = vmatpush.bf16.msra.mxu0 0
    %3830 = vmatpush.bf16.msra.mxu0 0
    %3831 = vmatpush.bf16.msra.mxu0 0
    %3832 = vmatpush.bf16.msra.mxu0 %v3823
    %3833 = vmatmul.bf16.gmra.mxu0 %v3820
    %v3834 = vpop.f32.mrf.mxu0
    %v3835 = vadd.f32 0.0, %v3834
    %v3836 = vpop.f32.mrf.mxu0
    %3837 = vdwg.mxu0
    %v3839 = vsel %vm1211, %v3788, 0
    %v3842 = vsel %vm1599, %v2796, 0
    %3844 = vmatpush.bf16.msra.mxu0 0
    %3845 = vmatpush.bf16.msra.mxu0 0
    %3846 = vmatpush.bf16.msra.mxu0 0
    %3847 = vmatpush.bf16.msra.mxu0 0
    %3848 = vmatpush.bf16.msra.mxu0 0
    %3849 = vmatpush.bf16.msra.mxu0 0
    %3850 = vmatpush.bf16.msra.mxu0 0
    %3851 = vmatpush.bf16.msra.mxu0 %v3842
    %3852 = vmatmul.bf16.gmra.mxu0 %v3839
    %v3853 = vpop.f32.mrf.mxu0
    %v3854 = vadd.f32 0.0, %v3853
    %v3855 = vpop.f32.mrf.mxu0
    %3856 = vdwg.mxu0
    %v3858 = vsel %vm1211, %v3789, 0
    %v3861 = vsel %vm1599, %v2797, 0
    %3863 = vmatpush.bf16.msra.mxu0 0
    %3864 = vmatpush.bf16.msra.mxu0 0
    %3865 = vmatpush.bf16.msra.mxu0 0
    %3866 = vmatpush.bf16.msra.mxu0 0
    %3867 = vmatpush.bf16.msra.mxu0 0
    %3868 = vmatpush.bf16.msra.mxu0 0
    %3869 = vmatpush.bf16.msra.mxu0 0
    %3870 = vmatpush.bf16.msra.mxu0 %v3861
    %3871 = vmatmul.bf16.gmra.mxu0 %v3858
    %v3872 = vpop.f32.mrf.mxu0
    %v3873 = vadd.f32 0.0, %v3872
    %v3874 = vpop.f32.mrf.mxu0
    %3875 = vdwg.mxu0
    %v3877 = vsel %vm1211, %v3790, 0
    %v3880 = vsel %vm1599, %v2798, 0
    %3882 = vmatpush.bf16.msra.mxu0 0
    %3883 = vmatpush.bf16.msra.mxu0 0
    %3884 = vmatpush.bf16.msra.mxu0 0
    %3885 = vmatpush.bf16.msra.mxu0 0
    %3886 = vmatpush.bf16.msra.mxu0 0
    %3887 = vmatpush.bf16.msra.mxu0 0
    %3888 = vmatpush.bf16.msra.mxu0 0
    %3889 = vmatpush.bf16.msra.mxu0 %v3880
    %3890 = vmatmul.bf16.gmra.mxu0 %v3877
    %v3891 = vpop.f32.mrf.mxu0
    %v3892 = vadd.f32 0.0, %v3891
    %v3893 = vpop.f32.mrf.mxu0
    %3894 = vdwg.mxu0
    %v3896 = vsel %vm1211, %v3791, 0
    %v3899 = vsel %vm1599, %v2799, 0
    %3901 = vmatpush.bf16.msra.mxu0 0
    %3902 = vmatpush.bf16.msra.mxu0 0
    %3903 = vmatpush.bf16.msra.mxu0 0
    %3904 = vmatpush.bf16.msra.mxu0 0
    %3905 = vmatpush.bf16.msra.mxu0 0
    %3906 = vmatpush.bf16.msra.mxu0 0
    %3907 = vmatpush.bf16.msra.mxu0 0
    %3908 = vmatpush.bf16.msra.mxu0 %v3899
    %3909 = vmatmul.bf16.gmra.mxu0 %v3896
    %v3910 = vpop.f32.mrf.mxu0
    %v3911 = vadd.f32 0.0, %v3910
    %v3912 = vpop.f32.mrf.mxu0
    %3913 = vdwg.mxu0
    %v3915 = vsel %vm1211, %v3792, 0
    %v3918 = vsel %vm1599, %v2800, 0
    %3920 = vmatpush.bf16.msra.mxu0 0
    %3921 = vmatpush.bf16.msra.mxu0 0
    %3922 = vmatpush.bf16.msra.mxu0 0
    %3923 = vmatpush.bf16.msra.mxu0 0
    %3924 = vmatpush.bf16.msra.mxu0 0
    %3925 = vmatpush.bf16.msra.mxu0 0
    %3926 = vmatpush.bf16.msra.mxu0 0
    %3927 = vmatpush.bf16.msra.mxu0 %v3918
    %3928 = vmatmul.bf16.gmra.mxu0 %v3915
    %v3929 = vpop.f32.mrf.mxu0
    %v3930 = vadd.f32 0.0, %v3929
    %v3931 = vpop.f32.mrf.mxu0
    %3932 = vdwg.mxu0
    %v3934 = vsel %vm1211, %v3793, 0
    %v3937 = vsel %vm1599, %v2801, 0
    %3939 = vmatpush.bf16.msra.mxu0 0
    %3940 = vmatpush.bf16.msra.mxu0 0
    %3941 = vmatpush.bf16.msra.mxu0 0
    %3942 = vmatpush.bf16.msra.mxu0 0
    %3943 = vmatpush.bf16.msra.mxu0 0
    %3944 = vmatpush.bf16.msra.mxu0 0
    %3945 = vmatpush.bf16.msra.mxu0 0
    %3946 = vmatpush.bf16.msra.mxu0 %v3937
    %3947 = vmatmul.bf16.gmra.mxu0 %v3934
    %v3948 = vpop.f32.mrf.mxu0
    %v3949 = vadd.f32 0.0, %v3948
    %v3950 = vpop.f32.mrf.mxu0
    %3951 = vdwg.mxu0
    %v3953 = vsel %vm1211, %v3794, 0
    %v3956 = vsel %vm1599, %v2802, 0
    %3958 = vmatpush.bf16.msra.mxu0 0
    %3959 = vmatpush.bf16.msra.mxu0 0
    %3960 = vmatpush.bf16.msra.mxu0 0
    %3961 = vmatpush.bf16.msra.mxu0 0
    %3962 = vmatpush.bf16.msra.mxu0 0
    %3963 = vmatpush.bf16.msra.mxu0 0
    %3964 = vmatpush.bf16.msra.mxu0 0
    %3965 = vmatpush.bf16.msra.mxu0 %v3956
    %3966 = vmatmul.bf16.gmra.mxu0 %v3953
    %v3967 = vpop.f32.mrf.mxu0
    %v3968 = vadd.f32 0.0, %v3967
    %v3969 = vpop.f32.mrf.mxu0
    %3970 = vdwg.mxu0
    %v3972 = vsel %vm1211, %v3795, 0
    %v3975 = vsel %vm1599, %v2803, 0
    %3977 = vmatpush.bf16.msra.mxu0 0
    %3978 = vmatpush.bf16.msra.mxu0 0
    %3979 = vmatpush.bf16.msra.mxu0 0
    %3980 = vmatpush.bf16.msra.mxu0 0
    %3981 = vmatpush.bf16.msra.mxu0 0
    %3982 = vmatpush.bf16.msra.mxu0 0
    %3983 = vmatpush.bf16.msra.mxu0 0
    %3984 = vmatpush.bf16.msra.mxu0 %v3975
    %3985 = vmatmul.bf16.gmra.mxu0 %v3972
    %v3986 = vpop.f32.mrf.mxu0
    %v3987 = vadd.f32 0.0, %v3986
    %v3988 = vpop.f32.mrf.mxu0
    %3989 = vdwg.mxu0
    %v3991 = vsel %vm1211, %v3796, 0
    %v3994 = vsel %vm1599, %v2804, 0
    %3996 = vmatpush.bf16.msra.mxu0 0
    %3997 = vmatpush.bf16.msra.mxu0 0
    %3998 = vmatpush.bf16.msra.mxu0 0
    %3999 = vmatpush.bf16.msra.mxu0 0
    %4000 = vmatpush.bf16.msra.mxu0 0
    %4001 = vmatpush.bf16.msra.mxu0 0
    %4002 = vmatpush.bf16.msra.mxu0 0
    %4003 = vmatpush.bf16.msra.mxu0 %v3994
    %4004 = vmatmul.bf16.gmra.mxu0 %v3991
    %v4005 = vpop.f32.mrf.mxu0
    %v4006 = vadd.f32 0.0, %v4005
    %v4007 = vpop.f32.mrf.mxu0
    %4008 = vdwg.mxu0
    %v4010 = vsel %vm1211, %v3797, 0
    %v4013 = vsel %vm1599, %v2805, 0
    %4015 = vmatpush.bf16.msra.mxu0 0
    %4016 = vmatpush.bf16.msra.mxu0 0
    %4017 = vmatpush.bf16.msra.mxu0 0
    %4018 = vmatpush.bf16.msra.mxu0 0
    %4019 = vmatpush.bf16.msra.mxu0 0
    %4020 = vmatpush.bf16.msra.mxu0 0
    %4021 = vmatpush.bf16.msra.mxu0 0
    %4022 = vmatpush.bf16.msra.mxu0 %v4013
    %4023 = vmatmul.bf16.gmra.mxu0 %v4010
    %v4024 = vpop.f32.mrf.mxu0
    %v4025 = vadd.f32 0.0, %v4024
    %v4026 = vpop.f32.mrf.mxu0
    %4027 = vdwg.mxu0
    %v4029 = vsel %vm1211, %v3798, 0
    %v4032 = vsel %vm1599, %v2806, 0
    %4034 = vmatpush.bf16.msra.mxu0 0
    %4035 = vmatpush.bf16.msra.mxu0 0
    %4036 = vmatpush.bf16.msra.mxu0 0
    %4037 = vmatpush.bf16.msra.mxu0 0
    %4038 = vmatpush.bf16.msra.mxu0 0
    %4039 = vmatpush.bf16.msra.mxu0 0
    %4040 = vmatpush.bf16.msra.mxu0 0
    %4041 = vmatpush.bf16.msra.mxu0 %v4032
    %4042 = vmatmul.bf16.gmra.mxu0 %v4029
    %v4043 = vpop.f32.mrf.mxu0
    %v4044 = vadd.f32 0.0, %v4043
    %v4045 = vpop.f32.mrf.mxu0
    %4046 = vdwg.mxu0
    %v4048 = vsel %vm1211, %v3799, 0
    %v4051 = vsel %vm1599, %v2807, 0
    %4053 = vmatpush.bf16.msra.mxu0 0
    %4054 = vmatpush.bf16.msra.mxu0 0
    %4055 = vmatpush.bf16.msra.mxu0 0
    %4056 = vmatpush.bf16.msra.mxu0 0
    %4057 = vmatpush.bf16.msra.mxu0 0
    %4058 = vmatpush.bf16.msra.mxu0 0
    %4059 = vmatpush.bf16.msra.mxu0 0
    %4060 = vmatpush.bf16.msra.mxu0 %v4051
    %4061 = vmatmul.bf16.gmra.mxu0 %v4048
    %v4062 = vpop.f32.mrf.mxu0
    %v4063 = vadd.f32 0.0, %v4062
    %v4064 = vpop.f32.mrf.mxu0
    %4065 = vdwg.mxu0
    %v4067 = vsel %vm1211, %v3800, 0
    %v4070 = vsel %vm1599, %v2808, 0
    %4072 = vmatpush.bf16.msra.mxu0 0
    %4073 = vmatpush.bf16.msra.mxu0 0
    %4074 = vmatpush.bf16.msra.mxu0 0
    %4075 = vmatpush.bf16.msra.mxu0 0
    %4076 = vmatpush.bf16.msra.mxu0 0
    %4077 = vmatpush.bf16.msra.mxu0 0
    %4078 = vmatpush.bf16.msra.mxu0 0
    %4079 = vmatpush.bf16.msra.mxu0 %v4070
    %4080 = vmatmul.bf16.gmra.mxu0 %v4067
    %v4081 = vpop.f32.mrf.mxu0
    %v4082 = vadd.f32 0.0, %v4081
    %v4083 = vpop.f32.mrf.mxu0
    %4084 = vdwg.mxu0
    %v4086 = vsel %vm1211, %v3801, 0
    %v4089 = vsel %vm1599, %v2809, 0
    %4091 = vmatpush.bf16.msra.mxu0 0
    %4092 = vmatpush.bf16.msra.mxu0 0
    %4093 = vmatpush.bf16.msra.mxu0 0
    %4094 = vmatpush.bf16.msra.mxu0 0
    %4095 = vmatpush.bf16.msra.mxu0 0
    %4096 = vmatpush.bf16.msra.mxu0 0
    %4097 = vmatpush.bf16.msra.mxu0 0
    %4098 = vmatpush.bf16.msra.mxu0 %v4089
    %4099 = vmatmul.bf16.gmra.mxu0 %v4086
    %v4100 = vpop.f32.mrf.mxu0
    %v4101 = vadd.f32 0.0, %v4100
    %v4102 = vpop.f32.mrf.mxu0
    %4103 = vdwg.mxu0
    %v4105 = vsel %vm1211, %v3802, 0
    %v4108 = vsel %vm1599, %v2810, 0
    %4110 = vmatpush.bf16.msra.mxu0 0
    %4111 = vmatpush.bf16.msra.mxu0 0
    %4112 = vmatpush.bf16.msra.mxu0 0
    %4113 = vmatpush.bf16.msra.mxu0 0
    %4114 = vmatpush.bf16.msra.mxu0 0
    %4115 = vmatpush.bf16.msra.mxu0 0
    %4116 = vmatpush.bf16.msra.mxu0 0
    %4117 = vmatpush.bf16.msra.mxu0 %v4108
    %4118 = vmatmul.bf16.gmra.mxu0 %v4105
    %v4119 = vpop.f32.mrf.mxu0
    %v4120 = vadd.f32 0.0, %v4119
    %v4121 = vpop.f32.mrf.mxu0
    %4122 = vdwg.mxu0
    %v4124 = vsel %vm1211, %v3803, 0
    %v4127 = vsel %vm1599, %v2811, 0
    %4129 = vmatpush.bf16.msra.mxu0 0
    %4130 = vmatpush.bf16.msra.mxu0 0
    %4131 = vmatpush.bf16.msra.mxu0 0
    %4132 = vmatpush.bf16.msra.mxu0 0
    %4133 = vmatpush.bf16.msra.mxu0 0
    %4134 = vmatpush.bf16.msra.mxu0 0
    %4135 = vmatpush.bf16.msra.mxu0 0
    %4136 = vmatpush.bf16.msra.mxu0 %v4127
    %4137 = vmatmul.bf16.gmra.mxu0 %v4124
    %v4138 = vpop.f32.mrf.mxu0
    %v4139 = vadd.f32 0.0, %v4138
    %v4140 = vpop.f32.mrf.mxu0
    %4141 = vdwg.mxu0
    %v4143 = vsel %vm1211, %v3804, 0
    %v4146 = vsel %vm1599, %v2812, 0
    %4148 = vmatpush.bf16.msra.mxu0 0
    %4149 = vmatpush.bf16.msra.mxu0 0
    %4150 = vmatpush.bf16.msra.mxu0 0
    %4151 = vmatpush.bf16.msra.mxu0 0
    %4152 = vmatpush.bf16.msra.mxu0 0
    %4153 = vmatpush.bf16.msra.mxu0 0
    %4154 = vmatpush.bf16.msra.mxu0 0
    %4155 = vmatpush.bf16.msra.mxu0 %v4146
    %4156 = vmatmul.bf16.gmra.mxu0 %v4143
    %v4157 = vpop.f32.mrf.mxu0
    %v4158 = vadd.f32 0.0, %v4157
    %v4159 = vpop.f32.mrf.mxu0
    %4160 = vdwg.mxu0
    %v4162 = vsel %vm1211, %v3805, 0
    %v4165 = vsel %vm1599, %v2813, 0
    %4167 = vmatpush.bf16.msra.mxu0 0
    %4168 = vmatpush.bf16.msra.mxu0 0
    %4169 = vmatpush.bf16.msra.mxu0 0
    %4170 = vmatpush.bf16.msra.mxu0 0
    %4171 = vmatpush.bf16.msra.mxu0 0
    %4172 = vmatpush.bf16.msra.mxu0 0
    %4173 = vmatpush.bf16.msra.mxu0 0
    %4174 = vmatpush.bf16.msra.mxu0 %v4165
    %4175 = vmatmul.bf16.gmra.mxu0 %v4162
    %v4176 = vpop.f32.mrf.mxu0
    %v4177 = vadd.f32 0.0, %v4176
    %v4178 = vpop.f32.mrf.mxu0
    %4179 = vdwg.mxu0
    %v4181 = vsel %vm1211, %v3806, 0
    %v4184 = vsel %vm1599, %v2814, 0
    %4186 = vmatpush.bf16.msra.mxu0 0
    %4187 = vmatpush.bf16.msra.mxu0 0
    %4188 = vmatpush.bf16.msra.mxu0 0
    %4189 = vmatpush.bf16.msra.mxu0 0
    %4190 = vmatpush.bf16.msra.mxu0 0
    %4191 = vmatpush.bf16.msra.mxu0 0
    %4192 = vmatpush.bf16.msra.mxu0 0
    %4193 = vmatpush.bf16.msra.mxu0 %v4184
    %4194 = vmatmul.bf16.gmra.mxu0 %v4181
    %v4195 = vpop.f32.mrf.mxu0
    %v4196 = vadd.f32 0.0, %v4195
    %v4197 = vpop.f32.mrf.mxu0
    %4198 = vdwg.mxu0
    %v4200 = vsel %vm1211, %v3807, 0
    %v4203 = vsel %vm1599, %v2815, 0
    %4205 = vmatpush.bf16.msra.mxu0 0
    %4206 = vmatpush.bf16.msra.mxu0 0
    %4207 = vmatpush.bf16.msra.mxu0 0
    %4208 = vmatpush.bf16.msra.mxu0 0
    %4209 = vmatpush.bf16.msra.mxu0 0
    %4210 = vmatpush.bf16.msra.mxu0 0
    %4211 = vmatpush.bf16.msra.mxu0 0
    %4212 = vmatpush.bf16.msra.mxu0 %v4203
    %4213 = vmatmul.bf16.gmra.mxu0 %v4200
    %v4214 = vpop.f32.mrf.mxu0
    %v4215 = vadd.f32 0.0, %v4214
    %v4216 = vpop.f32.mrf.mxu0
    %4217 = vdwg.mxu0
    %v4219 = vsel %vm1211, %v3808, 0
    %v4222 = vsel %vm1599, %v2816, 0
    %4224 = vmatpush.bf16.msra.mxu0 0
    %4225 = vmatpush.bf16.msra.mxu0 0
    %4226 = vmatpush.bf16.msra.mxu0 0
    %4227 = vmatpush.bf16.msra.mxu0 0
    %4228 = vmatpush.bf16.msra.mxu0 0
    %4229 = vmatpush.bf16.msra.mxu0 0
    %4230 = vmatpush.bf16.msra.mxu0 0
    %4231 = vmatpush.bf16.msra.mxu0 %v4222
    %4232 = vmatmul.bf16.gmra.mxu0 %v4219
    %v4233 = vpop.f32.mrf.mxu0
    %v4234 = vadd.f32 0.0, %v4233
    %v4235 = vpop.f32.mrf.mxu0
    %4236 = vdwg.mxu0
    %v4238 = vsel %vm1211, %v3809, 0
    %v4241 = vsel %vm1599, %v2817, 0
    %4243 = vmatpush.bf16.msra.mxu0 0
    %4244 = vmatpush.bf16.msra.mxu0 0
    %4245 = vmatpush.bf16.msra.mxu0 0
    %4246 = vmatpush.bf16.msra.mxu0 0
    %4247 = vmatpush.bf16.msra.mxu0 0
    %4248 = vmatpush.bf16.msra.mxu0 0
    %4249 = vmatpush.bf16.msra.mxu0 0
    %4250 = vmatpush.bf16.msra.mxu0 %v4241
    %4251 = vmatmul.bf16.gmra.mxu0 %v4238
    %v4252 = vpop.f32.mrf.mxu0
    %v4253 = vadd.f32 0.0, %v4252
    %v4254 = vpop.f32.mrf.mxu0
    %4255 = vdwg.mxu0
    %v4257 = vsel %vm1211, %v3810, 0
    %v4260 = vsel %vm1599, %v2818, 0
    %4262 = vmatpush.bf16.msra.mxu0 0
    %4263 = vmatpush.bf16.msra.mxu0 0
    %4264 = vmatpush.bf16.msra.mxu0 0
    %4265 = vmatpush.bf16.msra.mxu0 0
    %4266 = vmatpush.bf16.msra.mxu0 0
    %4267 = vmatpush.bf16.msra.mxu0 0
    %4268 = vmatpush.bf16.msra.mxu0 0
    %4269 = vmatpush.bf16.msra.mxu0 %v4260
    %4270 = vmatmul.bf16.gmra.mxu0 %v4257
    %v4271 = vpop.f32.mrf.mxu0
    %v4272 = vadd.f32 0.0, %v4271
    %v4273 = vpop.f32.mrf.mxu0
    %4274 = vdwg.mxu0
    %v4276 = vsel %vm1211, %v3811, 0
    %v4279 = vsel %vm1599, %v2819, 0
    %4281 = vmatpush.bf16.msra.mxu0 0
    %4282 = vmatpush.bf16.msra.mxu0 0
    %4283 = vmatpush.bf16.msra.mxu0 0
    %4284 = vmatpush.bf16.msra.mxu0 0
    %4285 = vmatpush.bf16.msra.mxu0 0
    %4286 = vmatpush.bf16.msra.mxu0 0
    %4287 = vmatpush.bf16.msra.mxu0 0
    %4288 = vmatpush.bf16.msra.mxu0 %v4279
    %4289 = vmatmul.bf16.gmra.mxu0 %v4276
    %v4290 = vpop.f32.mrf.mxu0
    %v4291 = vadd.f32 0.0, %v4290
    %v4292 = vpop.f32.mrf.mxu0
    %4293 = vdwg.mxu0
    %v4295 = vsel %vm1211, %v3812, 0
    %v4298 = vsel %vm1599, %v2820, 0
    %4300 = vmatpush.bf16.msra.mxu0 0
    %4301 = vmatpush.bf16.msra.mxu0 0
    %4302 = vmatpush.bf16.msra.mxu0 0
    %4303 = vmatpush.bf16.msra.mxu0 0
    %4304 = vmatpush.bf16.msra.mxu0 0
    %4305 = vmatpush.bf16.msra.mxu0 0
    %4306 = vmatpush.bf16.msra.mxu0 0
    %4307 = vmatpush.bf16.msra.mxu0 %v4298
    %4308 = vmatmul.bf16.gmra.mxu0 %v4295
    %v4309 = vpop.f32.mrf.mxu0
    %v4310 = vadd.f32 0.0, %v4309
    %v4311 = vpop.f32.mrf.mxu0
    %4312 = vdwg.mxu0
    %v4314 = vsel %vm1211, %v3813, 0
    %v4317 = vsel %vm1599, %v2821, 0
    %4319 = vmatpush.bf16.msra.mxu0 0
    %4320 = vmatpush.bf16.msra.mxu0 0
    %4321 = vmatpush.bf16.msra.mxu0 0
    %4322 = vmatpush.bf16.msra.mxu0 0
    %4323 = vmatpush.bf16.msra.mxu0 0
    %4324 = vmatpush.bf16.msra.mxu0 0
    %4325 = vmatpush.bf16.msra.mxu0 0
    %4326 = vmatpush.bf16.msra.mxu0 %v4317
    %4327 = vmatmul.bf16.gmra.mxu0 %v4314
    %v4328 = vpop.f32.mrf.mxu0
    %v4329 = vadd.f32 0.0, %v4328
    %v4330 = vpop.f32.mrf.mxu0
    %4331 = vdwg.mxu0
    %v4333 = vsel %vm1211, %v3814, 0
    %v4336 = vsel %vm1599, %v2822, 0
    %4338 = vmatpush.bf16.msra.mxu0 0
    %4339 = vmatpush.bf16.msra.mxu0 0
    %4340 = vmatpush.bf16.msra.mxu0 0
    %4341 = vmatpush.bf16.msra.mxu0 0
    %4342 = vmatpush.bf16.msra.mxu0 0
    %4343 = vmatpush.bf16.msra.mxu0 0
    %4344 = vmatpush.bf16.msra.mxu0 0
    %4345 = vmatpush.bf16.msra.mxu0 %v4336
    %4346 = vmatmul.bf16.gmra.mxu0 %v4333
    %v4347 = vpop.f32.mrf.mxu0
    %v4348 = vadd.f32 0.0, %v4347
    %v4349 = vpop.f32.mrf.mxu0
    %4350 = vdwg.mxu0
    %v4352 = vsel %vm1211, %v3815, 0
    %v4355 = vsel %vm1599, %v2823, 0
    %4357 = vmatpush.bf16.msra.mxu0 0
    %4358 = vmatpush.bf16.msra.mxu0 0
    %4359 = vmatpush.bf16.msra.mxu0 0
    %4360 = vmatpush.bf16.msra.mxu0 0
    %4361 = vmatpush.bf16.msra.mxu0 0
    %4362 = vmatpush.bf16.msra.mxu0 0
    %4363 = vmatpush.bf16.msra.mxu0 0
    %4364 = vmatpush.bf16.msra.mxu0 %v4355
    %4365 = vmatmul.bf16.gmra.mxu0 %v4352
    %v4366 = vpop.f32.mrf.mxu0
    %v4367 = vadd.f32 0.0, %v4366
    %v4368 = vpop.f32.mrf.mxu0
    %4369 = vdwg.mxu0
    %v4371 = vsel %vm1211, %v3816, 0
    %v4374 = vsel %vm1599, %v2824, 0
    %4376 = vmatpush.bf16.msra.mxu0 0
    %4377 = vmatpush.bf16.msra.mxu0 0
    %4378 = vmatpush.bf16.msra.mxu0 0
    %4379 = vmatpush.bf16.msra.mxu0 0
    %4380 = vmatpush.bf16.msra.mxu0 0
    %4381 = vmatpush.bf16.msra.mxu0 0
    %4382 = vmatpush.bf16.msra.mxu0 0
    %4383 = vmatpush.bf16.msra.mxu0 %v4374
    %4384 = vmatmul.bf16.gmra.mxu0 %v4371
    %v4385 = vpop.f32.mrf.mxu0
    %v4386 = vadd.f32 0.0, %v4385
    %v4387 = vpop.f32.mrf.mxu0
    %4388 = vdwg.mxu0
    %v4390 = vsel %vm1211, %v3817, 0
    %v4393 = vsel %vm1599, %v2825, 0
    %4395 = vmatpush.bf16.msra.mxu0 0
    %4396 = vmatpush.bf16.msra.mxu0 0
    %4397 = vmatpush.bf16.msra.mxu0 0
    %4398 = vmatpush.bf16.msra.mxu0 0
    %4399 = vmatpush.bf16.msra.mxu0 0
    %4400 = vmatpush.bf16.msra.mxu0 0
    %4401 = vmatpush.bf16.msra.mxu0 0
    %4402 = vmatpush.bf16.msra.mxu0 %v4393
    %4403 = vmatmul.bf16.gmra.mxu0 %v4390
    %v4404 = vpop.f32.mrf.mxu0
    %v4405 = vadd.f32 0.0, %v4404
    %v4406 = vpop.f32.mrf.mxu0
    %4407 = vdwg.mxu0
    %v4409 = vsel %vm1211, %v3818, 0
    %v4412 = vsel %vm1599, %v2826, 0
    %4414 = vmatpush.bf16.msra.mxu0 0
    %4415 = vmatpush.bf16.msra.mxu0 0
    %4416 = vmatpush.bf16.msra.mxu0 0
    %4417 = vmatpush.bf16.msra.mxu0 0
    %4418 = vmatpush.bf16.msra.mxu0 0
    %4419 = vmatpush.bf16.msra.mxu0 0
    %4420 = vmatpush.bf16.msra.mxu0 0
    %4421 = vmatpush.bf16.msra.mxu0 %v4412
    %4422 = vmatmul.bf16.gmra.mxu0 %v4409
    %v4423 = vpop.f32.mrf.mxu0
    %v4424 = vadd.f32 0.0, %v4423
    %v4425 = vpop.f32.mrf.mxu0
    %4426 = vdwg.mxu0
    %v4427 = vsel %vm277, %v3835, 0.0
    %v4428 = vsel %vm277, %v3854, 0.0
    %v4429 = vadd.f32 %v4427, %v4428
    %v4430 = vsel %vm277, %v3873, 0.0
    %v4431 = vadd.f32 %v4429, %v4430
    %v4432 = vsel %vm277, %v3892, 0.0
    %v4433 = vadd.f32 %v4431, %v4432
    %v4434 = vsel %vm277, %v3911, 0.0
    %v4435 = vadd.f32 %v4433, %v4434
    %v4436 = vsel %vm277, %v3930, 0.0
    %v4437 = vadd.f32 %v4435, %v4436
    %v4438 = vsel %vm277, %v3949, 0.0
    %v4439 = vadd.f32 %v4437, %v4438
    %v4440 = vsel %vm277, %v3968, 0.0
    %v4441 = vadd.f32 %v4439, %v4440
    %v4442 = vsel %vm277, %v3987, 0.0
    %v4443 = vadd.f32 %v4441, %v4442
    %v4444 = vsel %vm277, %v4006, 0.0
    %v4445 = vadd.f32 %v4443, %v4444
    %v4446 = vsel %vm277, %v4025, 0.0
    %v4447 = vadd.f32 %v4445, %v4446
    %v4448 = vsel %vm277, %v4044, 0.0
    %v4449 = vadd.f32 %v4447, %v4448
    %v4450 = vsel %vm277, %v4063, 0.0
    %v4451 = vadd.f32 %v4449, %v4450
    %v4452 = vsel %vm277, %v4082, 0.0
    %v4453 = vadd.f32 %v4451, %v4452
    %v4454 = vsel %vm277, %v4101, 0.0
    %v4455 = vadd.f32 %v4453, %v4454
    %v4456 = vsel %vm277, %v4120, 0.0
    %v4457 = vadd.f32 %v4455, %v4456
    %v4458 = vsel %vm277, %v4139, 0.0
    %v4459 = vsel %vm277, %v4158, 0.0
    %v4460 = vadd.f32 %v4458, %v4459
    %v4461 = vsel %vm277, %v4177, 0.0
    %v4462 = vadd.f32 %v4460, %v4461
    %v4463 = vsel %vm277, %v4196, 0.0
    %v4464 = vadd.f32 %v4462, %v4463
    %v4465 = vsel %vm277, %v4215, 0.0
    %v4466 = vadd.f32 %v4464, %v4465
    %v4467 = vsel %vm277, %v4234, 0.0
    %v4468 = vadd.f32 %v4466, %v4467
    %v4469 = vsel %vm277, %v4253, 0.0
    %v4470 = vadd.f32 %v4468, %v4469
    %v4471 = vsel %vm277, %v4272, 0.0
    %v4472 = vadd.f32 %v4470, %v4471
    %v4473 = vsel %vm277, %v4291, 0.0
    %v4474 = vadd.f32 %v4472, %v4473
    %v4475 = vsel %vm277, %v4310, 0.0
    %v4476 = vadd.f32 %v4474, %v4475
    %v4477 = vsel %vm277, %v4329, 0.0
    %v4478 = vadd.f32 %v4476, %v4477
    %v4479 = vsel %vm277, %v4348, 0.0
    %v4480 = vadd.f32 %v4478, %v4479
    %v4481 = vsel %vm277, %v4367, 0.0
    %v4482 = vadd.f32 %v4480, %v4481
    %v4483 = vsel %vm277, %v4386, 0.0
    %v4484 = vadd.f32 %v4482, %v4483
    %v4485 = vsel %vm277, %v4405, 0.0
    %v4486 = vadd.f32 %v4484, %v4485
    %v4487 = vsel %vm277, %v4424, 0.0
    %v4488 = vadd.f32 %v4486, %v4487
    %v4489 = vpack.c.bf16 %v4488, %v4457
    %s4490 = scalar_lea.vmem %s10, 16
    %v4491 = vld [vmem:[%s4490] sm:$0xf]
    %v4492 = vld [vmem:[%s4490 + $0x4] sm:$0xf]
    %v4493 = vld [vmem:[%s4490 + $0x8] sm:$0xf]
    %v4494 = vld [vmem:[%s4490 + $0xc] sm:$0xf]
    %s4495 = scalar_lea.vmem [#allocation11], 1
    %v4496 = vld [vmem:[%s4495] sm:$0x1]
    %v4498 = vperm.slane %v4496, 0
    %v4504 = vunpack.c.l.b16 %v4491
    %v4505 = vunpack.c.l.b16 %v4492
    %v4506 = vunpack.c.l.b16 %v4493
    %v4507 = vunpack.c.l.b16 %v4494
    %v4508 = vpack.c.b16 %v4505, %v4504
    %v4509 = vpack.c.b16 %v4507, %v4506
    %v4513 = vsel %vm277, %v4489, 0
    %4515 = vmatpush.bf16.msra.mxu0 0
    %4516 = vmatpush.bf16.msra.mxu0 0
    %4517 = vmatpush.bf16.msra.mxu0 0
    %4518 = vmatpush.bf16.msra.mxu0 0
    %4519 = vmatpush.bf16.msra.mxu0 0
    %4520 = vmatpush.bf16.msra.mxu0 0
    %4521 = vmatpush.bf16.msra.mxu0 %v4509
    %4522 = vmatpush.bf16.msra.mxu0 %v4508
    %4523 = vmatmul.bf16.gmra.mxu0 %v4513
    %v4524 = vpop.f32.mrf.mxu0
    %v4525 = vadd.f32 %v4498, %v4524
    %v4526 = vpop.f32.mrf.mxu0
    %v4527 = vadd.f32 %v4498, %v4526
    %4528 = vdwg.mxu0
    %v4529 = vadd.f32 %v2521, %v4525
    %v4530 = vadd.f32 %v2522, %v4527
    %s4531 = scalar_lea.vmem %s16, 1
    %v4532 = vld [vmem:[%s4531] sm:$0x1]
    %s4533 = scalar_lea.vmem [#allocation13], 1
    %v4534 = vld [vmem:[%s4533] sm:$0x1]
    %v4535 = vsel %vm277, %v4529, 0.0
    %4536 = vadd.xlane.f32.xlu0 %v4535
    %v4537 = vpop.xlane.xlu0 %4536
    %v4538 = vsel %vm277, %v4530, 0.0
    %4539 = vadd.xlane.f32.xlu0 %v4538
    %v4540 = vpop.xlane.xlu0 %4539
    %v4541 = vmul.f32 %v4537, %v2321
    %v4542 = vmul.f32 %v4540, %v2321
    %v4543 = vsub.f32 %v4529, %v4541
    %v4544 = vsub.f32 %v4530, %v4542
    %v4545 = vmul.f32 %v4543, %v4543
    %v4546 = vmul.f32 %v4544, %v4544
    %v4547 = vsel %vm277, %v4545, 0.0
    %4548 = vadd.xlane.f32.xlu0 %v4547
    %v4549 = vpop.xlane.xlu0 %4548
    %v4550 = vsel %vm277, %v4546, 0.0
    %4551 = vadd.xlane.f32.xlu0 %v4550
    %v4552 = vpop.xlane.xlu0 %4551
    %v4553 = vmul.f32 %v4549, %v2321
    %v4554 = vmul.f32 %v4552, %v2321
    %v4555 = vadd.f32 %v4553, 1e-05
    %v4556 = vadd.f32 %v4554, 1e-05
    %v4557 = vrsqrt.pop %v4555
    %v4558 = vmul.f32 %v4557, %v4555
    %v4559 = vmul.f32 %v4558, %v4557
    %v4560 = vmul.f32 0.5, %v4559
    %v4561 = vsub.f32 1.5, %v4560
    %v4562 = vmul.f32 %v4557, %v4561
    %vm4563 = vweird.f32 %v4555
    %vm4564 = vweird.f32 %v4557
    %vm4565 = vmor %vm4563, %vm4564
    %v4566 = vsel %vm4565, %v4557, %v4562
    %v4567 = vrsqrt.pop %v4556
    %v4568 = vmul.f32 %v4567, %v4556
    %v4569 = vmul.f32 %v4568, %v4567
    %v4570 = vmul.f32 0.5, %v4569
    %v4571 = vsub.f32 1.5, %v4570
    %v4572 = vmul.f32 %v4567, %v4571
    %vm4573 = vweird.f32 %v4556
    %vm4574 = vweird.f32 %v4567
    %vm4575 = vmor %vm4573, %vm4574
    %v4576 = vsel %vm4575, %v4567, %v4572
    %v4577 = vmul.f32 %v4543, %v4566
    %v4578 = vmul.f32 %v4544, %v4576
    %v4580 = vperm.slane %v4532, 0
    %v4582 = vmul.f32 %v4577, %v4580
    %v4583 = vmul.f32 %v4578, %v4580
    %v4585 = vperm.slane %v4534, 0
    %v4587 = vadd.f32 %v4582, %v4585
    %v4588 = vadd.f32 %v4583, %v4585
    %v4589 = vpack.c.bf16 %v4588, %v4587
    %s4590 = scalar_lea.vmem %s12, 16
    %v4591 = vld [vmem:[%s4590] sm:$0xf]
    %v4592 = vld [vmem:[%s4590 + $0x4] sm:$0xf]
    %v4593 = vld [vmem:[%s4590 + $0x8] sm:$0xf]
    %v4594 = vld [vmem:[%s4590 + $0xc] sm:$0xf]
    %s4595 = scalar_lea.vmem %s13, 1
    %v4596 = vld [vmem:[%s4595] sm:$0x1]
    %v4598 = vperm.slane %v4596, 0
    %v4604 = vunpack.c.l.b16 %v4591
    %v4605 = vunpack.c.l.b16 %v4592
    %v4606 = vunpack.c.l.b16 %v4593
    %v4607 = vunpack.c.l.b16 %v4594
    %v4608 = vpack.c.b16 %v4605, %v4604
    %v4609 = vpack.c.b16 %v4607, %v4606
    %v4613 = vsel %vm277, %v4589, 0
    %4615 = vmatpush.bf16.msra.mxu0 0
    %4616 = vmatpush.bf16.msra.mxu0 0
    %4617 = vmatpush.bf16.msra.mxu0 0
    %4618 = vmatpush.bf16.msra.mxu0 0
    %4619 = vmatpush.bf16.msra.mxu0 0
    %4620 = vmatpush.bf16.msra.mxu0 0
    %4621 = vmatpush.bf16.msra.mxu0 %v4609
    %4622 = vmatpush.bf16.msra.mxu0 %v4608
    %4623 = vmatmul.bf16.gmra.mxu0 %v4613
    %v4624 = vpop.f32.mrf.mxu0
    %v4625 = vadd.f32 %v4598, %v4624
    %v4626 = vpop.f32.mrf.mxu0
    %v4627 = vadd.f32 %v4598, %v4626
    %4628 = vdwg.mxu0
    %v4629 = vmax.f32 %v4625, 0.0
    %v4630 = vmax.f32 %v4627, 0.0
    %v4631 = vpack.c.bf16 %v4630, %v4629
    %s4632 = scalar_lea.vmem %s14, 32
    %v4633 = vld [vmem:[%s4632] sm:$0xf]
    %v4634 = vld [vmem:[%s4632 + $0x4] sm:$0xf]
    %v4635 = vld [vmem:[%s4632 + $0x8] sm:$0xf]
    %v4636 = vld [vmem:[%s4632 + $0xc] sm:$0xf]
    %v4637 = vld [vmem:[%s4632 + $0x10] sm:$0xf]
    %v4638 = vld [vmem:[%s4632 + $0x14] sm:$0xf]
    %v4639 = vld [vmem:[%s4632 + $0x18] sm:$0xf]
    %v4640 = vld [vmem:[%s4632 + $0x1c] sm:$0xf]
    %s4641 = scalar_lea.vmem %s15, 1
    %v4642 = vld [vmem:[%s4641] sm:$0x1]
    %v4644 = vperm.slane %v4642, 0
    %v4654 = vunpack.c.l.b16 %v4633
    %v4655 = vunpack.c.l.b16 %v4634
    %v4656 = vunpack.c.l.b16 %v4635
    %v4657 = vunpack.c.l.b16 %v4636
    %v4658 = vunpack.c.l.b16 %v4637
    %v4659 = vunpack.c.l.b16 %v4638
    %v4660 = vunpack.c.l.b16 %v4639
    %v4661 = vunpack.c.l.b16 %v4640
    %v4662 = vpack.c.b16 %v4655, %v4654
    %v4663 = vpack.c.b16 %v4657, %v4656
    %v4664 = vpack.c.b16 %v4659, %v4658
    %v4665 = vpack.c.b16 %v4661, %v4660
    %v4671 = vsel %vm2447, %v4631, 0
    %4673 = vmatpush.bf16.msra.mxu0 0
    %4674 = vmatpush.bf16.msra.mxu0 0
    %4675 = vmatpush.bf16.msra.mxu0 0
    %4676 = vmatpush.bf16.msra.mxu0 0
    %4677 = vmatpush.bf16.msra.mxu0 %v4665
    %4678 = vmatpush.bf16.msra.mxu0 %v4664
    %4679 = vmatpush.bf16.msra.mxu0 %v4663
    %4680 = vmatpush.bf16.msra.mxu0 %v4662
    %4681 = vmatmul.bf16.gmra.mxu0 %v4671
    %v4682 = vpop.f32.mrf.mxu0
    %v4683 = vadd.f32 %v4644, %v4682
    %v4684 = vpop.f32.mrf.mxu0
    %v4685 = vadd.f32 %v4644, %v4684
    %4686 = vdwg.mxu0
    %v4687 = vadd.f32 %v4587, %v4683
    %v4688 = vadd.f32 %v4588, %v4685
    %s4689 = scalar_lea.vmem %s18, 1
    %v4690 = vld [vmem:[%s4689] sm:$0x1]
    %s4691 = scalar_lea.vmem %s19, 1
    %v4692 = vld [vmem:[%s4691] sm:$0x1]
    %v4693 = vsel %vm277, %v4687, 0.0
    %4694 = vadd.xlane.f32.xlu0 %v4693
    %v4695 = vpop.xlane.xlu0 %4694
    %v4696 = vsel %vm277, %v4688, 0.0
    %4697 = vadd.xlane.f32.xlu0 %v4696
    %v4698 = vpop.xlane.xlu0 %4697
    %v4699 = vmul.f32 %v4695, %v2321
    %v4700 = vmul.f32 %v4698, %v2321
    %v4701 = vsub.f32 %v4687, %v4699
    %v4702 = vsub.f32 %v4688, %v4700
    %v4703 = vmul.f32 %v4701, %v4701
    %v4704 = vmul.f32 %v4702, %v4702
    %v4705 = vsel %vm277, %v4703, 0.0
    %4706 = vadd.xlane.f32.xlu0 %v4705
    %v4707 = vpop.xlane.xlu0 %4706
    %v4708 = vsel %vm277, %v4704, 0.0
    %4709 = vadd.xlane.f32.xlu0 %v4708
    %v4710 = vpop.xlane.xlu0 %4709
    %v4711 = vmul.f32 %v4707, %v2321
    %v4712 = vmul.f32 %v4710, %v2321
    %v4713 = vadd.f32 %v4711, 1e-05
    %v4714 = vadd.f32 %v4712, 1e-05
    %v4715 = vrsqrt.pop %v4713
    %v4716 = vmul.f32 %v4715, %v4713
    %v4717 = vmul.f32 %v4716, %v4715
    %v4718 = vmul.f32 0.5, %v4717
    %v4719 = vsub.f32 1.5, %v4718
    %v4720 = vmul.f32 %v4715, %v4719
    %vm4721 = vweird.f32 %v4713
    %vm4722 = vweird.f32 %v4715
    %vm4723 = vmor %vm4721, %vm4722
    %v4724 = vsel %vm4723, %v4715, %v4720
    %v4725 = vrsqrt.pop %v4714
    %v4726 = vmul.f32 %v4725, %v4714
    %v4727 = vmul.f32 %v4726, %v4725
    %v4728 = vmul.f32 0.5, %v4727
    %v4729 = vsub.f32 1.5, %v4728
    %v4730 = vmul.f32 %v4725, %v4729
    %vm4731 = vweird.f32 %v4714
    %vm4732 = vweird.f32 %v4725
    %vm4733 = vmor %vm4731, %vm4732
    %v4734 = vsel %vm4733, %v4725, %v4730
    %v4735 = vmul.f32 %v4701, %v4724
    %v4736 = vmul.f32 %v4702, %v4734
    %v4738 = vperm.slane %v4690, 0
    %v4740 = vmul.f32 %v4735, %v4738
    %v4741 = vmul.f32 %v4736, %v4738
    %v4743 = vperm.slane %v4692, 0
    %v4745 = vadd.f32 %v4740, %v4743
    %v4746 = vadd.f32 %v4741, %v4743
    %v4747 = vpack.c.bf16 %v4746, %v4745
    %v4748 = vld [vmem:[%s20] sm:$0xf]
    %v4749 = vld [vmem:[%s20 + $0x4] sm:$0xf]
    %v4750 = vld [vmem:[%s20 + $0x8] sm:$0xf]
    %v4751 = vld [vmem:[%s20 + $0xc] sm:$0xf]
    %v4752 = vld [vmem:[%s21] sm:$0x1]
    %v4754 = vperm.slane %v4752, 0
    %v4760 = vunpack.c.l.b16 %v4748
    %v4761 = vunpack.c.l.b16 %v4749
    %v4762 = vunpack.c.l.b16 %v4750
    %v4763 = vunpack.c.l.b16 %v4751
    %v4764 = vpack.c.b16 %v4761, %v4760
    %v4765 = vpack.c.b16 %v4763, %v4762
    %v4769 = vsel %vm277, %v4747, 0
    %4771 = vmatpush.bf16.msra.mxu0 0
    %4772 = vmatpush.bf16.msra.mxu0 0
    %4773 = vmatpush.bf16.msra.mxu0 0
    %4774 = vmatpush.bf16.msra.mxu0 0
    %4775 = vmatpush.bf16.msra.mxu0 0
    %4776 = vmatpush.bf16.msra.mxu0 0
    %4777 = vmatpush.bf16.msra.mxu0 %v4765
    %4778 = vmatpush.bf16.msra.mxu0 %v4764
    %4779 = vmatmul.bf16.gmra.mxu0 %v4769
    %v4780 = vpop.f32.mrf.mxu0
    %v4781 = vadd.f32 %v4754, %v4780
    %v4782 = vpop.f32.mrf.mxu0
    %v4783 = vadd.f32 %v4754, %v4782
    %4784 = vdwg.mxu0
    %4785 = vst [vmem:[#allocation14] sm:$0xff] %v4781
    %4786 = vst [vmem:[#allocation14 + $0x8] sm:$0xff] %v4783
    // Predicated region
    $region118: #{tpu_custom_call.1} parent=1 // pred_check
      _
    $region119: #{tpu_custom_call.1} parent=1 // pred_check_branch
      %4788 = sbr.rel (0) target = $region121
    $region120: #{tpu_custom_call.1} parent=1 // pred_region
      %4790 = vsyncadd [#allocation4], 0
      %s4791 = sshll.u32 [#allocation14], 4
      %s4792 = int_to_ptr.vmem [resolvable:$true] %s4791
      %s4793 = sshll.u32 %s22, 4
      %s4794 = int_to_ptr.hbm [resolvable:$true] %s4793
      %4799 = dma.vmem_to_hbm [thread:$0]  %s4792, 256, %s4794, [#allocation4], 128, 128, 8
    $region121: #{tpu_custom_call.1} parent=1 // pred_fallthru
      _
    // Predicated region
    $region122: #{tpu_custom_call.1} parent=1 // pred_check
      _
    $region123: #{tpu_custom_call.1} parent=1 // pred_check_branch
      %4801 = sbr.rel (0) target = $region125
    $region124: #{tpu_custom_call.1} parent=1 // pred_region
      %4803 = dma.done [#allocation4], 256
    $region125: #{tpu_custom_call.1} parent=1 // pred_fallthru
      _
    %4804 = vsyncpa [#allocation3], 1
    %4805 = vsyncpa [#allocation6], 1
    %4806 = vsyncpa [#allocation9], 1
    %4807 = vsyncpa [#allocation12], 1
    %4808 = vsyncpa [#allocation4], 1

</llo_original>
